<compile_context>
chip_gen: v6e
topology: v6e:2x2x1
jax: 0.10.0
libtpu: 0.0.40
codegen_flags: <defaults>
</compile_context>

<pallas_src>
import functools
import math

import jax
import jax.numpy as jnp
from jax.experimental import pallas as pl
from jax.experimental.pallas import tpu as pltpu


# ----------------------------- Kernel 1: fused Q/K/V projection ---------------------------

def _qkv_proj_kernel(xq_ref, xk_ref, xv_ref, wq_ref, wk_ref, wv_ref,
                     qp_ref, kp_ref, vp_ref):
    # Three back-to-back MXU matmuls, no bias (matches torch bias=False projections).
    qp_ref[...] = jnp.dot(xq_ref[...], wq_ref[...],
                          preferred_element_type=jnp.float32).astype(qp_ref.dtype)
    kp_ref[...] = jnp.dot(xk_ref[...], wk_ref[...],
                          preferred_element_type=jnp.float32).astype(kp_ref.dtype)
    vp_ref[...] = jnp.dot(xv_ref[...], wv_ref[...],
                          preferred_element_type=jnp.float32).astype(vp_ref.dtype)


def qkv_projection(xq, xk, xv, wq, wk, wv):
    """One pallas_call computing xq@wq, xk@wk, xv@wv (whole arrays resident in VMEM)."""
    Mq, C = xq.shape
    Mk, _ = xk.shape
    Mv, _ = xv.shape
    Cout = wq.shape[1]
    return pl.pallas_call(
        _qkv_proj_kernel,
        out_shape=(jax.ShapeDtypeStruct((Mq, Cout), xq.dtype),
                   jax.ShapeDtypeStruct((Mk, Cout), xk.dtype),
                   jax.ShapeDtypeStruct((Mv, Cout), xv.dtype)),
        grid_spec=pltpu.PrefetchScalarGridSpec(
            num_scalar_prefetch=0,
            grid=(1,),
            in_specs=[
                pl.BlockSpec((Mq, C), lambda i: (0, 0)),
                pl.BlockSpec((Mk, C), lambda i: (0, 0)),
                pl.BlockSpec((Mv, C), lambda i: (0, 0)),
                pl.BlockSpec((C, Cout), lambda i: (0, 0)),
                pl.BlockSpec((C, Cout), lambda i: (0, 0)),
                pl.BlockSpec((C, Cout), lambda i: (0, 0)),
            ],
            out_specs=(
                pl.BlockSpec((Mq, Cout), lambda i: (0, 0)),
                pl.BlockSpec((Mk, Cout), lambda i: (0, 0)),
                pl.BlockSpec((Mv, Cout), lambda i: (0, 0)),
            ),
        ),
        compiler_params=pltpu.CompilerParams(dimension_semantics=("arbitrary",)),
    )(xq, xk, xv, wq, wk, wv)


# ------------------- Kernel 2: attention + head combine + output projection ---------------

def _attn_output_kernel(q_ref, k_ref, v_ref, wo_ref, bo_ref, o_ref, *,
                        head_num, batch, scale):
    # q_ref: (H*B, Qn, D); k_ref/v_ref: (H*B, Kn, D); wo: (C, C); bo: (1, C)
    q = q_ref[...] * scale                       # fold 1/sqrt(D) into Q (Q*D elements)
    k = k_ref[...]
    v = v_ref[...]

    # Scores for every (head, batch) group in one batched MXU matmul.
    s = jax.lax.dot_general(q, k, (((2,), (2,)), ((0,), (0,))),
                            preferred_element_type=jnp.float32)      # (G, Qn, Kn)
    m = jnp.max(s, axis=-1, keepdims=True)
    p = jnp.exp(s - m)
    denom = jnp.sum(p, axis=-1, keepdims=True)
    attn = p * pl.reciprocal(denom, approx=True)                     # EUP slot, ~free
    # dropout(p=0.1) -> identity (eval semantics)

    ctx = jax.lax.dot_general(attn, v, (((2,), (1,)), ((0,), (0,))),
                              preferred_element_type=jnp.float32)    # (G, Qn, D)

    # Head combine: out2d[b*Qn + q, h*D + d] = ctx[h*B + b, q, d]
    # Built with simple leading-dim slices + sublane/lane concats (Mosaic-friendly).
    pieces = []
    for h in range(head_num):
        rows = [ctx[h * batch + b] for b in range(batch)]            # each (Qn, D)
        pieces.append(jnp.concatenate(rows, axis=0) if batch > 1 else rows[0])
    out2d = jnp.concatenate(pieces, axis=-1)                         # (B*Qn, H*D) lane-dense

    y = jnp.dot(out2d, wo_ref[...], preferred_element_type=jnp.float32) + bo_ref[...]
    o_ref[...] = y.astype(o_ref.dtype)


def attention_output_projection(q3, k3, v3, wo, bo, *, head_num, batch):
    G, Qn, D = q3.shape
    _, Kn, _ = k3.shape
    C, Cout = wo.shape
    scale = 1.0 / math.sqrt(D)
    kern = functools.partial(_attn_output_kernel, head_num=head_num, batch=batch,
                             scale=scale)
    return pl.pallas_call(
        kern,
        out_shape=jax.ShapeDtypeStruct((batch * Qn, Cout), q3.dtype),
        grid_spec=pltpu.PrefetchScalarGridSpec(
            num_scalar_prefetch=0,
            grid=(1,),
            in_specs=[
                pl.BlockSpec((G, Qn, D), lambda i: (0, 0, 0)),
                pl.BlockSpec((G, Kn, D), lambda i: (0, 0, 0)),
                pl.BlockSpec((G, Kn, D), lambda i: (0, 0, 0)),
                pl.BlockSpec((C, Cout), lambda i: (0, 0)),
                pl.BlockSpec((1, Cout), lambda i: (0, 0)),
            ],
            out_specs=pl.BlockSpec((batch * Qn, Cout), lambda i: (0, 0)),
        ),
        compiler_params=pltpu.CompilerParams(dimension_semantics=("arbitrary",)),
    )(q3, k3, v3, wo, bo.reshape(1, Cout))


# --------------------------------- Module wrapper ------------------------------------------

def init_params(rng, input_size, head_num):
    hidden = head_num * (input_size // head_num)     # == input_size here
    k1, k2, k3, k4, k5 = jax.random.split(rng, 5)

    def u(key, shape, fan_in):
        bound = 1.0 / math.sqrt(fan_in)
        return jax.random.uniform(key, shape, jnp.float32, -bound, bound)

    return dict(
        wq=u(k1, (input_size, hidden), input_size),   # query_projection (bias=False)
        wk=u(k2, (input_size, hidden), input_size),   # key_projection   (bias=False)
        wv=u(k3, (input_size, hidden), input_size),   # value_projection (bias=False)
        wo=u(k4, (hidden, input_size), hidden),       # output_projection weight
        bo=u(k5, (input_size,), hidden),              # output_projection bias
    )


def multi_head_attention(params, query, key, value, head_num):
    B, Qn, C = query.shape
    _, Kn, _ = key.shape
    H = head_num
    D = C // H

    qp, kp, vp = qkv_projection(
        query.reshape(B * Qn, C), key.reshape(B * Kn, C), value.reshape(B * Kn, C),
        params["wq"], params["wk"], params["wv"])

    # torch's raw `.view(head_num, batch, len, head_size)` == flat row-major reshape.
    q3 = qp.reshape(H * B, Qn, D)
    k3 = kp.reshape(H * B, Kn, D)
    v3 = vp.reshape(H * B, Kn, D)

    out2d = attention_output_projection(q3, k3, v3, params["wo"], params["bo"],
                                        head_num=H, batch=B)
    return out2d.reshape(B, Qn, C)


# ------------------------------- Pure-JAX reference ----------------------------------------

def multi_head_attention_reference(params, query, key, value, head_num):
    B, Qn, C = query.shape
    _, Kn, _ = key.shape
    H = head_num
    D = C // H
    hp = jax.lax.Precision.HIGHEST
    qp = jnp.dot(query.reshape(B * Qn, C), params["wq"], precision=hp)
    kp = jnp.dot(key.reshape(B * Kn, C), params["wk"], precision=hp)
    vp = jnp.dot(value.reshape(B * Kn, C), params["wv"], precision=hp)
    q5 = qp.reshape(H, B, Qn, D)
    k5 = kp.reshape(H, B, Kn, D)
    v5 = vp.reshape(H, B, Kn, D)
    s = jnp.einsum("hbqd,hbkd->hbqk", q5, k5, precision=hp) / math.sqrt(D)
    attn = jax.nn.softmax(s, axis=-1)
    ctx = jnp.einsum("hbqk,hbkd->hbqd", attn, v5, precision=hp)
    out = jnp.transpose(ctx, (1, 2, 0, 3)).reshape(B * Qn, H * D)
    return (jnp.dot(out, params["wo"], precision=hp) + params["bo"]).reshape(B, Qn, C)


if __name__ == "__main__":
    head_num = 8
    input_size = 128                    # matches the torch spec; keeps outputs lane-dense
    batch, q_len, kv_len = 2, 8, 16     # small batch/sequence sizes

    rng = jax.random.PRNGKey(0)
    k_params, k_q, k_k, k_v = jax.random.split(rng, 4)
    params = init_params(k_params, input_size, head_num)

    query = jax.random.normal(k_q, (batch, q_len, input_size), jnp.float32)
    key = jax.random.normal(k_k, (batch, kv_len, input_size), jnp.float32)
    value = jax.random.normal(k_v, (batch, kv_len, input_size), jnp.float32)

    mha = jax.jit(multi_head_attention, static_argnames=("head_num",))
    out = mha(params, query, key, value, head_num=head_num)
    out = jax.block_until_ready(out)

    ref = multi_head_attention_reference(params, query, key, value, head_num)
    assert out.shape == (batch, q_len, input_size)
    assert bool(jnp.all(jnp.isfinite(out)))
    assert bool(jnp.allclose(out, ref, atol=5e-2, rtol=5e-2)), \
        float(jnp.max(jnp.abs(out - ref)))
    print("KERNEL_OK")
</pallas_src>

<mosaic_0001>
module attributes {stable_mosaic.version = 11 : i64} {
  func.func @_attn_output_kernel(%arg0: i32, %arg1: memref<16x8x16xf32, #tpu.memory_space<vmem>>, %arg2: memref<16x16x16xf32, #tpu.memory_space<vmem>>, %arg3: memref<16x16x16xf32, #tpu.memory_space<vmem>>, %arg4: memref<128x128xf32, #tpu.memory_space<vmem>>, %arg5: memref<1x128xf32, #tpu.memory_space<vmem>>, %arg6: memref<16x128xf32, #tpu.memory_space<vmem>>) attributes {dimension_semantics = [#tpu.dimension_semantics<arbitrary>], iteration_bounds = array<i64: 1>, scalar_prefetch = 0 : i64, scratch_operands = 0 : i64, tpu.core_type = #tpu.core_type<tc>, window_params = [{pipeline_mode = #tpu.pipeline_mode<synchronous>, transform_indices = @transform_0, window_bounds = array<i64: 16, 8, 16>}, {pipeline_mode = #tpu.pipeline_mode<synchronous>, transform_indices = @transform_1, window_bounds = array<i64: 16, 16, 16>}, {pipeline_mode = #tpu.pipeline_mode<synchronous>, transform_indices = @transform_2, window_bounds = array<i64: 16, 16, 16>}, {pipeline_mode = #tpu.pipeline_mode<synchronous>, transform_indices = @transform_3, window_bounds = array<i64: 128, 128>}, {pipeline_mode = #tpu.pipeline_mode<synchronous>, transform_indices = @transform_4, window_bounds = array<i64: 1, 128>}, {pipeline_mode = #tpu.pipeline_mode<synchronous>, transform_indices = @transform_5, window_bounds = array<i64: 16, 128>}]} {
    %c0 = arith.constant 0 : index
    %c0_0 = arith.constant 0 : index
    %c0_1 = arith.constant 0 : index
    %0 = vector.load %arg1[%c0, %c0_0, %c0_1] : memref<16x8x16xf32, #tpu.memory_space<vmem>>, vector<16x8x16xf32>
    %cst = arith.constant 2.500000e-01 : f32
    %1 = vector.broadcast %cst : f32 to vector<16x8x16xf32>
    %2 = arith.mulf %0, %1 : vector<16x8x16xf32>
    %c0_2 = arith.constant 0 : index
    %c0_3 = arith.constant 0 : index
    %c0_4 = arith.constant 0 : index
    %3 = vector.load %arg2[%c0_2, %c0_3, %c0_4] : memref<16x16x16xf32, #tpu.memory_space<vmem>>, vector<16x16x16xf32>
    %c0_5 = arith.constant 0 : index
    %c0_6 = arith.constant 0 : index
    %c0_7 = arith.constant 0 : index
    %4 = vector.load %arg3[%c0_5, %c0_6, %c0_7] : memref<16x16x16xf32, #tpu.memory_space<vmem>>, vector<16x16x16xf32>
    %cst_8 = arith.constant dense<0.000000e+00> : vector<16x8x16xf32>
    %5 = tpu.matmul %2, %3, %cst_8 {dimension_numbers = #tpu.dot_dimension_numbers<[2], [2], [1], [1], [0, 0, 0, 1, 1, 1], [0], [0]>} : vector<16x8x16xf32>, vector<16x16x16xf32>, vector<16x8x16xf32> -> vector<16x8x16xf32>
    %cst_9 = arith.constant dense<0xFF800000> : vector<16x8xf32>
    %6 = vector.multi_reduction <maximumf>, %5, %cst_9 [2] : vector<16x8x16xf32> to vector<16x8xf32>
    %7 = vector.shape_cast %6 : vector<16x8xf32> to vector<16x8x1xf32>
    %8 = vector.broadcast %7 : vector<16x8x1xf32> to vector<16x8x16xf32>
    %9 = arith.subf %5, %8 : vector<16x8x16xf32>
    %10 = math.exp %9 : vector<16x8x16xf32>
    %cst_10 = arith.constant dense<0.000000e+00> : vector<16x8xf32>
    %11 = vector.multi_reduction <add>, %10, %cst_10 [2] : vector<16x8x16xf32> to vector<16x8xf32>
    %12 = vector.shape_cast %11 : vector<16x8xf32> to vector<16x8x1xf32>
    %13 = tpu.reciprocal %12 {approx = true} : vector<16x8x1xf32> -> vector<16x8x1xf32>
    %14 = vector.broadcast %13 : vector<16x8x1xf32> to vector<16x8x16xf32>
    %15 = arith.mulf %10, %14 : vector<16x8x16xf32>
    %cst_11 = arith.constant dense<0.000000e+00> : vector<16x8x16xf32>
    %16 = tpu.matmul %15, %4, %cst_11 {dimension_numbers = #tpu.dot_dimension_numbers<[2], [1], [1], [2], [0, 0, 0, 1, 1, 2], [0], [0]>} : vector<16x8x16xf32>, vector<16x16x16xf32>, vector<16x8x16xf32> -> vector<16x8x16xf32>
    %17 = vector.extract_strided_slice %16 {offsets = [0, 0, 0], sizes = [1, 8, 16], strides = [1, 1, 1]} : vector<16x8x16xf32> to vector<1x8x16xf32>
    %18 = vector.shape_cast %17 : vector<1x8x16xf32> to vector<8x16xf32>
    %19 = vector.extract_strided_slice %16 {offsets = [1, 0, 0], sizes = [1, 8, 16], strides = [1, 1, 1]} : vector<16x8x16xf32> to vector<1x8x16xf32>
    %20 = vector.shape_cast %19 : vector<1x8x16xf32> to vector<8x16xf32>
    %21 = tpu.concatenate %18, %20 in 0 : vector<8x16xf32>, vector<8x16xf32> -> vector<16x16xf32>
    %22 = vector.extract_strided_slice %16 {offsets = [2, 0, 0], sizes = [1, 8, 16], strides = [1, 1, 1]} : vector<16x8x16xf32> to vector<1x8x16xf32>
    %23 = vector.shape_cast %22 : vector<1x8x16xf32> to vector<8x16xf32>
    %24 = vector.extract_strided_slice %16 {offsets = [3, 0, 0], sizes = [1, 8, 16], strides = [1, 1, 1]} : vector<16x8x16xf32> to vector<1x8x16xf32>
    %25 = vector.shape_cast %24 : vector<1x8x16xf32> to vector<8x16xf32>
    %26 = tpu.concatenate %23, %25 in 0 : vector<8x16xf32>, vector<8x16xf32> -> vector<16x16xf32>
    %27 = vector.extract_strided_slice %16 {offsets = [4, 0, 0], sizes = [1, 8, 16], strides = [1, 1, 1]} : vector<16x8x16xf32> to vector<1x8x16xf32>
    %28 = vector.shape_cast %27 : vector<1x8x16xf32> to vector<8x16xf32>
    %29 = vector.extract_strided_slice %16 {offsets = [5, 0, 0], sizes = [1, 8, 16], strides = [1, 1, 1]} : vector<16x8x16xf32> to vector<1x8x16xf32>
    %30 = vector.shape_cast %29 : vector<1x8x16xf32> to vector<8x16xf32>
    %31 = tpu.concatenate %28, %30 in 0 : vector<8x16xf32>, vector<8x16xf32> -> vector<16x16xf32>
    %32 = vector.extract_strided_slice %16 {offsets = [6, 0, 0], sizes = [1, 8, 16], strides = [1, 1, 1]} : vector<16x8x16xf32> to vector<1x8x16xf32>
    %33 = vector.shape_cast %32 : vector<1x8x16xf32> to vector<8x16xf32>
    %34 = vector.extract_strided_slice %16 {offsets = [7, 0, 0], sizes = [1, 8, 16], strides = [1, 1, 1]} : vector<16x8x16xf32> to vector<1x8x16xf32>
    %35 = vector.shape_cast %34 : vector<1x8x16xf32> to vector<8x16xf32>
    %36 = tpu.concatenate %33, %35 in 0 : vector<8x16xf32>, vector<8x16xf32> -> vector<16x16xf32>
    %37 = vector.extract_strided_slice %16 {offsets = [8, 0, 0], sizes = [1, 8, 16], strides = [1, 1, 1]} : vector<16x8x16xf32> to vector<1x8x16xf32>
    %38 = vector.shape_cast %37 : vector<1x8x16xf32> to vector<8x16xf32>
    %39 = vector.extract_strided_slice %16 {offsets = [9, 0, 0], sizes = [1, 8, 16], strides = [1, 1, 1]} : vector<16x8x16xf32> to vector<1x8x16xf32>
    %40 = vector.shape_cast %39 : vector<1x8x16xf32> to vector<8x16xf32>
    %41 = tpu.concatenate %38, %40 in 0 : vector<8x16xf32>, vector<8x16xf32> -> vector<16x16xf32>
    %42 = vector.extract_strided_slice %16 {offsets = [10, 0, 0], sizes = [1, 8, 16], strides = [1, 1, 1]} : vector<16x8x16xf32> to vector<1x8x16xf32>
    %43 = vector.shape_cast %42 : vector<1x8x16xf32> to vector<8x16xf32>
    %44 = vector.extract_strided_slice %16 {offsets = [11, 0, 0], sizes = [1, 8, 16], strides = [1, 1, 1]} : vector<16x8x16xf32> to vector<1x8x16xf32>
    %45 = vector.shape_cast %44 : vector<1x8x16xf32> to vector<8x16xf32>
    %46 = tpu.concatenate %43, %45 in 0 : vector<8x16xf32>, vector<8x16xf32> -> vector<16x16xf32>
    %47 = vector.extract_strided_slice %16 {offsets = [12, 0, 0], sizes = [1, 8, 16], strides = [1, 1, 1]} : vector<16x8x16xf32> to vector<1x8x16xf32>
    %48 = vector.shape_cast %47 : vector<1x8x16xf32> to vector<8x16xf32>
    %49 = vector.extract_strided_slice %16 {offsets = [13, 0, 0], sizes = [1, 8, 16], strides = [1, 1, 1]} : vector<16x8x16xf32> to vector<1x8x16xf32>
    %50 = vector.shape_cast %49 : vector<1x8x16xf32> to vector<8x16xf32>
    %51 = tpu.concatenate %48, %50 in 0 : vector<8x16xf32>, vector<8x16xf32> -> vector<16x16xf32>
    %52 = vector.extract_strided_slice %16 {offsets = [14, 0, 0], sizes = [1, 8, 16], strides = [1, 1, 1]} : vector<16x8x16xf32> to vector<1x8x16xf32>
    %53 = vector.shape_cast %52 : vector<1x8x16xf32> to vector<8x16xf32>
    %54 = vector.extract_strided_slice %16 {offsets = [15, 0, 0], sizes = [1, 8, 16], strides = [1, 1, 1]} : vector<16x8x16xf32> to vector<1x8x16xf32>
    %55 = vector.shape_cast %54 : vector<1x8x16xf32> to vector<8x16xf32>
    %56 = tpu.concatenate %53, %55 in 0 : vector<8x16xf32>, vector<8x16xf32> -> vector<16x16xf32>
    %57 = tpu.concatenate %21, %26, %31, %36, %41, %46, %51, %56 in 1 : vector<16x16xf32>, vector<16x16xf32>, vector<16x16xf32>, vector<16x16xf32>, vector<16x16xf32>, vector<16x16xf32>, vector<16x16xf32>, vector<16x16xf32> -> vector<16x128xf32>
    %c0_12 = arith.constant 0 : index
    %c0_13 = arith.constant 0 : index
    %58 = vector.load %arg4[%c0_12, %c0_13] : memref<128x128xf32, #tpu.memory_space<vmem>>, vector<128x128xf32>
    %cst_14 = arith.constant dense<0.000000e+00> : vector<16x128xf32>
    %59 = tpu.matmul %57, %58, %cst_14 {dimension_numbers = #tpu.dot_dimension_numbers<[1], [0], [0], [1], [0, 0, 1, 1], [], []>} : vector<16x128xf32>, vector<128x128xf32>, vector<16x128xf32> -> vector<16x128xf32>
    %c0_15 = arith.constant 0 : index
    %c0_16 = arith.constant 0 : index
    %60 = vector.load %arg5[%c0_15, %c0_16] : memref<1x128xf32, #tpu.memory_space<vmem>>, vector<1x128xf32>
    %61 = vector.broadcast %60 : vector<1x128xf32> to vector<16x128xf32>
    %62 = arith.addf %59, %61 : vector<16x128xf32>
    %c0_17 = arith.constant 0 : index
    %c0_18 = arith.constant 0 : index
    %63 = vector.load %arg6[%c0_17, %c0_18] : memref<16x128xf32, #tpu.memory_space<vmem>>, vector<16x128xf32>
    tpu.vector_store %arg6[%c0_17, %c0_18], %62 {strides = array<i32>} : memref<16x128xf32, #tpu.memory_space<vmem>>, vector<16x128xf32>,
    return
  }
  func.func @transform_0(%arg0: i32) -> (i32, i32, i32) {
    %c0_i32 = arith.constant 0 : i32
    %c0_i32_0 = arith.constant 0 : i32
    %c0_i32_1 = arith.constant 0 : i32
    %c0_i32_2 = arith.constant 0 : i32
    return %c0_i32, %c0_i32_0, %c0_i32_1 : i32, i32, i32
  }
  func.func @transform_1(%arg0: i32) -> (i32, i32, i32) {
    %c0_i32 = arith.constant 0 : i32
    %c0_i32_0 = arith.constant 0 : i32
    %c0_i32_1 = arith.constant 0 : i32
    %c0_i32_2 = arith.constant 0 : i32
    return %c0_i32, %c0_i32_0, %c0_i32_1 : i32, i32, i32
  }
  func.func @transform_2(%arg0: i32) -> (i32, i32, i32) {
    %c0_i32 = arith.constant 0 : i32
    %c0_i32_0 = arith.constant 0 : i32
    %c0_i32_1 = arith.constant 0 : i32
    %c0_i32_2 = arith.constant 0 : i32
    return %c0_i32, %c0_i32_0, %c0_i32_1 : i32, i32, i32
  }
  func.func @transform_3(%arg0: i32) -> (i32, i32) {
    %c0_i32 = arith.constant 0 : i32
    %c0_i32_0 = arith.constant 0 : i32
    %c0_i32_1 = arith.constant 0 : i32
    return %c0_i32, %c0_i32_0 : i32, i32
  }
  func.func @transform_4(%arg0: i32) -> (i32, i32) {
    %c0_i32 = arith.constant 0 : i32
    %c0_i32_0 = arith.constant 0 : i32
    %c0_i32_1 = arith.constant 0 : i32
    return %c0_i32, %c0_i32_0 : i32, i32
  }
  func.func @transform_5(%arg0: i32) -> (i32, i32) {
    %c0_i32 = arith.constant 0 : i32
    %c0_i32_0 = arith.constant 0 : i32
    %c0_i32_1 = arith.constant 0 : i32
    return %c0_i32, %c0_i32_0 : i32, i32
  }
}

module attributes {stable_mosaic.version = 11 : i64} {
  func.func @_qkv_proj_kernel(%arg0: i32, %arg1: memref<16x128xf32, #tpu.memory_space<vmem>>, %arg2: memref<32x128xf32, #tpu.memory_space<vmem>>, %arg3: memref<32x128xf32, #tpu.memory_space<vmem>>, %arg4: memref<128x128xf32, #tpu.memory_space<vmem>>, %arg5: memref<128x128xf32, #tpu.memory_space<vmem>>, %arg6: memref<128x128xf32, #tpu.memory_space<vmem>>, %arg7: memref<16x128xf32, #tpu.memory_space<vmem>>, %arg8: memref<32x128xf32, #tpu.memory_space<vmem>>, %arg9: memref<32x128xf32, #tpu.memory_space<vmem>>) attributes {dimension_semantics = [#tpu.dimension_semantics<arbitrary>], iteration_bounds = array<i64: 1>, scalar_prefetch = 0 : i64, scratch_operands = 0 : i64, tpu.core_type = #tpu.core_type<tc>, window_params = [{pipeline_mode = #tpu.pipeline_mode<synchronous>, transform_indices = @transform_0, window_bounds = array<i64: 16, 128>}, {pipeline_mode = #tpu.pipeline_mode<synchronous>, transform_indices = @transform_1, window_bounds = array<i64: 32, 128>}, {pipeline_mode = #tpu.pipeline_mode<synchronous>, transform_indices = @transform_2, window_bounds = array<i64: 32, 128>}, {pipeline_mode = #tpu.pipeline_mode<synchronous>, transform_indices = @transform_3, window_bounds = array<i64: 128, 128>}, {pipeline_mode = #tpu.pipeline_mode<synchronous>, transform_indices = @transform_4, window_bounds = array<i64: 128, 128>}, {pipeline_mode = #tpu.pipeline_mode<synchronous>, transform_indices = @transform_5, window_bounds = array<i64: 128, 128>}, {pipeline_mode = #tpu.pipeline_mode<synchronous>, transform_indices = @transform_6, window_bounds = array<i64: 16, 128>}, {pipeline_mode = #tpu.pipeline_mode<synchronous>, transform_indices = @transform_7, window_bounds = array<i64: 32, 128>}, {pipeline_mode = #tpu.pipeline_mode<synchronous>, transform_indices = @transform_8, window_bounds = array<i64: 32, 128>}]} {
    %c0 = arith.constant 0 : index
    %c0_0 = arith.constant 0 : index
    %0 = vector.load %arg1[%c0, %c0_0] : memref<16x128xf32, #tpu.memory_space<vmem>>, vector<16x128xf32>
    %c0_1 = arith.constant 0 : index
    %c0_2 = arith.constant 0 : index
    %1 = vector.load %arg4[%c0_1, %c0_2] : memref<128x128xf32, #tpu.memory_space<vmem>>, vector<128x128xf32>
    %cst = arith.constant dense<0.000000e+00> : vector<16x128xf32>
    %2 = tpu.matmul %0, %1, %cst {dimension_numbers = #tpu.dot_dimension_numbers<[1], [0], [0], [1], [0, 0, 1, 1], [], []>} : vector<16x128xf32>, vector<128x128xf32>, vector<16x128xf32> -> vector<16x128xf32>
    %c0_3 = arith.constant 0 : index
    %c0_4 = arith.constant 0 : index
    %3 = vector.load %arg7[%c0_3, %c0_4] : memref<16x128xf32, #tpu.memory_space<vmem>>, vector<16x128xf32>
    tpu.vector_store %arg7[%c0_3, %c0_4], %2 {strides = array<i32>} : memref<16x128xf32, #tpu.memory_space<vmem>>, vector<16x128xf32>,
    %c0_5 = arith.constant 0 : index
    %c0_6 = arith.constant 0 : index
    %4 = vector.load %arg2[%c0_5, %c0_6] : memref<32x128xf32, #tpu.memory_space<vmem>>, vector<32x128xf32>
    %c0_7 = arith.constant 0 : index
    %c0_8 = arith.constant 0 : index
    %5 = vector.load %arg5[%c0_7, %c0_8] : memref<128x128xf32, #tpu.memory_space<vmem>>, vector<128x128xf32>
    %cst_9 = arith.constant dense<0.000000e+00> : vector<32x128xf32>
    %6 = tpu.matmul %4, %5, %cst_9 {dimension_numbers = #tpu.dot_dimension_numbers<[1], [0], [0], [1], [0, 0, 1, 1], [], []>} : vector<32x128xf32>, vector<128x128xf32>, vector<32x128xf32> -> vector<32x128xf32>
    %c0_10 = arith.constant 0 : index
    %c0_11 = arith.constant 0 : index
    %7 = vector.load %arg8[%c0_10, %c0_11] : memref<32x128xf32, #tpu.memory_space<vmem>>, vector<32x128xf32>
    tpu.vector_store %arg8[%c0_10, %c0_11], %6 {strides = array<i32>} : memref<32x128xf32, #tpu.memory_space<vmem>>, vector<32x128xf32>,
    %c0_12 = arith.constant 0 : index
    %c0_13 = arith.constant 0 : index
    %8 = vector.load %arg3[%c0_12, %c0_13] : memref<32x128xf32, #tpu.memory_space<vmem>>, vector<32x128xf32>
    %c0_14 = arith.constant 0 : index
    %c0_15 = arith.constant 0 : index
    %9 = vector.load %arg6[%c0_14, %c0_15] : memref<128x128xf32, #tpu.memory_space<vmem>>, vector<128x128xf32>
    %cst_16 = arith.constant dense<0.000000e+00> : vector<32x128xf32>
    %10 = tpu.matmul %8, %9, %cst_16 {dimension_numbers = #tpu.dot_dimension_numbers<[1], [0], [0], [1], [0, 0, 1, 1], [], []>} : vector<32x128xf32>, vector<128x128xf32>, vector<32x128xf32> -> vector<32x128xf32>
    %c0_17 = arith.constant 0 : index
    %c0_18 = arith.constant 0 : index
    %11 = vector.load %arg9[%c0_17, %c0_18] : memref<32x128xf32, #tpu.memory_space<vmem>>, vector<32x128xf32>
    tpu.vector_store %arg9[%c0_17, %c0_18], %10 {strides = array<i32>} : memref<32x128xf32, #tpu.memory_space<vmem>>, vector<32x128xf32>,
    return
  }
  func.func @transform_0(%arg0: i32) -> (i32, i32) {
    %c0_i32 = arith.constant 0 : i32
    %c0_i32_0 = arith.constant 0 : i32
    %c0_i32_1 = arith.constant 0 : i32
    return %c0_i32, %c0_i32_0 : i32, i32
  }
  func.func @transform_1(%arg0: i32) -> (i32, i32) {
    %c0_i32 = arith.constant 0 : i32
    %c0_i32_0 = arith.constant 0 : i32
    %c0_i32_1 = arith.constant 0 : i32
    return %c0_i32, %c0_i32_0 : i32, i32
  }
  func.func @transform_2(%arg0: i32) -> (i32, i32) {
    %c0_i32 = arith.constant 0 : i32
    %c0_i32_0 = arith.constant 0 : i32
    %c0_i32_1 = arith.constant 0 : i32
    return %c0_i32, %c0_i32_0 : i32, i32
  }
  func.func @transform_3(%arg0: i32) -> (i32, i32) {
    %c0_i32 = arith.constant 0 : i32
    %c0_i32_0 = arith.constant 0 : i32
    %c0_i32_1 = arith.constant 0 : i32
    return %c0_i32, %c0_i32_0 : i32, i32
  }
  func.func @transform_4(%arg0: i32) -> (i32, i32) {
    %c0_i32 = arith.constant 0 : i32
    %c0_i32_0 = arith.constant 0 : i32
    %c0_i32_1 = arith.constant 0 : i32
    return %c0_i32, %c0_i32_0 : i32, i32
  }
  func.func @transform_5(%arg0: i32) -> (i32, i32) {
    %c0_i32 = arith.constant 0 : i32
    %c0_i32_0 = arith.constant 0 : i32
    %c0_i32_1 = arith.constant 0 : i32
    return %c0_i32, %c0_i32_0 : i32, i32
  }
  func.func @transform_6(%arg0: i32) -> (i32, i32) {
    %c0_i32 = arith.constant 0 : i32
    %c0_i32_0 = arith.constant 0 : i32
    %c0_i32_1 = arith.constant 0 : i32
    return %c0_i32, %c0_i32_0 : i32, i32
  }
  func.func @transform_7(%arg0: i32) -> (i32, i32) {
    %c0_i32 = arith.constant 0 : i32
    %c0_i32_0 = arith.constant 0 : i32
    %c0_i32_1 = arith.constant 0 : i32
    return %c0_i32, %c0_i32_0 : i32, i32
  }
  func.func @transform_8(%arg0: i32) -> (i32, i32) {
    %c0_i32 = arith.constant 0 : i32
    %c0_i32_0 = arith.constant 0 : i32
    %c0_i32_1 = arith.constant 0 : i32
    return %c0_i32, %c0_i32_0 : i32, i32
  }
}

</mosaic_0001>

<llo_original>
// kernel: multi_head_attention.2
$region0: #{multi_head_attention.2}
  #allocation0 [shape = 'u32[]', space=smem, size = 0x4, offset = 0x4, fixed_abs, tag = 'smem constant byte address 0x4 - core index']
  #allocation1 [shape = 'u32[144,128]{1,0:T(1,128)}', space=vmem, size = 0x12000, scoped, tag = 'internal scratch']
  %s0 = inlined_call_operand.vmem [shape: f32[16,128], index: 0, kind: input, shape index: {}]
  %s1 = inlined_call_operand.hbm [shape: f32[32,128], index: 1, kind: input, shape index: {}]
  %s2 = inlined_call_operand.hbm [shape: f32[32,128], index: 2, kind: input, shape index: {}]
  %s3 = inlined_call_operand.hbm [shape: f32[128,128], index: 3, kind: input, shape index: {}]
  %s4 = inlined_call_operand.hbm [shape: f32[128,128], index: 4, kind: input, shape index: {}]
  %s5 = inlined_call_operand.hbm [shape: f32[128,128], index: 5, kind: input, shape index: {}]
  %s6 = inlined_call_operand.vmem [shape: f32[16,128], index: 6, kind: output, shape index: {0}]
  %s7 = inlined_call_operand.vmem [shape: f32[32,128], index: 7, kind: output, shape index: {1}]
  %s8 = inlined_call_operand.vmem [shape: f32[32,128], index: 8, kind: output, shape index: {2}]
  %9 = xla_tuple %s6, %s7, %s8
  %s10 = sld [smem:[#allocation0]]
  $region70: #{multi_head_attention.2} parent=0
    _
  %s12 = ssub.s32 1, %s10
  %s13 = scalar_select 0, %s12, %s10
  $region1: #{multi_head_attention.2} parent=0
    #allocation2 [shape = 'u8[16384]{0}', space=vmem, size = 0x4000, scoped, tag = 'input window, operand 1, single buffered']
    #allocation3 [shape = 's32[1]{0}', space=sflag, size = 0x4, scoped, tag = 'scoped memory for multi_head_attention.2']
    #allocation4 [shape = 'u8[16384]{0}', space=vmem, size = 0x4000, scoped, tag = 'input window, operand 2, single buffered']
    #allocation5 [shape = 's32[1]{0}', space=sflag, size = 0x4, scoped, tag = 'scoped memory for multi_head_attention.2']
    #allocation6 [shape = 'u8[65536]{0}', space=vmem, size = 0x10000, scoped, tag = 'input window, operand 3, single buffered']
    #allocation7 [shape = 'u8[65536]{0}', space=vmem, size = 0x10000, scoped, tag = 'input window, operand 4, single buffered']
    #allocation8 [shape = 's32[1]{0}', space=sflag, size = 0x4, scoped, tag = 'scoped memory for multi_head_attention.2']
    #allocation9 [shape = 'u8[65536]{0}', space=vmem, size = 0x10000, scoped, tag = 'input window, operand 5, single buffered']
    %14 = vsyncpa [#allocation3], 0
    %15 = vsyncpa [#allocation5], 0
    %16 = vsyncpa [#allocation8], 0
    // Predicated region
    $region2: #{multi_head_attention.2} parent=1 // pred_check
      _
    $region3: #{multi_head_attention.2} parent=1 // pred_check_branch
      %18 = sbr.rel (0) target = $region5
    $region4: #{multi_head_attention.2} parent=1 // pred_region
      _
    $region5: #{multi_head_attention.2} parent=1 // pred_fallthru
      _
    // Predicated region
    $region6: #{multi_head_attention.2} parent=1 // pred_check
      _
    $region7: #{multi_head_attention.2} parent=1 // pred_check_branch
      %20 = sbr.rel (0) target = $region9
    $region8: #{multi_head_attention.2} parent=1 // pred_region
      %s22 = ssub.s32 512, 512
      %23 = vsyncadd [#allocation3], %s22
      %s24 = sshll.u32 [#allocation2], 4
      %s25 = int_to_ptr.vmem [resolvable:$true] %s24
      %30 = dma.hbm_to_vmem [thread:$0]  %s1, 512, %s25, [#allocation3], 128, 128, 8
    $region9: #{multi_head_attention.2} parent=1 // pred_fallthru
      _
    // Predicated region
    $region10: #{multi_head_attention.2} parent=1 // pred_check
      _
    $region11: #{multi_head_attention.2} parent=1 // pred_check_branch
      %32 = sbr.rel (0) target = $region13
    $region12: #{multi_head_attention.2} parent=1 // pred_region
      %s34 = ssub.s32 512, 512
      %35 = vsyncadd [#allocation5], %s34
      %s36 = sshll.u32 [#allocation4], 4
      %s37 = int_to_ptr.vmem [resolvable:$true] %s36
      %42 = dma.hbm_to_vmem [thread:$0]  %s2, 512, %s37, [#allocation5], 128, 128, 8
    $region13: #{multi_head_attention.2} parent=1 // pred_fallthru
      _
    // Predicated region
    $region14: #{multi_head_attention.2} parent=1 // pred_check
      _
    $region15: #{multi_head_attention.2} parent=1 // pred_check_branch
      %44 = sbr.rel (0) target = $region17
    $region16: #{multi_head_attention.2} parent=1 // pred_region
      %s46 = ssub.s32 2048, 2048
      %47 = vsyncadd [#allocation5], %s46
      %s48 = sshll.u32 [#allocation6], 4
      %s49 = int_to_ptr.vmem [resolvable:$true] %s48
      %54 = dma.hbm_to_vmem [thread:$0]  %s3, 2048, %s49, [#allocation5], 128, 128, 8
    $region17: #{multi_head_attention.2} parent=1 // pred_fallthru
      _
    // Predicated region
    $region18: #{multi_head_attention.2} parent=1 // pred_check
      _
    $region19: #{multi_head_attention.2} parent=1 // pred_check_branch
      %56 = sbr.rel (0) target = $region21
    $region20: #{multi_head_attention.2} parent=1 // pred_region
      %s58 = ssub.s32 2048, 2048
      %59 = vsyncadd [#allocation8], %s58
      %s60 = sshll.u32 [#allocation7], 4
      %s61 = int_to_ptr.vmem [resolvable:$true] %s60
      %66 = dma.hbm_to_vmem [thread:$0]  %s4, 2048, %s61, [#allocation8], 128, 128, 8
    $region21: #{multi_head_attention.2} parent=1 // pred_fallthru
      _
    // Predicated region
    $region22: #{multi_head_attention.2} parent=1 // pred_check
      _
    $region23: #{multi_head_attention.2} parent=1 // pred_check_branch
      %68 = sbr.rel (0) target = $region25
    $region24: #{multi_head_attention.2} parent=1 // pred_region
      %s70 = ssub.s32 2048, 2048
      %71 = vsyncadd [#allocation8], %s70
      %s72 = sshll.u32 [#allocation9], 4
      %s73 = int_to_ptr.vmem [resolvable:$true] %s72
      %78 = dma.hbm_to_vmem [thread:$0]  %s5, 2048, %s73, [#allocation8], 128, 128, 8
    $region25: #{multi_head_attention.2} parent=1 // pred_fallthru
      _
    // Predicated region
    $region26: #{multi_head_attention.2} parent=1 // pred_check
      _
    $region27: #{multi_head_attention.2} parent=1 // pred_check_branch
      %80 = sbr.rel (0) target = $region29
    $region28: #{multi_head_attention.2} parent=1 // pred_region
      %81 = dma.done [#allocation3], 512
    $region29: #{multi_head_attention.2} parent=1 // pred_fallthru
      _
    // Predicated region
    $region30: #{multi_head_attention.2} parent=1 // pred_check
      _
    $region31: #{multi_head_attention.2} parent=1 // pred_check_branch
      %83 = sbr.rel (0) target = $region33
    $region32: #{multi_head_attention.2} parent=1 // pred_region
      %84 = dma.done [#allocation5], 512
    $region33: #{multi_head_attention.2} parent=1 // pred_fallthru
      _
    // Predicated region
    $region34: #{multi_head_attention.2} parent=1 // pred_check
      _
    $region35: #{multi_head_attention.2} parent=1 // pred_check_branch
      %86 = sbr.rel (0) target = $region37
    $region36: #{multi_head_attention.2} parent=1 // pred_region
      %87 = dma.done [#allocation5], 2048
    $region37: #{multi_head_attention.2} parent=1 // pred_fallthru
      _
    // Predicated region
    $region38: #{multi_head_attention.2} parent=1 // pred_check
      _
    $region39: #{multi_head_attention.2} parent=1 // pred_check_branch
      %89 = sbr.rel (0) target = $region41
    $region40: #{multi_head_attention.2} parent=1 // pred_region
      %90 = dma.done [#allocation8], 2048
    $region41: #{multi_head_attention.2} parent=1 // pred_fallthru
      _
    // Predicated region
    $region42: #{multi_head_attention.2} parent=1 // pred_check
      _
    $region43: #{multi_head_attention.2} parent=1 // pred_check_branch
      %92 = sbr.rel (0) target = $region45
    $region44: #{multi_head_attention.2} parent=1 // pred_region
      %93 = dma.done [#allocation8], 2048
    $region45: #{multi_head_attention.2} parent=1 // pred_fallthru
      _
    %v94 = vld [vmem:[%s0] sm:$0xff]
    %v95 = vld [vmem:[%s0 + $0x8] sm:$0xff]
    %v96 = vld [vmem:[#allocation6] sm:$0xff]
    %v97 = vld [vmem:[#allocation6 + $0x8] sm:$0xff]
    %v98 = vld [vmem:[#allocation6 + $0x10] sm:$0xff]
    %v99 = vld [vmem:[#allocation6 + $0x18] sm:$0xff]
    %v100 = vld [vmem:[#allocation6 + $0x20] sm:$0xff]
    %v101 = vld [vmem:[#allocation6 + $0x28] sm:$0xff]
    %v102 = vld [vmem:[#allocation6 + $0x30] sm:$0xff]
    %v103 = vld [vmem:[#allocation6 + $0x38] sm:$0xff]
    %v104 = vld [vmem:[#allocation6 + $0x40] sm:$0xff]
    %v105 = vld [vmem:[#allocation6 + $0x48] sm:$0xff]
    %v106 = vld [vmem:[#allocation6 + $0x50] sm:$0xff]
    %v107 = vld [vmem:[#allocation6 + $0x58] sm:$0xff]
    %v108 = vld [vmem:[#allocation6 + $0x60] sm:$0xff]
    %v109 = vld [vmem:[#allocation6 + $0x68] sm:$0xff]
    %v110 = vld [vmem:[#allocation6 + $0x70] sm:$0xff]
    %v111 = vld [vmem:[#allocation6 + $0x78] sm:$0xff]
    %112 = vmatprep.subr.mxu0 0.0
    %113 = vmatpush1.msra.mxu0 %v111
    %114 = vmatprep.subr.mxu0 0.0
    %115 = vmatpush1.msra.mxu0 %v110
    %116 = vmatprep.subr.mxu0 0.0
    %117 = vmatpush1.msra.mxu0 %v109
    %118 = vmatprep.subr.mxu0 0.0
    %119 = vmatpush1.msra.mxu0 %v108
    %120 = vmatprep.subr.mxu0 0.0
    %121 = vmatpush1.msra.mxu0 %v107
    %122 = vmatprep.subr.mxu0 0.0
    %123 = vmatpush1.msra.mxu0 %v106
    %124 = vmatprep.subr.mxu0 0.0
    %125 = vmatpush1.msra.mxu0 %v105
    %126 = vmatprep.subr.mxu0 0.0
    %127 = vmatpush1.msra.mxu0 %v104
    %128 = vmatprep.subr.mxu0 0.0
    %129 = vmatpush1.msra.mxu0 %v103
    %130 = vmatprep.subr.mxu0 0.0
    %131 = vmatpush1.msra.mxu0 %v102
    %132 = vmatprep.subr.mxu0 0.0
    %133 = vmatpush1.msra.mxu0 %v101
    %134 = vmatprep.subr.mxu0 0.0
    %135 = vmatpush1.msra.mxu0 %v100
    %136 = vmatprep.subr.mxu0 0.0
    %137 = vmatpush1.msra.mxu0 %v99
    %138 = vmatprep.subr.mxu0 0.0
    %139 = vmatpush1.msra.mxu0 %v98
    %140 = vmatprep.subr.mxu0 0.0
    %141 = vmatpush1.msra.mxu0 %v97
    %142 = vmatprep.subr.mxu0 0.0
    %143 = vmatpush1.msra.mxu0 %v96
    %144 = vmatprep.subr.mxu0 0.0
    %145 = vmatpush2.msra.mxu0 0.0
    %146 = vmatprep.subr.mxu0 0.0
    %147 = vmatpush2.msra.mxu0 0.0
    %148 = vmatprep.subr.mxu0 0.0
    %149 = vmatpush2.msra.mxu0 0.0
    %150 = vmatprep.subr.mxu0 0.0
    %151 = vmatpush2.msra.mxu0 0.0
    %152 = vmatprep.subr.mxu0 0.0
    %153 = vmatpush2.msra.mxu0 0.0
    %154 = vmatprep.subr.mxu0 0.0
    %155 = vmatpush2.msra.mxu0 0.0
    %156 = vmatprep.subr.mxu0 0.0
    %157 = vmatpush2.msra.mxu0 0.0
    %158 = vmatprep.subr.mxu0 0.0
    %159 = vmatpush2.msra.mxu0 0.0
    %160 = vmatprep.subr.mxu0 0.0
    %161 = vmatpush2.msra.mxu0 0.0
    %162 = vmatprep.subr.mxu0 0.0
    %163 = vmatpush2.msra.mxu0 0.0
    %164 = vmatprep.subr.mxu0 0.0
    %165 = vmatpush2.msra.mxu0 0.0
    %166 = vmatprep.subr.mxu0 0.0
    %167 = vmatpush2.msra.mxu0 0.0
    %168 = vmatprep.subr.mxu0 0.0
    %169 = vmatpush2.msra.mxu0 0.0
    %170 = vmatprep.subr.mxu0 0.0
    %171 = vmatpush2.msra.mxu0 0.0
    %172 = vmatprep.subr.mxu0 0.0
    %173 = vmatpush2.msra.mxu0 0.0
    %174 = vmatprep.subr.mxu0 0.0
    %175 = vmatpush2.msra.mxu0 0.0
    %176 = vmatprep.mubr.f32.mxu0 0.0
    %177 = vmatmul.mubr.f32.gmra.mxu0 %v94
    %v178 = vpop.f32.mrf.mxu0
    %v179 = vadd.f32 0.0, %v178
    %v180 = vpop.f32.mrf.mxu0
    %181 = vmatprep.mubr.f32.mxu0 0.0
    %182 = vmatmul.mubr.f32.gmra.mxu0 %v95
    %v183 = vpop.f32.mrf.mxu0
    %v184 = vadd.f32 0.0, %v183
    %v185 = vpop.f32.mrf.mxu0
    %186 = vdwg.mxu0
    %187 = vst [vmem:[%s6] sm:$0xff] %v179
    %188 = vst [vmem:[%s6 + $0x8] sm:$0xff] %v184
    %v189 = vld [vmem:[#allocation2] sm:$0xff]
    %v190 = vld [vmem:[#allocation2 + $0x8] sm:$0xff]
    %v191 = vld [vmem:[#allocation2 + $0x10] sm:$0xff]
    %v192 = vld [vmem:[#allocation2 + $0x18] sm:$0xff]
    %v193 = vld [vmem:[#allocation7] sm:$0xff]
    %v194 = vld [vmem:[#allocation7 + $0x8] sm:$0xff]
    %v195 = vld [vmem:[#allocation7 + $0x10] sm:$0xff]
    %v196 = vld [vmem:[#allocation7 + $0x18] sm:$0xff]
    %v197 = vld [vmem:[#allocation7 + $0x20] sm:$0xff]
    %v198 = vld [vmem:[#allocation7 + $0x28] sm:$0xff]
    %v199 = vld [vmem:[#allocation7 + $0x30] sm:$0xff]
    %v200 = vld [vmem:[#allocation7 + $0x38] sm:$0xff]
    %v201 = vld [vmem:[#allocation7 + $0x40] sm:$0xff]
    %v202 = vld [vmem:[#allocation7 + $0x48] sm:$0xff]
    %v203 = vld [vmem:[#allocation7 + $0x50] sm:$0xff]
    %v204 = vld [vmem:[#allocation7 + $0x58] sm:$0xff]
    %v205 = vld [vmem:[#allocation7 + $0x60] sm:$0xff]
    %v206 = vld [vmem:[#allocation7 + $0x68] sm:$0xff]
    %v207 = vld [vmem:[#allocation7 + $0x70] sm:$0xff]
    %v208 = vld [vmem:[#allocation7 + $0x78] sm:$0xff]
    %209 = vmatprep.subr.mxu0 0.0
    %210 = vmatpush1.msra.mxu0 %v208
    %211 = vmatprep.subr.mxu0 0.0
    %212 = vmatpush1.msra.mxu0 %v207
    %213 = vmatprep.subr.mxu0 0.0
    %214 = vmatpush1.msra.mxu0 %v206
    %215 = vmatprep.subr.mxu0 0.0
    %216 = vmatpush1.msra.mxu0 %v205
    %217 = vmatprep.subr.mxu0 0.0
    %218 = vmatpush1.msra.mxu0 %v204
    %219 = vmatprep.subr.mxu0 0.0
    %220 = vmatpush1.msra.mxu0 %v203
    %221 = vmatprep.subr.mxu0 0.0
    %222 = vmatpush1.msra.mxu0 %v202
    %223 = vmatprep.subr.mxu0 0.0
    %224 = vmatpush1.msra.mxu0 %v201
    %225 = vmatprep.subr.mxu0 0.0
    %226 = vmatpush1.msra.mxu0 %v200
    %227 = vmatprep.subr.mxu0 0.0
    %228 = vmatpush1.msra.mxu0 %v199
    %229 = vmatprep.subr.mxu0 0.0
    %230 = vmatpush1.msra.mxu0 %v198
    %231 = vmatprep.subr.mxu0 0.0
    %232 = vmatpush1.msra.mxu0 %v197
    %233 = vmatprep.subr.mxu0 0.0
    %234 = vmatpush1.msra.mxu0 %v196
    %235 = vmatprep.subr.mxu0 0.0
    %236 = vmatpush1.msra.mxu0 %v195
    %237 = vmatprep.subr.mxu0 0.0
    %238 = vmatpush1.msra.mxu0 %v194
    %239 = vmatprep.subr.mxu0 0.0
    %240 = vmatpush1.msra.mxu0 %v193
    %241 = vmatprep.subr.mxu0 0.0
    %242 = vmatpush2.msra.mxu0 0.0
    %243 = vmatprep.subr.mxu0 0.0
    %244 = vmatpush2.msra.mxu0 0.0
    %245 = vmatprep.subr.mxu0 0.0
    %246 = vmatpush2.msra.mxu0 0.0
    %247 = vmatprep.subr.mxu0 0.0
    %248 = vmatpush2.msra.mxu0 0.0
    %249 = vmatprep.subr.mxu0 0.0
    %250 = vmatpush2.msra.mxu0 0.0
    %251 = vmatprep.subr.mxu0 0.0
    %252 = vmatpush2.msra.mxu0 0.0
    %253 = vmatprep.subr.mxu0 0.0
    %254 = vmatpush2.msra.mxu0 0.0
    %255 = vmatprep.subr.mxu0 0.0
    %256 = vmatpush2.msra.mxu0 0.0
    %257 = vmatprep.subr.mxu0 0.0
    %258 = vmatpush2.msra.mxu0 0.0
    %259 = vmatprep.subr.mxu0 0.0
    %260 = vmatpush2.msra.mxu0 0.0
    %261 = vmatprep.subr.mxu0 0.0
    %262 = vmatpush2.msra.mxu0 0.0
    %263 = vmatprep.subr.mxu0 0.0
    %264 = vmatpush2.msra.mxu0 0.0
    %265 = vmatprep.subr.mxu0 0.0
    %266 = vmatpush2.msra.mxu0 0.0
    %267 = vmatprep.subr.mxu0 0.0
    %268 = vmatpush2.msra.mxu0 0.0
    %269 = vmatprep.subr.mxu0 0.0
    %270 = vmatpush2.msra.mxu0 0.0
    %271 = vmatprep.subr.mxu0 0.0
    %272 = vmatpush2.msra.mxu0 0.0
    %273 = vmatprep.mubr.f32.mxu0 0.0
    %274 = vmatmul.mubr.f32.gmra.mxu0 %v189
    %v275 = vpop.f32.mrf.mxu0
    %v276 = vadd.f32 0.0, %v275
    %v277 = vpop.f32.mrf.mxu0
    %278 = vmatprep.mubr.f32.mxu0 0.0
    %279 = vmatmul.mubr.f32.gmra.mxu0 %v190
    %v280 = vpop.f32.mrf.mxu0
    %v281 = vadd.f32 0.0, %v280
    %v282 = vpop.f32.mrf.mxu0
    %283 = vmatprep.mubr.f32.mxu0 0.0
    %284 = vmatmul.mubr.f32.gmra.mxu0 %v191
    %v285 = vpop.f32.mrf.mxu0
    %v286 = vadd.f32 0.0, %v285
    %v287 = vpop.f32.mrf.mxu0
    %288 = vmatprep.mubr.f32.mxu0 0.0
    %289 = vmatmul.mubr.f32.gmra.mxu0 %v192
    %v290 = vpop.f32.mrf.mxu0
    %v291 = vadd.f32 0.0, %v290
    %v292 = vpop.f32.mrf.mxu0
    %293 = vdwg.mxu0
    %294 = vst [vmem:[%s7] sm:$0xff] %v276
    %295 = vst [vmem:[%s7 + $0x8] sm:$0xff] %v281
    %296 = vst [vmem:[%s7 + $0x10] sm:$0xff] %v286
    %297 = vst [vmem:[%s7 + $0x18] sm:$0xff] %v291
    %v298 = vld [vmem:[#allocation4] sm:$0xff]
    %v299 = vld [vmem:[#allocation4 + $0x8] sm:$0xff]
    %v300 = vld [vmem:[#allocation4 + $0x10] sm:$0xff]
    %v301 = vld [vmem:[#allocation4 + $0x18] sm:$0xff]
    %v302 = vld [vmem:[#allocation9] sm:$0xff]
    %v303 = vld [vmem:[#allocation9 + $0x8] sm:$0xff]
    %v304 = vld [vmem:[#allocation9 + $0x10] sm:$0xff]
    %v305 = vld [vmem:[#allocation9 + $0x18] sm:$0xff]
    %v306 = vld [vmem:[#allocation9 + $0x20] sm:$0xff]
    %v307 = vld [vmem:[#allocation9 + $0x28] sm:$0xff]
    %v308 = vld [vmem:[#allocation9 + $0x30] sm:$0xff]
    %v309 = vld [vmem:[#allocation9 + $0x38] sm:$0xff]
    %v310 = vld [vmem:[#allocation9 + $0x40] sm:$0xff]
    %v311 = vld [vmem:[#allocation9 + $0x48] sm:$0xff]
    %v312 = vld [vmem:[#allocation9 + $0x50] sm:$0xff]
    %v313 = vld [vmem:[#allocation9 + $0x58] sm:$0xff]
    %v314 = vld [vmem:[#allocation9 + $0x60] sm:$0xff]
    %v315 = vld [vmem:[#allocation9 + $0x68] sm:$0xff]
    %v316 = vld [vmem:[#allocation9 + $0x70] sm:$0xff]
    %v317 = vld [vmem:[#allocation9 + $0x78] sm:$0xff]
    %318 = vmatprep.subr.mxu0 0.0
    %319 = vmatpush1.msra.mxu0 %v317
    %320 = vmatprep.subr.mxu0 0.0
    %321 = vmatpush1.msra.mxu0 %v316
    %322 = vmatprep.subr.mxu0 0.0
    %323 = vmatpush1.msra.mxu0 %v315
    %324 = vmatprep.subr.mxu0 0.0
    %325 = vmatpush1.msra.mxu0 %v314
    %326 = vmatprep.subr.mxu0 0.0
    %327 = vmatpush1.msra.mxu0 %v313
    %328 = vmatprep.subr.mxu0 0.0
    %329 = vmatpush1.msra.mxu0 %v312
    %330 = vmatprep.subr.mxu0 0.0
    %331 = vmatpush1.msra.mxu0 %v311
    %332 = vmatprep.subr.mxu0 0.0
    %333 = vmatpush1.msra.mxu0 %v310
    %334 = vmatprep.subr.mxu0 0.0
    %335 = vmatpush1.msra.mxu0 %v309
    %336 = vmatprep.subr.mxu0 0.0
    %337 = vmatpush1.msra.mxu0 %v308
    %338 = vmatprep.subr.mxu0 0.0
    %339 = vmatpush1.msra.mxu0 %v307
    %340 = vmatprep.subr.mxu0 0.0
    %341 = vmatpush1.msra.mxu0 %v306
    %342 = vmatprep.subr.mxu0 0.0
    %343 = vmatpush1.msra.mxu0 %v305
    %344 = vmatprep.subr.mxu0 0.0
    %345 = vmatpush1.msra.mxu0 %v304
    %346 = vmatprep.subr.mxu0 0.0
    %347 = vmatpush1.msra.mxu0 %v303
    %348 = vmatprep.subr.mxu0 0.0
    %349 = vmatpush1.msra.mxu0 %v302
    %350 = vmatprep.subr.mxu0 0.0
    %351 = vmatpush2.msra.mxu0 0.0
    %352 = vmatprep.subr.mxu0 0.0
    %353 = vmatpush2.msra.mxu0 0.0
    %354 = vmatprep.subr.mxu0 0.0
    %355 = vmatpush2.msra.mxu0 0.0
    %356 = vmatprep.subr.mxu0 0.0
    %357 = vmatpush2.msra.mxu0 0.0
    %358 = vmatprep.subr.mxu0 0.0
    %359 = vmatpush2.msra.mxu0 0.0
    %360 = vmatprep.subr.mxu0 0.0
    %361 = vmatpush2.msra.mxu0 0.0
    %362 = vmatprep.subr.mxu0 0.0
    %363 = vmatpush2.msra.mxu0 0.0
    %364 = vmatprep.subr.mxu0 0.0
    %365 = vmatpush2.msra.mxu0 0.0
    %366 = vmatprep.subr.mxu0 0.0
    %367 = vmatpush2.msra.mxu0 0.0
    %368 = vmatprep.subr.mxu0 0.0
    %369 = vmatpush2.msra.mxu0 0.0
    %370 = vmatprep.subr.mxu0 0.0
    %371 = vmatpush2.msra.mxu0 0.0
    %372 = vmatprep.subr.mxu0 0.0
    %373 = vmatpush2.msra.mxu0 0.0
    %374 = vmatprep.subr.mxu0 0.0
    %375 = vmatpush2.msra.mxu0 0.0
    %376 = vmatprep.subr.mxu0 0.0
    %377 = vmatpush2.msra.mxu0 0.0
    %378 = vmatprep.subr.mxu0 0.0
    %379 = vmatpush2.msra.mxu0 0.0
    %380 = vmatprep.subr.mxu0 0.0
    %381 = vmatpush2.msra.mxu0 0.0
    %382 = vmatprep.mubr.f32.mxu0 0.0
    %383 = vmatmul.mubr.f32.gmra.mxu0 %v298
    %v384 = vpop.f32.mrf.mxu0
    %v385 = vadd.f32 0.0, %v384
    %v386 = vpop.f32.mrf.mxu0
    %387 = vmatprep.mubr.f32.mxu0 0.0
    %388 = vmatmul.mubr.f32.gmra.mxu0 %v299
    %v389 = vpop.f32.mrf.mxu0
    %v390 = vadd.f32 0.0, %v389
    %v391 = vpop.f32.mrf.mxu0
    %392 = vmatprep.mubr.f32.mxu0 0.0
    %393 = vmatmul.mubr.f32.gmra.mxu0 %v300
    %v394 = vpop.f32.mrf.mxu0
    %v395 = vadd.f32 0.0, %v394
    %v396 = vpop.f32.mrf.mxu0
    %397 = vmatprep.mubr.f32.mxu0 0.0
    %398 = vmatmul.mubr.f32.gmra.mxu0 %v301
    %v399 = vpop.f32.mrf.mxu0
    %v400 = vadd.f32 0.0, %v399
    %v401 = vpop.f32.mrf.mxu0
    %402 = vdwg.mxu0
    %403 = vst [vmem:[%s8] sm:$0xff] %v385
    %404 = vst [vmem:[%s8 + $0x8] sm:$0xff] %v390
    %405 = vst [vmem:[%s8 + $0x10] sm:$0xff] %v395
    %406 = vst [vmem:[%s8 + $0x18] sm:$0xff] %v400
    // Predicated region
    $region46: #{multi_head_attention.2} parent=1 // pred_check
      _
    $region47: #{multi_head_attention.2} parent=1 // pred_check_branch
      %408 = sbr.rel (0) target = $region49
    $region48: #{multi_head_attention.2} parent=1 // pred_region
      _
    $region49: #{multi_head_attention.2} parent=1 // pred_fallthru
      _
    // Predicated region
    $region50: #{multi_head_attention.2} parent=1 // pred_check
      _
    $region51: #{multi_head_attention.2} parent=1 // pred_check_branch
      %410 = sbr.rel (0) target = $region53
    $region52: #{multi_head_attention.2} parent=1 // pred_region
      _
    $region53: #{multi_head_attention.2} parent=1 // pred_fallthru
      _
    // Predicated region
    $region54: #{multi_head_attention.2} parent=1 // pred_check
      _
    $region55: #{multi_head_attention.2} parent=1 // pred_check_branch
      %412 = sbr.rel (0) target = $region57
    $region56: #{multi_head_attention.2} parent=1 // pred_region
      _
    $region57: #{multi_head_attention.2} parent=1 // pred_fallthru
      _
    // Predicated region
    $region58: #{multi_head_attention.2} parent=1 // pred_check
      _
    $region59: #{multi_head_attention.2} parent=1 // pred_check_branch
      %414 = sbr.rel (0) target = $region61
    $region60: #{multi_head_attention.2} parent=1 // pred_region
      _
    $region61: #{multi_head_attention.2} parent=1 // pred_fallthru
      _
    // Predicated region
    $region62: #{multi_head_attention.2} parent=1 // pred_check
      _
    $region63: #{multi_head_attention.2} parent=1 // pred_check_branch
      %416 = sbr.rel (0) target = $region65
    $region64: #{multi_head_attention.2} parent=1 // pred_region
      _
    $region65: #{multi_head_attention.2} parent=1 // pred_fallthru
      _
    // Predicated region
    $region66: #{multi_head_attention.2} parent=1 // pred_check
      _
    $region67: #{multi_head_attention.2} parent=1 // pred_check_branch
      %418 = sbr.rel (0) target = $region69
    $region68: #{multi_head_attention.2} parent=1 // pred_region
      _
    $region69: #{multi_head_attention.2} parent=1 // pred_fallthru
      _
    %419 = vsyncpa [#allocation3], 1
    %420 = vsyncpa [#allocation5], 1
    %421 = vsyncpa [#allocation8], 1

// kernel: multi_head_attention.3
$region0: #{multi_head_attention.3}
  #allocation0 [shape = 'u32[]', space=smem, size = 0x4, offset = 0x4, fixed_abs, tag = 'smem constant byte address 0x4 - core index']
  #allocation1 [shape = 'u32[144,128]{1,0:T(1,128)}', space=vmem, size = 0x12000, scoped, tag = 'internal scratch']
  %s0 = inlined_call_operand.vmem [shape: f32[16,8,16], index: 0, kind: input, shape index: {}]
  %s1 = inlined_call_operand.vmem [shape: f32[16,16,16], index: 1, kind: input, shape index: {}]
  %s2 = inlined_call_operand.vmem [shape: f32[16,16,16], index: 2, kind: input, shape index: {}]
  %s3 = inlined_call_operand.vmem [shape: f32[128,128], index: 3, kind: input, shape index: {}]
  %s4 = inlined_call_operand.vmem [shape: f32[1,128], index: 4, kind: input, shape index: {}]
  %s5 = inlined_call_operand.hbm [shape: f32[16,128], index: 5, kind: output, shape index: {}]
  %s6 = sld [smem:[#allocation0]]
  $region30: #{multi_head_attention.3} parent=0
    _
  %s8 = ssub.s32 1, %s6
  %s9 = scalar_select 0, %s8, %s6
  $region1: #{multi_head_attention.3} parent=0
    #allocation2 [shape = 'u8[8192]{0}', space=vmem, size = 0x2000, scoped, tag = 'output window, operand 0, single buffered']
    #allocation3 [shape = 's32[1]{0}', space=sflag, size = 0x4, scoped, tag = 'scoped memory for multi_head_attention.3']
    %10 = vsyncpa [#allocation3], 0
    // Predicated region
    $region2: #{multi_head_attention.3} parent=1 // pred_check
      _
    $region3: #{multi_head_attention.3} parent=1 // pred_check_branch
      %12 = sbr.rel (0) target = $region5
    $region4: #{multi_head_attention.3} parent=1 // pred_region
      _
    $region5: #{multi_head_attention.3} parent=1 // pred_fallthru
      _
    // Predicated region
    $region6: #{multi_head_attention.3} parent=1 // pred_check
      _
    $region7: #{multi_head_attention.3} parent=1 // pred_check_branch
      %14 = sbr.rel (0) target = $region9
    $region8: #{multi_head_attention.3} parent=1 // pred_region
      _
    $region9: #{multi_head_attention.3} parent=1 // pred_fallthru
      _
    // Predicated region
    $region10: #{multi_head_attention.3} parent=1 // pred_check
      _
    $region11: #{multi_head_attention.3} parent=1 // pred_check_branch
      %16 = sbr.rel (0) target = $region13
    $region12: #{multi_head_attention.3} parent=1 // pred_region
      _
    $region13: #{multi_head_attention.3} parent=1 // pred_fallthru
      _
    // Predicated region
    $region14: #{multi_head_attention.3} parent=1 // pred_check
      _
    $region15: #{multi_head_attention.3} parent=1 // pred_check_branch
      %18 = sbr.rel (0) target = $region17
    $region16: #{multi_head_attention.3} parent=1 // pred_region
      _
    $region17: #{multi_head_attention.3} parent=1 // pred_fallthru
      _
    // Predicated region
    $region18: #{multi_head_attention.3} parent=1 // pred_check
      _
    $region19: #{multi_head_attention.3} parent=1 // pred_check_branch
      %20 = sbr.rel (0) target = $region21
    $region20: #{multi_head_attention.3} parent=1 // pred_region
      _
    $region21: #{multi_head_attention.3} parent=1 // pred_fallthru
      _
    %v21 = vld [vmem:[%s0] sm:$0xff]
    %v22 = vld [vmem:[%s0 + $0x8] sm:$0xff]
    %v23 = vld [vmem:[%s0 + $0x10] sm:$0xff]
    %v24 = vld [vmem:[%s0 + $0x18] sm:$0xff]
    %v25 = vld [vmem:[%s0 + $0x20] sm:$0xff]
    %v26 = vld [vmem:[%s0 + $0x28] sm:$0xff]
    %v27 = vld [vmem:[%s0 + $0x30] sm:$0xff]
    %v28 = vld [vmem:[%s0 + $0x38] sm:$0xff]
    %v29 = vld [vmem:[%s0 + $0x40] sm:$0xff]
    %v30 = vld [vmem:[%s0 + $0x48] sm:$0xff]
    %v31 = vld [vmem:[%s0 + $0x50] sm:$0xff]
    %v32 = vld [vmem:[%s0 + $0x58] sm:$0xff]
    %v33 = vld [vmem:[%s0 + $0x60] sm:$0xff]
    %v34 = vld [vmem:[%s0 + $0x68] sm:$0xff]
    %v35 = vld [vmem:[%s0 + $0x70] sm:$0xff]
    %v36 = vld [vmem:[%s0 + $0x78] sm:$0xff]
    %v37 = vmul.f32 %v21, 0.25
    %v38 = vmul.f32 %v22, 0.25
    %v39 = vmul.f32 %v23, 0.25
    %v40 = vmul.f32 %v24, 0.25
    %v41 = vmul.f32 %v25, 0.25
    %v42 = vmul.f32 %v26, 0.25
    %v43 = vmul.f32 %v27, 0.25
    %v44 = vmul.f32 %v28, 0.25
    %v45 = vmul.f32 %v29, 0.25
    %v46 = vmul.f32 %v30, 0.25
    %v47 = vmul.f32 %v31, 0.25
    %v48 = vmul.f32 %v32, 0.25
    %v49 = vmul.f32 %v33, 0.25
    %v50 = vmul.f32 %v34, 0.25
    %v51 = vmul.f32 %v35, 0.25
    %v52 = vmul.f32 %v36, 0.25
    %v53 = vld [vmem:[%s1] sm:$0xff]
    %v54 = vld [vmem:[%s1 + $0x8] sm:$0xff]
    %v55 = vld [vmem:[%s1 + $0x10] sm:$0xff]
    %v56 = vld [vmem:[%s1 + $0x18] sm:$0xff]
    %v57 = vld [vmem:[%s1 + $0x20] sm:$0xff]
    %v58 = vld [vmem:[%s1 + $0x28] sm:$0xff]
    %v59 = vld [vmem:[%s1 + $0x30] sm:$0xff]
    %v60 = vld [vmem:[%s1 + $0x38] sm:$0xff]
    %v61 = vld [vmem:[%s1 + $0x40] sm:$0xff]
    %v62 = vld [vmem:[%s1 + $0x48] sm:$0xff]
    %v63 = vld [vmem:[%s1 + $0x50] sm:$0xff]
    %v64 = vld [vmem:[%s1 + $0x58] sm:$0xff]
    %v65 = vld [vmem:[%s1 + $0x60] sm:$0xff]
    %v66 = vld [vmem:[%s1 + $0x68] sm:$0xff]
    %v67 = vld [vmem:[%s1 + $0x70] sm:$0xff]
    %v68 = vld [vmem:[%s1 + $0x78] sm:$0xff]
    %v69 = vld [vmem:[%s1 + $0x80] sm:$0xff]
    %v70 = vld [vmem:[%s1 + $0x88] sm:$0xff]
    %v71 = vld [vmem:[%s1 + $0x90] sm:$0xff]
    %v72 = vld [vmem:[%s1 + $0x98] sm:$0xff]
    %v73 = vld [vmem:[%s1 + $0xa0] sm:$0xff]
    %v74 = vld [vmem:[%s1 + $0xa8] sm:$0xff]
    %v75 = vld [vmem:[%s1 + $0xb0] sm:$0xff]
    %v76 = vld [vmem:[%s1 + $0xb8] sm:$0xff]
    %v77 = vld [vmem:[%s1 + $0xc0] sm:$0xff]
    %v78 = vld [vmem:[%s1 + $0xc8] sm:$0xff]
    %v79 = vld [vmem:[%s1 + $0xd0] sm:$0xff]
    %v80 = vld [vmem:[%s1 + $0xd8] sm:$0xff]
    %v81 = vld [vmem:[%s1 + $0xe0] sm:$0xff]
    %v82 = vld [vmem:[%s1 + $0xe8] sm:$0xff]
    %v83 = vld [vmem:[%s1 + $0xf0] sm:$0xff]
    %v84 = vld [vmem:[%s1 + $0xf8] sm:$0xff]
    %v85 = vld [vmem:[%s2] sm:$0xff]
    %v86 = vld [vmem:[%s2 + $0x8] sm:$0xff]
    %v87 = vld [vmem:[%s2 + $0x10] sm:$0xff]
    %v88 = vld [vmem:[%s2 + $0x18] sm:$0xff]
    %v89 = vld [vmem:[%s2 + $0x20] sm:$0xff]
    %v90 = vld [vmem:[%s2 + $0x28] sm:$0xff]
    %v91 = vld [vmem:[%s2 + $0x30] sm:$0xff]
    %v92 = vld [vmem:[%s2 + $0x38] sm:$0xff]
    %v93 = vld [vmem:[%s2 + $0x40] sm:$0xff]
    %v94 = vld [vmem:[%s2 + $0x48] sm:$0xff]
    %v95 = vld [vmem:[%s2 + $0x50] sm:$0xff]
    %v96 = vld [vmem:[%s2 + $0x58] sm:$0xff]
    %v97 = vld [vmem:[%s2 + $0x60] sm:$0xff]
    %v98 = vld [vmem:[%s2 + $0x68] sm:$0xff]
    %v99 = vld [vmem:[%s2 + $0x70] sm:$0xff]
    %v100 = vld [vmem:[%s2 + $0x78] sm:$0xff]
    %v101 = vld [vmem:[%s2 + $0x80] sm:$0xff]
    %v102 = vld [vmem:[%s2 + $0x88] sm:$0xff]
    %v103 = vld [vmem:[%s2 + $0x90] sm:$0xff]
    %v104 = vld [vmem:[%s2 + $0x98] sm:$0xff]
    %v105 = vld [vmem:[%s2 + $0xa0] sm:$0xff]
    %v106 = vld [vmem:[%s2 + $0xa8] sm:$0xff]
    %v107 = vld [vmem:[%s2 + $0xb0] sm:$0xff]
    %v108 = vld [vmem:[%s2 + $0xb8] sm:$0xff]
    %v109 = vld [vmem:[%s2 + $0xc0] sm:$0xff]
    %v110 = vld [vmem:[%s2 + $0xc8] sm:$0xff]
    %v111 = vld [vmem:[%s2 + $0xd0] sm:$0xff]
    %v112 = vld [vmem:[%s2 + $0xd8] sm:$0xff]
    %v113 = vld [vmem:[%s2 + $0xe0] sm:$0xff]
    %v114 = vld [vmem:[%s2 + $0xe8] sm:$0xff]
    %v115 = vld [vmem:[%s2 + $0xf0] sm:$0xff]
    %v116 = vld [vmem:[%s2 + $0xf8] sm:$0xff]
    %vm117 = vcmask 130048
    %v119 = vsel %vm117, %v37, 0
    %v122 = vsel %vm117, %v53, 0
    %v125 = vsel %vm117, %v54, 0
    %127 = vmatprep.subr.mxu0 0.0
    %128 = vmatpush1.xpose.msra.mxu0 0.0
    %129 = vmatprep.subr.mxu0 0.0
    %130 = vmatpush1.xpose.msra.mxu0 0.0
    %131 = vmatprep.subr.mxu0 0.0
    %132 = vmatpush1.xpose.msra.mxu0 0.0
    %133 = vmatprep.subr.mxu0 0.0
    %134 = vmatpush1.xpose.msra.mxu0 0.0
    %135 = vmatprep.subr.mxu0 0.0
    %136 = vmatpush1.xpose.msra.mxu0 0.0
    %137 = vmatprep.subr.mxu0 0.0
    %138 = vmatpush1.xpose.msra.mxu0 0.0
    %139 = vmatprep.subr.mxu0 0.0
    %140 = vmatpush1.xpose.msra.mxu0 0.0
    %141 = vmatprep.subr.mxu0 0.0
    %142 = vmatpush1.xpose.msra.mxu0 0.0
    %143 = vmatprep.subr.mxu0 0.0
    %144 = vmatpush1.xpose.msra.mxu0 0.0
    %145 = vmatprep.subr.mxu0 0.0
    %146 = vmatpush1.xpose.msra.mxu0 0.0
    %147 = vmatprep.subr.mxu0 0.0
    %148 = vmatpush1.xpose.msra.mxu0 0.0
    %149 = vmatprep.subr.mxu0 0.0
    %150 = vmatpush1.xpose.msra.mxu0 0.0
    %151 = vmatprep.subr.mxu0 0.0
    %152 = vmatpush1.xpose.msra.mxu0 0.0
    %153 = vmatprep.subr.mxu0 0.0
    %154 = vmatpush1.xpose.msra.mxu0 0.0
    %155 = vmatprep.subr.mxu0 0.0
    %156 = vmatpush1.xpose.msra.mxu0 %v125
    %157 = vmatprep.subr.mxu0 0.0
    %158 = vmatpush1.xpose.msra.mxu0 %v122
    %159 = vmatprep.subr.mxu0 0.0
    %160 = vmatpush2.xpose.msra.mxu0 0.0
    %161 = vmatprep.subr.mxu0 0.0
    %162 = vmatpush2.xpose.msra.mxu0 0.0
    %163 = vmatprep.subr.mxu0 0.0
    %164 = vmatpush2.xpose.msra.mxu0 0.0
    %165 = vmatprep.subr.mxu0 0.0
    %166 = vmatpush2.xpose.msra.mxu0 0.0
    %167 = vmatprep.subr.mxu0 0.0
    %168 = vmatpush2.xpose.msra.mxu0 0.0
    %169 = vmatprep.subr.mxu0 0.0
    %170 = vmatpush2.xpose.msra.mxu0 0.0
    %171 = vmatprep.subr.mxu0 0.0
    %172 = vmatpush2.xpose.msra.mxu0 0.0
    %173 = vmatprep.subr.mxu0 0.0
    %174 = vmatpush2.xpose.msra.mxu0 0.0
    %175 = vmatprep.subr.mxu0 0.0
    %176 = vmatpush2.xpose.msra.mxu0 0.0
    %177 = vmatprep.subr.mxu0 0.0
    %178 = vmatpush2.xpose.msra.mxu0 0.0
    %179 = vmatprep.subr.mxu0 0.0
    %180 = vmatpush2.xpose.msra.mxu0 0.0
    %181 = vmatprep.subr.mxu0 0.0
    %182 = vmatpush2.xpose.msra.mxu0 0.0
    %183 = vmatprep.subr.mxu0 0.0
    %184 = vmatpush2.xpose.msra.mxu0 0.0
    %185 = vmatprep.subr.mxu0 0.0
    %186 = vmatpush2.xpose.msra.mxu0 0.0
    %187 = vmatprep.subr.mxu0 0.0
    %188 = vmatpush2.xpose.msra.mxu0 0.0
    %189 = vmatprep.subr.mxu0 0.0
    %190 = vmatpush2.xpose.msra.mxu0 0.0
    %191 = vmatprep.mubr.f32.mxu0 0.0
    %192 = vmatmul.mubr.f32.gmra.mxu0 %v119
    %v193 = vpop.f32.mrf.mxu0
    %v194 = vadd.f32 0.0, %v193
    %v195 = vpop.f32.mrf.mxu0
    %196 = vdwg.mxu0
    %v198 = vsel %vm117, %v38, 0
    %v201 = vsel %vm117, %v55, 0
    %v204 = vsel %vm117, %v56, 0
    %206 = vmatprep.subr.mxu0 0.0
    %207 = vmatpush1.xpose.msra.mxu0 0.0
    %208 = vmatprep.subr.mxu0 0.0
    %209 = vmatpush1.xpose.msra.mxu0 0.0
    %210 = vmatprep.subr.mxu0 0.0
    %211 = vmatpush1.xpose.msra.mxu0 0.0
    %212 = vmatprep.subr.mxu0 0.0
    %213 = vmatpush1.xpose.msra.mxu0 0.0
    %214 = vmatprep.subr.mxu0 0.0
    %215 = vmatpush1.xpose.msra.mxu0 0.0
    %216 = vmatprep.subr.mxu0 0.0
    %217 = vmatpush1.xpose.msra.mxu0 0.0
    %218 = vmatprep.subr.mxu0 0.0
    %219 = vmatpush1.xpose.msra.mxu0 0.0
    %220 = vmatprep.subr.mxu0 0.0
    %221 = vmatpush1.xpose.msra.mxu0 0.0
    %222 = vmatprep.subr.mxu0 0.0
    %223 = vmatpush1.xpose.msra.mxu0 0.0
    %224 = vmatprep.subr.mxu0 0.0
    %225 = vmatpush1.xpose.msra.mxu0 0.0
    %226 = vmatprep.subr.mxu0 0.0
    %227 = vmatpush1.xpose.msra.mxu0 0.0
    %228 = vmatprep.subr.mxu0 0.0
    %229 = vmatpush1.xpose.msra.mxu0 0.0
    %230 = vmatprep.subr.mxu0 0.0
    %231 = vmatpush1.xpose.msra.mxu0 0.0
    %232 = vmatprep.subr.mxu0 0.0
    %233 = vmatpush1.xpose.msra.mxu0 0.0
    %234 = vmatprep.subr.mxu0 0.0
    %235 = vmatpush1.xpose.msra.mxu0 %v204
    %236 = vmatprep.subr.mxu0 0.0
    %237 = vmatpush1.xpose.msra.mxu0 %v201
    %238 = vmatprep.subr.mxu0 0.0
    %239 = vmatpush2.xpose.msra.mxu0 0.0
    %240 = vmatprep.subr.mxu0 0.0
    %241 = vmatpush2.xpose.msra.mxu0 0.0
    %242 = vmatprep.subr.mxu0 0.0
    %243 = vmatpush2.xpose.msra.mxu0 0.0
    %244 = vmatprep.subr.mxu0 0.0
    %245 = vmatpush2.xpose.msra.mxu0 0.0
    %246 = vmatprep.subr.mxu0 0.0
    %247 = vmatpush2.xpose.msra.mxu0 0.0
    %248 = vmatprep.subr.mxu0 0.0
    %249 = vmatpush2.xpose.msra.mxu0 0.0
    %250 = vmatprep.subr.mxu0 0.0
    %251 = vmatpush2.xpose.msra.mxu0 0.0
    %252 = vmatprep.subr.mxu0 0.0
    %253 = vmatpush2.xpose.msra.mxu0 0.0
    %254 = vmatprep.subr.mxu0 0.0
    %255 = vmatpush2.xpose.msra.mxu0 0.0
    %256 = vmatprep.subr.mxu0 0.0
    %257 = vmatpush2.xpose.msra.mxu0 0.0
    %258 = vmatprep.subr.mxu0 0.0
    %259 = vmatpush2.xpose.msra.mxu0 0.0
    %260 = vmatprep.subr.mxu0 0.0
    %261 = vmatpush2.xpose.msra.mxu0 0.0
    %262 = vmatprep.subr.mxu0 0.0
    %263 = vmatpush2.xpose.msra.mxu0 0.0
    %264 = vmatprep.subr.mxu0 0.0
    %265 = vmatpush2.xpose.msra.mxu0 0.0
    %266 = vmatprep.subr.mxu0 0.0
    %267 = vmatpush2.xpose.msra.mxu0 0.0
    %268 = vmatprep.subr.mxu0 0.0
    %269 = vmatpush2.xpose.msra.mxu0 0.0
    %270 = vmatprep.mubr.f32.mxu0 0.0
    %271 = vmatmul.mubr.f32.gmra.mxu0 %v198
    %v272 = vpop.f32.mrf.mxu0
    %v273 = vadd.f32 0.0, %v272
    %v274 = vpop.f32.mrf.mxu0
    %275 = vdwg.mxu0
    %v277 = vsel %vm117, %v39, 0
    %v280 = vsel %vm117, %v57, 0
    %v283 = vsel %vm117, %v58, 0
    %285 = vmatprep.subr.mxu0 0.0
    %286 = vmatpush1.xpose.msra.mxu0 0.0
    %287 = vmatprep.subr.mxu0 0.0
    %288 = vmatpush1.xpose.msra.mxu0 0.0
    %289 = vmatprep.subr.mxu0 0.0
    %290 = vmatpush1.xpose.msra.mxu0 0.0
    %291 = vmatprep.subr.mxu0 0.0
    %292 = vmatpush1.xpose.msra.mxu0 0.0
    %293 = vmatprep.subr.mxu0 0.0
    %294 = vmatpush1.xpose.msra.mxu0 0.0
    %295 = vmatprep.subr.mxu0 0.0
    %296 = vmatpush1.xpose.msra.mxu0 0.0
    %297 = vmatprep.subr.mxu0 0.0
    %298 = vmatpush1.xpose.msra.mxu0 0.0
    %299 = vmatprep.subr.mxu0 0.0
    %300 = vmatpush1.xpose.msra.mxu0 0.0
    %301 = vmatprep.subr.mxu0 0.0
    %302 = vmatpush1.xpose.msra.mxu0 0.0
    %303 = vmatprep.subr.mxu0 0.0
    %304 = vmatpush1.xpose.msra.mxu0 0.0
    %305 = vmatprep.subr.mxu0 0.0
    %306 = vmatpush1.xpose.msra.mxu0 0.0
    %307 = vmatprep.subr.mxu0 0.0
    %308 = vmatpush1.xpose.msra.mxu0 0.0
    %309 = vmatprep.subr.mxu0 0.0
    %310 = vmatpush1.xpose.msra.mxu0 0.0
    %311 = vmatprep.subr.mxu0 0.0
    %312 = vmatpush1.xpose.msra.mxu0 0.0
    %313 = vmatprep.subr.mxu0 0.0
    %314 = vmatpush1.xpose.msra.mxu0 %v283
    %315 = vmatprep.subr.mxu0 0.0
    %316 = vmatpush1.xpose.msra.mxu0 %v280
    %317 = vmatprep.subr.mxu0 0.0
    %318 = vmatpush2.xpose.msra.mxu0 0.0
    %319 = vmatprep.subr.mxu0 0.0
    %320 = vmatpush2.xpose.msra.mxu0 0.0
    %321 = vmatprep.subr.mxu0 0.0
    %322 = vmatpush2.xpose.msra.mxu0 0.0
    %323 = vmatprep.subr.mxu0 0.0
    %324 = vmatpush2.xpose.msra.mxu0 0.0
    %325 = vmatprep.subr.mxu0 0.0
    %326 = vmatpush2.xpose.msra.mxu0 0.0
    %327 = vmatprep.subr.mxu0 0.0
    %328 = vmatpush2.xpose.msra.mxu0 0.0
    %329 = vmatprep.subr.mxu0 0.0
    %330 = vmatpush2.xpose.msra.mxu0 0.0
    %331 = vmatprep.subr.mxu0 0.0
    %332 = vmatpush2.xpose.msra.mxu0 0.0
    %333 = vmatprep.subr.mxu0 0.0
    %334 = vmatpush2.xpose.msra.mxu0 0.0
    %335 = vmatprep.subr.mxu0 0.0
    %336 = vmatpush2.xpose.msra.mxu0 0.0
    %337 = vmatprep.subr.mxu0 0.0
    %338 = vmatpush2.xpose.msra.mxu0 0.0
    %339 = vmatprep.subr.mxu0 0.0
    %340 = vmatpush2.xpose.msra.mxu0 0.0
    %341 = vmatprep.subr.mxu0 0.0
    %342 = vmatpush2.xpose.msra.mxu0 0.0
    %343 = vmatprep.subr.mxu0 0.0
    %344 = vmatpush2.xpose.msra.mxu0 0.0
    %345 = vmatprep.subr.mxu0 0.0
    %346 = vmatpush2.xpose.msra.mxu0 0.0
    %347 = vmatprep.subr.mxu0 0.0
    %348 = vmatpush2.xpose.msra.mxu0 0.0
    %349 = vmatprep.mubr.f32.mxu0 0.0
    %350 = vmatmul.mubr.f32.gmra.mxu0 %v277
    %v351 = vpop.f32.mrf.mxu0
    %v352 = vadd.f32 0.0, %v351
    %v353 = vpop.f32.mrf.mxu0
    %354 = vdwg.mxu0
    %v356 = vsel %vm117, %v40, 0
    %v359 = vsel %vm117, %v59, 0
    %v362 = vsel %vm117, %v60, 0
    %364 = vmatprep.subr.mxu0 0.0
    %365 = vmatpush1.xpose.msra.mxu0 0.0
    %366 = vmatprep.subr.mxu0 0.0
    %367 = vmatpush1.xpose.msra.mxu0 0.0
    %368 = vmatprep.subr.mxu0 0.0
    %369 = vmatpush1.xpose.msra.mxu0 0.0
    %370 = vmatprep.subr.mxu0 0.0
    %371 = vmatpush1.xpose.msra.mxu0 0.0
    %372 = vmatprep.subr.mxu0 0.0
    %373 = vmatpush1.xpose.msra.mxu0 0.0
    %374 = vmatprep.subr.mxu0 0.0
    %375 = vmatpush1.xpose.msra.mxu0 0.0
    %376 = vmatprep.subr.mxu0 0.0
    %377 = vmatpush1.xpose.msra.mxu0 0.0
    %378 = vmatprep.subr.mxu0 0.0
    %379 = vmatpush1.xpose.msra.mxu0 0.0
    %380 = vmatprep.subr.mxu0 0.0
    %381 = vmatpush1.xpose.msra.mxu0 0.0
    %382 = vmatprep.subr.mxu0 0.0
    %383 = vmatpush1.xpose.msra.mxu0 0.0
    %384 = vmatprep.subr.mxu0 0.0
    %385 = vmatpush1.xpose.msra.mxu0 0.0
    %386 = vmatprep.subr.mxu0 0.0
    %387 = vmatpush1.xpose.msra.mxu0 0.0
    %388 = vmatprep.subr.mxu0 0.0
    %389 = vmatpush1.xpose.msra.mxu0 0.0
    %390 = vmatprep.subr.mxu0 0.0
    %391 = vmatpush1.xpose.msra.mxu0 0.0
    %392 = vmatprep.subr.mxu0 0.0
    %393 = vmatpush1.xpose.msra.mxu0 %v362
    %394 = vmatprep.subr.mxu0 0.0
    %395 = vmatpush1.xpose.msra.mxu0 %v359
    %396 = vmatprep.subr.mxu0 0.0
    %397 = vmatpush2.xpose.msra.mxu0 0.0
    %398 = vmatprep.subr.mxu0 0.0
    %399 = vmatpush2.xpose.msra.mxu0 0.0
    %400 = vmatprep.subr.mxu0 0.0
    %401 = vmatpush2.xpose.msra.mxu0 0.0
    %402 = vmatprep.subr.mxu0 0.0
    %403 = vmatpush2.xpose.msra.mxu0 0.0
    %404 = vmatprep.subr.mxu0 0.0
    %405 = vmatpush2.xpose.msra.mxu0 0.0
    %406 = vmatprep.subr.mxu0 0.0
    %407 = vmatpush2.xpose.msra.mxu0 0.0
    %408 = vmatprep.subr.mxu0 0.0
    %409 = vmatpush2.xpose.msra.mxu0 0.0
    %410 = vmatprep.subr.mxu0 0.0
    %411 = vmatpush2.xpose.msra.mxu0 0.0
    %412 = vmatprep.subr.mxu0 0.0
    %413 = vmatpush2.xpose.msra.mxu0 0.0
    %414 = vmatprep.subr.mxu0 0.0
    %415 = vmatpush2.xpose.msra.mxu0 0.0
    %416 = vmatprep.subr.mxu0 0.0
    %417 = vmatpush2.xpose.msra.mxu0 0.0
    %418 = vmatprep.subr.mxu0 0.0
    %419 = vmatpush2.xpose.msra.mxu0 0.0
    %420 = vmatprep.subr.mxu0 0.0
    %421 = vmatpush2.xpose.msra.mxu0 0.0
    %422 = vmatprep.subr.mxu0 0.0
    %423 = vmatpush2.xpose.msra.mxu0 0.0
    %424 = vmatprep.subr.mxu0 0.0
    %425 = vmatpush2.xpose.msra.mxu0 0.0
    %426 = vmatprep.subr.mxu0 0.0
    %427 = vmatpush2.xpose.msra.mxu0 0.0
    %428 = vmatprep.mubr.f32.mxu0 0.0
    %429 = vmatmul.mubr.f32.gmra.mxu0 %v356
    %v430 = vpop.f32.mrf.mxu0
    %v431 = vadd.f32 0.0, %v430
    %v432 = vpop.f32.mrf.mxu0
    %433 = vdwg.mxu0
    %v435 = vsel %vm117, %v41, 0
    %v438 = vsel %vm117, %v61, 0
    %v441 = vsel %vm117, %v62, 0
    %443 = vmatprep.subr.mxu0 0.0
    %444 = vmatpush1.xpose.msra.mxu0 0.0
    %445 = vmatprep.subr.mxu0 0.0
    %446 = vmatpush1.xpose.msra.mxu0 0.0
    %447 = vmatprep.subr.mxu0 0.0
    %448 = vmatpush1.xpose.msra.mxu0 0.0
    %449 = vmatprep.subr.mxu0 0.0
    %450 = vmatpush1.xpose.msra.mxu0 0.0
    %451 = vmatprep.subr.mxu0 0.0
    %452 = vmatpush1.xpose.msra.mxu0 0.0
    %453 = vmatprep.subr.mxu0 0.0
    %454 = vmatpush1.xpose.msra.mxu0 0.0
    %455 = vmatprep.subr.mxu0 0.0
    %456 = vmatpush1.xpose.msra.mxu0 0.0
    %457 = vmatprep.subr.mxu0 0.0
    %458 = vmatpush1.xpose.msra.mxu0 0.0
    %459 = vmatprep.subr.mxu0 0.0
    %460 = vmatpush1.xpose.msra.mxu0 0.0
    %461 = vmatprep.subr.mxu0 0.0
    %462 = vmatpush1.xpose.msra.mxu0 0.0
    %463 = vmatprep.subr.mxu0 0.0
    %464 = vmatpush1.xpose.msra.mxu0 0.0
    %465 = vmatprep.subr.mxu0 0.0
    %466 = vmatpush1.xpose.msra.mxu0 0.0
    %467 = vmatprep.subr.mxu0 0.0
    %468 = vmatpush1.xpose.msra.mxu0 0.0
    %469 = vmatprep.subr.mxu0 0.0
    %470 = vmatpush1.xpose.msra.mxu0 0.0
    %471 = vmatprep.subr.mxu0 0.0
    %472 = vmatpush1.xpose.msra.mxu0 %v441
    %473 = vmatprep.subr.mxu0 0.0
    %474 = vmatpush1.xpose.msra.mxu0 %v438
    %475 = vmatprep.subr.mxu0 0.0
    %476 = vmatpush2.xpose.msra.mxu0 0.0
    %477 = vmatprep.subr.mxu0 0.0
    %478 = vmatpush2.xpose.msra.mxu0 0.0
    %479 = vmatprep.subr.mxu0 0.0
    %480 = vmatpush2.xpose.msra.mxu0 0.0
    %481 = vmatprep.subr.mxu0 0.0
    %482 = vmatpush2.xpose.msra.mxu0 0.0
    %483 = vmatprep.subr.mxu0 0.0
    %484 = vmatpush2.xpose.msra.mxu0 0.0
    %485 = vmatprep.subr.mxu0 0.0
    %486 = vmatpush2.xpose.msra.mxu0 0.0
    %487 = vmatprep.subr.mxu0 0.0
    %488 = vmatpush2.xpose.msra.mxu0 0.0
    %489 = vmatprep.subr.mxu0 0.0
    %490 = vmatpush2.xpose.msra.mxu0 0.0
    %491 = vmatprep.subr.mxu0 0.0
    %492 = vmatpush2.xpose.msra.mxu0 0.0
    %493 = vmatprep.subr.mxu0 0.0
    %494 = vmatpush2.xpose.msra.mxu0 0.0
    %495 = vmatprep.subr.mxu0 0.0
    %496 = vmatpush2.xpose.msra.mxu0 0.0
    %497 = vmatprep.subr.mxu0 0.0
    %498 = vmatpush2.xpose.msra.mxu0 0.0
    %499 = vmatprep.subr.mxu0 0.0
    %500 = vmatpush2.xpose.msra.mxu0 0.0
    %501 = vmatprep.subr.mxu0 0.0
    %502 = vmatpush2.xpose.msra.mxu0 0.0
    %503 = vmatprep.subr.mxu0 0.0
    %504 = vmatpush2.xpose.msra.mxu0 0.0
    %505 = vmatprep.subr.mxu0 0.0
    %506 = vmatpush2.xpose.msra.mxu0 0.0
    %507 = vmatprep.mubr.f32.mxu0 0.0
    %508 = vmatmul.mubr.f32.gmra.mxu0 %v435
    %v509 = vpop.f32.mrf.mxu0
    %v510 = vadd.f32 0.0, %v509
    %v511 = vpop.f32.mrf.mxu0
    %512 = vdwg.mxu0
    %v514 = vsel %vm117, %v42, 0
    %v517 = vsel %vm117, %v63, 0
    %v520 = vsel %vm117, %v64, 0
    %522 = vmatprep.subr.mxu0 0.0
    %523 = vmatpush1.xpose.msra.mxu0 0.0
    %524 = vmatprep.subr.mxu0 0.0
    %525 = vmatpush1.xpose.msra.mxu0 0.0
    %526 = vmatprep.subr.mxu0 0.0
    %527 = vmatpush1.xpose.msra.mxu0 0.0
    %528 = vmatprep.subr.mxu0 0.0
    %529 = vmatpush1.xpose.msra.mxu0 0.0
    %530 = vmatprep.subr.mxu0 0.0
    %531 = vmatpush1.xpose.msra.mxu0 0.0
    %532 = vmatprep.subr.mxu0 0.0
    %533 = vmatpush1.xpose.msra.mxu0 0.0
    %534 = vmatprep.subr.mxu0 0.0
    %535 = vmatpush1.xpose.msra.mxu0 0.0
    %536 = vmatprep.subr.mxu0 0.0
    %537 = vmatpush1.xpose.msra.mxu0 0.0
    %538 = vmatprep.subr.mxu0 0.0
    %539 = vmatpush1.xpose.msra.mxu0 0.0
    %540 = vmatprep.subr.mxu0 0.0
    %541 = vmatpush1.xpose.msra.mxu0 0.0
    %542 = vmatprep.subr.mxu0 0.0
    %543 = vmatpush1.xpose.msra.mxu0 0.0
    %544 = vmatprep.subr.mxu0 0.0
    %545 = vmatpush1.xpose.msra.mxu0 0.0
    %546 = vmatprep.subr.mxu0 0.0
    %547 = vmatpush1.xpose.msra.mxu0 0.0
    %548 = vmatprep.subr.mxu0 0.0
    %549 = vmatpush1.xpose.msra.mxu0 0.0
    %550 = vmatprep.subr.mxu0 0.0
    %551 = vmatpush1.xpose.msra.mxu0 %v520
    %552 = vmatprep.subr.mxu0 0.0
    %553 = vmatpush1.xpose.msra.mxu0 %v517
    %554 = vmatprep.subr.mxu0 0.0
    %555 = vmatpush2.xpose.msra.mxu0 0.0
    %556 = vmatprep.subr.mxu0 0.0
    %557 = vmatpush2.xpose.msra.mxu0 0.0
    %558 = vmatprep.subr.mxu0 0.0
    %559 = vmatpush2.xpose.msra.mxu0 0.0
    %560 = vmatprep.subr.mxu0 0.0
    %561 = vmatpush2.xpose.msra.mxu0 0.0
    %562 = vmatprep.subr.mxu0 0.0
    %563 = vmatpush2.xpose.msra.mxu0 0.0
    %564 = vmatprep.subr.mxu0 0.0
    %565 = vmatpush2.xpose.msra.mxu0 0.0
    %566 = vmatprep.subr.mxu0 0.0
    %567 = vmatpush2.xpose.msra.mxu0 0.0
    %568 = vmatprep.subr.mxu0 0.0
    %569 = vmatpush2.xpose.msra.mxu0 0.0
    %570 = vmatprep.subr.mxu0 0.0
    %571 = vmatpush2.xpose.msra.mxu0 0.0
    %572 = vmatprep.subr.mxu0 0.0
    %573 = vmatpush2.xpose.msra.mxu0 0.0
    %574 = vmatprep.subr.mxu0 0.0
    %575 = vmatpush2.xpose.msra.mxu0 0.0
    %576 = vmatprep.subr.mxu0 0.0
    %577 = vmatpush2.xpose.msra.mxu0 0.0
    %578 = vmatprep.subr.mxu0 0.0
    %579 = vmatpush2.xpose.msra.mxu0 0.0
    %580 = vmatprep.subr.mxu0 0.0
    %581 = vmatpush2.xpose.msra.mxu0 0.0
    %582 = vmatprep.subr.mxu0 0.0
    %583 = vmatpush2.xpose.msra.mxu0 0.0
    %584 = vmatprep.subr.mxu0 0.0
    %585 = vmatpush2.xpose.msra.mxu0 0.0
    %586 = vmatprep.mubr.f32.mxu0 0.0
    %587 = vmatmul.mubr.f32.gmra.mxu0 %v514
    %v588 = vpop.f32.mrf.mxu0
    %v589 = vadd.f32 0.0, %v588
    %v590 = vpop.f32.mrf.mxu0
    %591 = vdwg.mxu0
    %v593 = vsel %vm117, %v43, 0
    %v596 = vsel %vm117, %v65, 0
    %v599 = vsel %vm117, %v66, 0
    %601 = vmatprep.subr.mxu0 0.0
    %602 = vmatpush1.xpose.msra.mxu0 0.0
    %603 = vmatprep.subr.mxu0 0.0
    %604 = vmatpush1.xpose.msra.mxu0 0.0
    %605 = vmatprep.subr.mxu0 0.0
    %606 = vmatpush1.xpose.msra.mxu0 0.0
    %607 = vmatprep.subr.mxu0 0.0
    %608 = vmatpush1.xpose.msra.mxu0 0.0
    %609 = vmatprep.subr.mxu0 0.0
    %610 = vmatpush1.xpose.msra.mxu0 0.0
    %611 = vmatprep.subr.mxu0 0.0
    %612 = vmatpush1.xpose.msra.mxu0 0.0
    %613 = vmatprep.subr.mxu0 0.0
    %614 = vmatpush1.xpose.msra.mxu0 0.0
    %615 = vmatprep.subr.mxu0 0.0
    %616 = vmatpush1.xpose.msra.mxu0 0.0
    %617 = vmatprep.subr.mxu0 0.0
    %618 = vmatpush1.xpose.msra.mxu0 0.0
    %619 = vmatprep.subr.mxu0 0.0
    %620 = vmatpush1.xpose.msra.mxu0 0.0
    %621 = vmatprep.subr.mxu0 0.0
    %622 = vmatpush1.xpose.msra.mxu0 0.0
    %623 = vmatprep.subr.mxu0 0.0
    %624 = vmatpush1.xpose.msra.mxu0 0.0
    %625 = vmatprep.subr.mxu0 0.0
    %626 = vmatpush1.xpose.msra.mxu0 0.0
    %627 = vmatprep.subr.mxu0 0.0
    %628 = vmatpush1.xpose.msra.mxu0 0.0
    %629 = vmatprep.subr.mxu0 0.0
    %630 = vmatpush1.xpose.msra.mxu0 %v599
    %631 = vmatprep.subr.mxu0 0.0
    %632 = vmatpush1.xpose.msra.mxu0 %v596
    %633 = vmatprep.subr.mxu0 0.0
    %634 = vmatpush2.xpose.msra.mxu0 0.0
    %635 = vmatprep.subr.mxu0 0.0
    %636 = vmatpush2.xpose.msra.mxu0 0.0
    %637 = vmatprep.subr.mxu0 0.0
    %638 = vmatpush2.xpose.msra.mxu0 0.0
    %639 = vmatprep.subr.mxu0 0.0
    %640 = vmatpush2.xpose.msra.mxu0 0.0
    %641 = vmatprep.subr.mxu0 0.0
    %642 = vmatpush2.xpose.msra.mxu0 0.0
    %643 = vmatprep.subr.mxu0 0.0
    %644 = vmatpush2.xpose.msra.mxu0 0.0
    %645 = vmatprep.subr.mxu0 0.0
    %646 = vmatpush2.xpose.msra.mxu0 0.0
    %647 = vmatprep.subr.mxu0 0.0
    %648 = vmatpush2.xpose.msra.mxu0 0.0
    %649 = vmatprep.subr.mxu0 0.0
    %650 = vmatpush2.xpose.msra.mxu0 0.0
    %651 = vmatprep.subr.mxu0 0.0
    %652 = vmatpush2.xpose.msra.mxu0 0.0
    %653 = vmatprep.subr.mxu0 0.0
    %654 = vmatpush2.xpose.msra.mxu0 0.0
    %655 = vmatprep.subr.mxu0 0.0
    %656 = vmatpush2.xpose.msra.mxu0 0.0
    %657 = vmatprep.subr.mxu0 0.0
    %658 = vmatpush2.xpose.msra.mxu0 0.0
    %659 = vmatprep.subr.mxu0 0.0
    %660 = vmatpush2.xpose.msra.mxu0 0.0
    %661 = vmatprep.subr.mxu0 0.0
    %662 = vmatpush2.xpose.msra.mxu0 0.0
    %663 = vmatprep.subr.mxu0 0.0
    %664 = vmatpush2.xpose.msra.mxu0 0.0
    %665 = vmatprep.mubr.f32.mxu0 0.0
    %666 = vmatmul.mubr.f32.gmra.mxu0 %v593
    %v667 = vpop.f32.mrf.mxu0
    %v668 = vadd.f32 0.0, %v667
    %v669 = vpop.f32.mrf.mxu0
    %670 = vdwg.mxu0
    %v672 = vsel %vm117, %v44, 0
    %v675 = vsel %vm117, %v67, 0
    %v678 = vsel %vm117, %v68, 0
    %680 = vmatprep.subr.mxu0 0.0
    %681 = vmatpush1.xpose.msra.mxu0 0.0
    %682 = vmatprep.subr.mxu0 0.0
    %683 = vmatpush1.xpose.msra.mxu0 0.0
    %684 = vmatprep.subr.mxu0 0.0
    %685 = vmatpush1.xpose.msra.mxu0 0.0
    %686 = vmatprep.subr.mxu0 0.0
    %687 = vmatpush1.xpose.msra.mxu0 0.0
    %688 = vmatprep.subr.mxu0 0.0
    %689 = vmatpush1.xpose.msra.mxu0 0.0
    %690 = vmatprep.subr.mxu0 0.0
    %691 = vmatpush1.xpose.msra.mxu0 0.0
    %692 = vmatprep.subr.mxu0 0.0
    %693 = vmatpush1.xpose.msra.mxu0 0.0
    %694 = vmatprep.subr.mxu0 0.0
    %695 = vmatpush1.xpose.msra.mxu0 0.0
    %696 = vmatprep.subr.mxu0 0.0
    %697 = vmatpush1.xpose.msra.mxu0 0.0
    %698 = vmatprep.subr.mxu0 0.0
    %699 = vmatpush1.xpose.msra.mxu0 0.0
    %700 = vmatprep.subr.mxu0 0.0
    %701 = vmatpush1.xpose.msra.mxu0 0.0
    %702 = vmatprep.subr.mxu0 0.0
    %703 = vmatpush1.xpose.msra.mxu0 0.0
    %704 = vmatprep.subr.mxu0 0.0
    %705 = vmatpush1.xpose.msra.mxu0 0.0
    %706 = vmatprep.subr.mxu0 0.0
    %707 = vmatpush1.xpose.msra.mxu0 0.0
    %708 = vmatprep.subr.mxu0 0.0
    %709 = vmatpush1.xpose.msra.mxu0 %v678
    %710 = vmatprep.subr.mxu0 0.0
    %711 = vmatpush1.xpose.msra.mxu0 %v675
    %712 = vmatprep.subr.mxu0 0.0
    %713 = vmatpush2.xpose.msra.mxu0 0.0
    %714 = vmatprep.subr.mxu0 0.0
    %715 = vmatpush2.xpose.msra.mxu0 0.0
    %716 = vmatprep.subr.mxu0 0.0
    %717 = vmatpush2.xpose.msra.mxu0 0.0
    %718 = vmatprep.subr.mxu0 0.0
    %719 = vmatpush2.xpose.msra.mxu0 0.0
    %720 = vmatprep.subr.mxu0 0.0
    %721 = vmatpush2.xpose.msra.mxu0 0.0
    %722 = vmatprep.subr.mxu0 0.0
    %723 = vmatpush2.xpose.msra.mxu0 0.0
    %724 = vmatprep.subr.mxu0 0.0
    %725 = vmatpush2.xpose.msra.mxu0 0.0
    %726 = vmatprep.subr.mxu0 0.0
    %727 = vmatpush2.xpose.msra.mxu0 0.0
    %728 = vmatprep.subr.mxu0 0.0
    %729 = vmatpush2.xpose.msra.mxu0 0.0
    %730 = vmatprep.subr.mxu0 0.0
    %731 = vmatpush2.xpose.msra.mxu0 0.0
    %732 = vmatprep.subr.mxu0 0.0
    %733 = vmatpush2.xpose.msra.mxu0 0.0
    %734 = vmatprep.subr.mxu0 0.0
    %735 = vmatpush2.xpose.msra.mxu0 0.0
    %736 = vmatprep.subr.mxu0 0.0
    %737 = vmatpush2.xpose.msra.mxu0 0.0
    %738 = vmatprep.subr.mxu0 0.0
    %739 = vmatpush2.xpose.msra.mxu0 0.0
    %740 = vmatprep.subr.mxu0 0.0
    %741 = vmatpush2.xpose.msra.mxu0 0.0
    %742 = vmatprep.subr.mxu0 0.0
    %743 = vmatpush2.xpose.msra.mxu0 0.0
    %744 = vmatprep.mubr.f32.mxu0 0.0
    %745 = vmatmul.mubr.f32.gmra.mxu0 %v672
    %v746 = vpop.f32.mrf.mxu0
    %v747 = vadd.f32 0.0, %v746
    %v748 = vpop.f32.mrf.mxu0
    %749 = vdwg.mxu0
    %v751 = vsel %vm117, %v45, 0
    %v754 = vsel %vm117, %v69, 0
    %v757 = vsel %vm117, %v70, 0
    %759 = vmatprep.subr.mxu0 0.0
    %760 = vmatpush1.xpose.msra.mxu0 0.0
    %761 = vmatprep.subr.mxu0 0.0
    %762 = vmatpush1.xpose.msra.mxu0 0.0
    %763 = vmatprep.subr.mxu0 0.0
    %764 = vmatpush1.xpose.msra.mxu0 0.0
    %765 = vmatprep.subr.mxu0 0.0
    %766 = vmatpush1.xpose.msra.mxu0 0.0
    %767 = vmatprep.subr.mxu0 0.0
    %768 = vmatpush1.xpose.msra.mxu0 0.0
    %769 = vmatprep.subr.mxu0 0.0
    %770 = vmatpush1.xpose.msra.mxu0 0.0
    %771 = vmatprep.subr.mxu0 0.0
    %772 = vmatpush1.xpose.msra.mxu0 0.0
    %773 = vmatprep.subr.mxu0 0.0
    %774 = vmatpush1.xpose.msra.mxu0 0.0
    %775 = vmatprep.subr.mxu0 0.0
    %776 = vmatpush1.xpose.msra.mxu0 0.0
    %777 = vmatprep.subr.mxu0 0.0
    %778 = vmatpush1.xpose.msra.mxu0 0.0
    %779 = vmatprep.subr.mxu0 0.0
    %780 = vmatpush1.xpose.msra.mxu0 0.0
    %781 = vmatprep.subr.mxu0 0.0
    %782 = vmatpush1.xpose.msra.mxu0 0.0
    %783 = vmatprep.subr.mxu0 0.0
    %784 = vmatpush1.xpose.msra.mxu0 0.0
    %785 = vmatprep.subr.mxu0 0.0
    %786 = vmatpush1.xpose.msra.mxu0 0.0
    %787 = vmatprep.subr.mxu0 0.0
    %788 = vmatpush1.xpose.msra.mxu0 %v757
    %789 = vmatprep.subr.mxu0 0.0
    %790 = vmatpush1.xpose.msra.mxu0 %v754
    %791 = vmatprep.subr.mxu0 0.0
    %792 = vmatpush2.xpose.msra.mxu0 0.0
    %793 = vmatprep.subr.mxu0 0.0
    %794 = vmatpush2.xpose.msra.mxu0 0.0
    %795 = vmatprep.subr.mxu0 0.0
    %796 = vmatpush2.xpose.msra.mxu0 0.0
    %797 = vmatprep.subr.mxu0 0.0
    %798 = vmatpush2.xpose.msra.mxu0 0.0
    %799 = vmatprep.subr.mxu0 0.0
    %800 = vmatpush2.xpose.msra.mxu0 0.0
    %801 = vmatprep.subr.mxu0 0.0
    %802 = vmatpush2.xpose.msra.mxu0 0.0
    %803 = vmatprep.subr.mxu0 0.0
    %804 = vmatpush2.xpose.msra.mxu0 0.0
    %805 = vmatprep.subr.mxu0 0.0
    %806 = vmatpush2.xpose.msra.mxu0 0.0
    %807 = vmatprep.subr.mxu0 0.0
    %808 = vmatpush2.xpose.msra.mxu0 0.0
    %809 = vmatprep.subr.mxu0 0.0
    %810 = vmatpush2.xpose.msra.mxu0 0.0
    %811 = vmatprep.subr.mxu0 0.0
    %812 = vmatpush2.xpose.msra.mxu0 0.0
    %813 = vmatprep.subr.mxu0 0.0
    %814 = vmatpush2.xpose.msra.mxu0 0.0
    %815 = vmatprep.subr.mxu0 0.0
    %816 = vmatpush2.xpose.msra.mxu0 0.0
    %817 = vmatprep.subr.mxu0 0.0
    %818 = vmatpush2.xpose.msra.mxu0 0.0
    %819 = vmatprep.subr.mxu0 0.0
    %820 = vmatpush2.xpose.msra.mxu0 0.0
    %821 = vmatprep.subr.mxu0 0.0
    %822 = vmatpush2.xpose.msra.mxu0 0.0
    %823 = vmatprep.mubr.f32.mxu0 0.0
    %824 = vmatmul.mubr.f32.gmra.mxu0 %v751
    %v825 = vpop.f32.mrf.mxu0
    %v826 = vadd.f32 0.0, %v825
    %v827 = vpop.f32.mrf.mxu0
    %828 = vdwg.mxu0
    %v830 = vsel %vm117, %v46, 0
    %v833 = vsel %vm117, %v71, 0
    %v836 = vsel %vm117, %v72, 0
    %838 = vmatprep.subr.mxu0 0.0
    %839 = vmatpush1.xpose.msra.mxu0 0.0
    %840 = vmatprep.subr.mxu0 0.0
    %841 = vmatpush1.xpose.msra.mxu0 0.0
    %842 = vmatprep.subr.mxu0 0.0
    %843 = vmatpush1.xpose.msra.mxu0 0.0
    %844 = vmatprep.subr.mxu0 0.0
    %845 = vmatpush1.xpose.msra.mxu0 0.0
    %846 = vmatprep.subr.mxu0 0.0
    %847 = vmatpush1.xpose.msra.mxu0 0.0
    %848 = vmatprep.subr.mxu0 0.0
    %849 = vmatpush1.xpose.msra.mxu0 0.0
    %850 = vmatprep.subr.mxu0 0.0
    %851 = vmatpush1.xpose.msra.mxu0 0.0
    %852 = vmatprep.subr.mxu0 0.0
    %853 = vmatpush1.xpose.msra.mxu0 0.0
    %854 = vmatprep.subr.mxu0 0.0
    %855 = vmatpush1.xpose.msra.mxu0 0.0
    %856 = vmatprep.subr.mxu0 0.0
    %857 = vmatpush1.xpose.msra.mxu0 0.0
    %858 = vmatprep.subr.mxu0 0.0
    %859 = vmatpush1.xpose.msra.mxu0 0.0
    %860 = vmatprep.subr.mxu0 0.0
    %861 = vmatpush1.xpose.msra.mxu0 0.0
    %862 = vmatprep.subr.mxu0 0.0
    %863 = vmatpush1.xpose.msra.mxu0 0.0
    %864 = vmatprep.subr.mxu0 0.0
    %865 = vmatpush1.xpose.msra.mxu0 0.0
    %866 = vmatprep.subr.mxu0 0.0
    %867 = vmatpush1.xpose.msra.mxu0 %v836
    %868 = vmatprep.subr.mxu0 0.0
    %869 = vmatpush1.xpose.msra.mxu0 %v833
    %870 = vmatprep.subr.mxu0 0.0
    %871 = vmatpush2.xpose.msra.mxu0 0.0
    %872 = vmatprep.subr.mxu0 0.0
    %873 = vmatpush2.xpose.msra.mxu0 0.0
    %874 = vmatprep.subr.mxu0 0.0
    %875 = vmatpush2.xpose.msra.mxu0 0.0
    %876 = vmatprep.subr.mxu0 0.0
    %877 = vmatpush2.xpose.msra.mxu0 0.0
    %878 = vmatprep.subr.mxu0 0.0
    %879 = vmatpush2.xpose.msra.mxu0 0.0
    %880 = vmatprep.subr.mxu0 0.0
    %881 = vmatpush2.xpose.msra.mxu0 0.0
    %882 = vmatprep.subr.mxu0 0.0
    %883 = vmatpush2.xpose.msra.mxu0 0.0
    %884 = vmatprep.subr.mxu0 0.0
    %885 = vmatpush2.xpose.msra.mxu0 0.0
    %886 = vmatprep.subr.mxu0 0.0
    %887 = vmatpush2.xpose.msra.mxu0 0.0
    %888 = vmatprep.subr.mxu0 0.0
    %889 = vmatpush2.xpose.msra.mxu0 0.0
    %890 = vmatprep.subr.mxu0 0.0
    %891 = vmatpush2.xpose.msra.mxu0 0.0
    %892 = vmatprep.subr.mxu0 0.0
    %893 = vmatpush2.xpose.msra.mxu0 0.0
    %894 = vmatprep.subr.mxu0 0.0
    %895 = vmatpush2.xpose.msra.mxu0 0.0
    %896 = vmatprep.subr.mxu0 0.0
    %897 = vmatpush2.xpose.msra.mxu0 0.0
    %898 = vmatprep.subr.mxu0 0.0
    %899 = vmatpush2.xpose.msra.mxu0 0.0
    %900 = vmatprep.subr.mxu0 0.0
    %901 = vmatpush2.xpose.msra.mxu0 0.0
    %902 = vmatprep.mubr.f32.mxu0 0.0
    %903 = vmatmul.mubr.f32.gmra.mxu0 %v830
    %v904 = vpop.f32.mrf.mxu0
    %v905 = vadd.f32 0.0, %v904
    %v906 = vpop.f32.mrf.mxu0
    %907 = vdwg.mxu0
    %v909 = vsel %vm117, %v47, 0
    %v912 = vsel %vm117, %v73, 0
    %v915 = vsel %vm117, %v74, 0
    %917 = vmatprep.subr.mxu0 0.0
    %918 = vmatpush1.xpose.msra.mxu0 0.0
    %919 = vmatprep.subr.mxu0 0.0
    %920 = vmatpush1.xpose.msra.mxu0 0.0
    %921 = vmatprep.subr.mxu0 0.0
    %922 = vmatpush1.xpose.msra.mxu0 0.0
    %923 = vmatprep.subr.mxu0 0.0
    %924 = vmatpush1.xpose.msra.mxu0 0.0
    %925 = vmatprep.subr.mxu0 0.0
    %926 = vmatpush1.xpose.msra.mxu0 0.0
    %927 = vmatprep.subr.mxu0 0.0
    %928 = vmatpush1.xpose.msra.mxu0 0.0
    %929 = vmatprep.subr.mxu0 0.0
    %930 = vmatpush1.xpose.msra.mxu0 0.0
    %931 = vmatprep.subr.mxu0 0.0
    %932 = vmatpush1.xpose.msra.mxu0 0.0
    %933 = vmatprep.subr.mxu0 0.0
    %934 = vmatpush1.xpose.msra.mxu0 0.0
    %935 = vmatprep.subr.mxu0 0.0
    %936 = vmatpush1.xpose.msra.mxu0 0.0
    %937 = vmatprep.subr.mxu0 0.0
    %938 = vmatpush1.xpose.msra.mxu0 0.0
    %939 = vmatprep.subr.mxu0 0.0
    %940 = vmatpush1.xpose.msra.mxu0 0.0
    %941 = vmatprep.subr.mxu0 0.0
    %942 = vmatpush1.xpose.msra.mxu0 0.0
    %943 = vmatprep.subr.mxu0 0.0
    %944 = vmatpush1.xpose.msra.mxu0 0.0
    %945 = vmatprep.subr.mxu0 0.0
    %946 = vmatpush1.xpose.msra.mxu0 %v915
    %947 = vmatprep.subr.mxu0 0.0
    %948 = vmatpush1.xpose.msra.mxu0 %v912
    %949 = vmatprep.subr.mxu0 0.0
    %950 = vmatpush2.xpose.msra.mxu0 0.0
    %951 = vmatprep.subr.mxu0 0.0
    %952 = vmatpush2.xpose.msra.mxu0 0.0
    %953 = vmatprep.subr.mxu0 0.0
    %954 = vmatpush2.xpose.msra.mxu0 0.0
    %955 = vmatprep.subr.mxu0 0.0
    %956 = vmatpush2.xpose.msra.mxu0 0.0
    %957 = vmatprep.subr.mxu0 0.0
    %958 = vmatpush2.xpose.msra.mxu0 0.0
    %959 = vmatprep.subr.mxu0 0.0
    %960 = vmatpush2.xpose.msra.mxu0 0.0
    %961 = vmatprep.subr.mxu0 0.0
    %962 = vmatpush2.xpose.msra.mxu0 0.0
    %963 = vmatprep.subr.mxu0 0.0
    %964 = vmatpush2.xpose.msra.mxu0 0.0
    %965 = vmatprep.subr.mxu0 0.0
    %966 = vmatpush2.xpose.msra.mxu0 0.0
    %967 = vmatprep.subr.mxu0 0.0
    %968 = vmatpush2.xpose.msra.mxu0 0.0
    %969 = vmatprep.subr.mxu0 0.0
    %970 = vmatpush2.xpose.msra.mxu0 0.0
    %971 = vmatprep.subr.mxu0 0.0
    %972 = vmatpush2.xpose.msra.mxu0 0.0
    %973 = vmatprep.subr.mxu0 0.0
    %974 = vmatpush2.xpose.msra.mxu0 0.0
    %975 = vmatprep.subr.mxu0 0.0
    %976 = vmatpush2.xpose.msra.mxu0 0.0
    %977 = vmatprep.subr.mxu0 0.0
    %978 = vmatpush2.xpose.msra.mxu0 0.0
    %979 = vmatprep.subr.mxu0 0.0
    %980 = vmatpush2.xpose.msra.mxu0 0.0
    %981 = vmatprep.mubr.f32.mxu0 0.0
    %982 = vmatmul.mubr.f32.gmra.mxu0 %v909
    %v983 = vpop.f32.mrf.mxu0
    %v984 = vadd.f32 0.0, %v983
    %v985 = vpop.f32.mrf.mxu0
    %986 = vdwg.mxu0
    %v988 = vsel %vm117, %v48, 0
    %v991 = vsel %vm117, %v75, 0
    %v994 = vsel %vm117, %v76, 0
    %996 = vmatprep.subr.mxu0 0.0
    %997 = vmatpush1.xpose.msra.mxu0 0.0
    %998 = vmatprep.subr.mxu0 0.0
    %999 = vmatpush1.xpose.msra.mxu0 0.0
    %1000 = vmatprep.subr.mxu0 0.0
    %1001 = vmatpush1.xpose.msra.mxu0 0.0
    %1002 = vmatprep.subr.mxu0 0.0
    %1003 = vmatpush1.xpose.msra.mxu0 0.0
    %1004 = vmatprep.subr.mxu0 0.0
    %1005 = vmatpush1.xpose.msra.mxu0 0.0
    %1006 = vmatprep.subr.mxu0 0.0
    %1007 = vmatpush1.xpose.msra.mxu0 0.0
    %1008 = vmatprep.subr.mxu0 0.0
    %1009 = vmatpush1.xpose.msra.mxu0 0.0
    %1010 = vmatprep.subr.mxu0 0.0
    %1011 = vmatpush1.xpose.msra.mxu0 0.0
    %1012 = vmatprep.subr.mxu0 0.0
    %1013 = vmatpush1.xpose.msra.mxu0 0.0
    %1014 = vmatprep.subr.mxu0 0.0
    %1015 = vmatpush1.xpose.msra.mxu0 0.0
    %1016 = vmatprep.subr.mxu0 0.0
    %1017 = vmatpush1.xpose.msra.mxu0 0.0
    %1018 = vmatprep.subr.mxu0 0.0
    %1019 = vmatpush1.xpose.msra.mxu0 0.0
    %1020 = vmatprep.subr.mxu0 0.0
    %1021 = vmatpush1.xpose.msra.mxu0 0.0
    %1022 = vmatprep.subr.mxu0 0.0
    %1023 = vmatpush1.xpose.msra.mxu0 0.0
    %1024 = vmatprep.subr.mxu0 0.0
    %1025 = vmatpush1.xpose.msra.mxu0 %v994
    %1026 = vmatprep.subr.mxu0 0.0
    %1027 = vmatpush1.xpose.msra.mxu0 %v991
    %1028 = vmatprep.subr.mxu0 0.0
    %1029 = vmatpush2.xpose.msra.mxu0 0.0
    %1030 = vmatprep.subr.mxu0 0.0
    %1031 = vmatpush2.xpose.msra.mxu0 0.0
    %1032 = vmatprep.subr.mxu0 0.0
    %1033 = vmatpush2.xpose.msra.mxu0 0.0
    %1034 = vmatprep.subr.mxu0 0.0
    %1035 = vmatpush2.xpose.msra.mxu0 0.0
    %1036 = vmatprep.subr.mxu0 0.0
    %1037 = vmatpush2.xpose.msra.mxu0 0.0
    %1038 = vmatprep.subr.mxu0 0.0
    %1039 = vmatpush2.xpose.msra.mxu0 0.0
    %1040 = vmatprep.subr.mxu0 0.0
    %1041 = vmatpush2.xpose.msra.mxu0 0.0
    %1042 = vmatprep.subr.mxu0 0.0
    %1043 = vmatpush2.xpose.msra.mxu0 0.0
    %1044 = vmatprep.subr.mxu0 0.0
    %1045 = vmatpush2.xpose.msra.mxu0 0.0
    %1046 = vmatprep.subr.mxu0 0.0
    %1047 = vmatpush2.xpose.msra.mxu0 0.0
    %1048 = vmatprep.subr.mxu0 0.0
    %1049 = vmatpush2.xpose.msra.mxu0 0.0
    %1050 = vmatprep.subr.mxu0 0.0
    %1051 = vmatpush2.xpose.msra.mxu0 0.0
    %1052 = vmatprep.subr.mxu0 0.0
    %1053 = vmatpush2.xpose.msra.mxu0 0.0
    %1054 = vmatprep.subr.mxu0 0.0
    %1055 = vmatpush2.xpose.msra.mxu0 0.0
    %1056 = vmatprep.subr.mxu0 0.0
    %1057 = vmatpush2.xpose.msra.mxu0 0.0
    %1058 = vmatprep.subr.mxu0 0.0
    %1059 = vmatpush2.xpose.msra.mxu0 0.0
    %1060 = vmatprep.mubr.f32.mxu0 0.0
    %1061 = vmatmul.mubr.f32.gmra.mxu0 %v988
    %v1062 = vpop.f32.mrf.mxu0
    %v1063 = vadd.f32 0.0, %v1062
    %v1064 = vpop.f32.mrf.mxu0
    %1065 = vdwg.mxu0
    %v1067 = vsel %vm117, %v49, 0
    %v1070 = vsel %vm117, %v77, 0
    %v1073 = vsel %vm117, %v78, 0
    %1075 = vmatprep.subr.mxu0 0.0
    %1076 = vmatpush1.xpose.msra.mxu0 0.0
    %1077 = vmatprep.subr.mxu0 0.0
    %1078 = vmatpush1.xpose.msra.mxu0 0.0
    %1079 = vmatprep.subr.mxu0 0.0
    %1080 = vmatpush1.xpose.msra.mxu0 0.0
    %1081 = vmatprep.subr.mxu0 0.0
    %1082 = vmatpush1.xpose.msra.mxu0 0.0
    %1083 = vmatprep.subr.mxu0 0.0
    %1084 = vmatpush1.xpose.msra.mxu0 0.0
    %1085 = vmatprep.subr.mxu0 0.0
    %1086 = vmatpush1.xpose.msra.mxu0 0.0
    %1087 = vmatprep.subr.mxu0 0.0
    %1088 = vmatpush1.xpose.msra.mxu0 0.0
    %1089 = vmatprep.subr.mxu0 0.0
    %1090 = vmatpush1.xpose.msra.mxu0 0.0
    %1091 = vmatprep.subr.mxu0 0.0
    %1092 = vmatpush1.xpose.msra.mxu0 0.0
    %1093 = vmatprep.subr.mxu0 0.0
    %1094 = vmatpush1.xpose.msra.mxu0 0.0
    %1095 = vmatprep.subr.mxu0 0.0
    %1096 = vmatpush1.xpose.msra.mxu0 0.0
    %1097 = vmatprep.subr.mxu0 0.0
    %1098 = vmatpush1.xpose.msra.mxu0 0.0
    %1099 = vmatprep.subr.mxu0 0.0
    %1100 = vmatpush1.xpose.msra.mxu0 0.0
    %1101 = vmatprep.subr.mxu0 0.0
    %1102 = vmatpush1.xpose.msra.mxu0 0.0
    %1103 = vmatprep.subr.mxu0 0.0
    %1104 = vmatpush1.xpose.msra.mxu0 %v1073
    %1105 = vmatprep.subr.mxu0 0.0
    %1106 = vmatpush1.xpose.msra.mxu0 %v1070
    %1107 = vmatprep.subr.mxu0 0.0
    %1108 = vmatpush2.xpose.msra.mxu0 0.0
    %1109 = vmatprep.subr.mxu0 0.0
    %1110 = vmatpush2.xpose.msra.mxu0 0.0
    %1111 = vmatprep.subr.mxu0 0.0
    %1112 = vmatpush2.xpose.msra.mxu0 0.0
    %1113 = vmatprep.subr.mxu0 0.0
    %1114 = vmatpush2.xpose.msra.mxu0 0.0
    %1115 = vmatprep.subr.mxu0 0.0
    %1116 = vmatpush2.xpose.msra.mxu0 0.0
    %1117 = vmatprep.subr.mxu0 0.0
    %1118 = vmatpush2.xpose.msra.mxu0 0.0
    %1119 = vmatprep.subr.mxu0 0.0
    %1120 = vmatpush2.xpose.msra.mxu0 0.0
    %1121 = vmatprep.subr.mxu0 0.0
    %1122 = vmatpush2.xpose.msra.mxu0 0.0
    %1123 = vmatprep.subr.mxu0 0.0
    %1124 = vmatpush2.xpose.msra.mxu0 0.0
    %1125 = vmatprep.subr.mxu0 0.0
    %1126 = vmatpush2.xpose.msra.mxu0 0.0
    %1127 = vmatprep.subr.mxu0 0.0
    %1128 = vmatpush2.xpose.msra.mxu0 0.0
    %1129 = vmatprep.subr.mxu0 0.0
    %1130 = vmatpush2.xpose.msra.mxu0 0.0
    %1131 = vmatprep.subr.mxu0 0.0
    %1132 = vmatpush2.xpose.msra.mxu0 0.0
    %1133 = vmatprep.subr.mxu0 0.0
    %1134 = vmatpush2.xpose.msra.mxu0 0.0
    %1135 = vmatprep.subr.mxu0 0.0
    %1136 = vmatpush2.xpose.msra.mxu0 0.0
    %1137 = vmatprep.subr.mxu0 0.0
    %1138 = vmatpush2.xpose.msra.mxu0 0.0
    %1139 = vmatprep.mubr.f32.mxu0 0.0
    %1140 = vmatmul.mubr.f32.gmra.mxu0 %v1067
    %v1141 = vpop.f32.mrf.mxu0
    %v1142 = vadd.f32 0.0, %v1141
    %v1143 = vpop.f32.mrf.mxu0
    %1144 = vdwg.mxu0
    %v1146 = vsel %vm117, %v50, 0
    %v1149 = vsel %vm117, %v79, 0
    %v1152 = vsel %vm117, %v80, 0
    %1154 = vmatprep.subr.mxu0 0.0
    %1155 = vmatpush1.xpose.msra.mxu0 0.0
    %1156 = vmatprep.subr.mxu0 0.0
    %1157 = vmatpush1.xpose.msra.mxu0 0.0
    %1158 = vmatprep.subr.mxu0 0.0
    %1159 = vmatpush1.xpose.msra.mxu0 0.0
    %1160 = vmatprep.subr.mxu0 0.0
    %1161 = vmatpush1.xpose.msra.mxu0 0.0
    %1162 = vmatprep.subr.mxu0 0.0
    %1163 = vmatpush1.xpose.msra.mxu0 0.0
    %1164 = vmatprep.subr.mxu0 0.0
    %1165 = vmatpush1.xpose.msra.mxu0 0.0
    %1166 = vmatprep.subr.mxu0 0.0
    %1167 = vmatpush1.xpose.msra.mxu0 0.0
    %1168 = vmatprep.subr.mxu0 0.0
    %1169 = vmatpush1.xpose.msra.mxu0 0.0
    %1170 = vmatprep.subr.mxu0 0.0
    %1171 = vmatpush1.xpose.msra.mxu0 0.0
    %1172 = vmatprep.subr.mxu0 0.0
    %1173 = vmatpush1.xpose.msra.mxu0 0.0
    %1174 = vmatprep.subr.mxu0 0.0
    %1175 = vmatpush1.xpose.msra.mxu0 0.0
    %1176 = vmatprep.subr.mxu0 0.0
    %1177 = vmatpush1.xpose.msra.mxu0 0.0
    %1178 = vmatprep.subr.mxu0 0.0
    %1179 = vmatpush1.xpose.msra.mxu0 0.0
    %1180 = vmatprep.subr.mxu0 0.0
    %1181 = vmatpush1.xpose.msra.mxu0 0.0
    %1182 = vmatprep.subr.mxu0 0.0
    %1183 = vmatpush1.xpose.msra.mxu0 %v1152
    %1184 = vmatprep.subr.mxu0 0.0
    %1185 = vmatpush1.xpose.msra.mxu0 %v1149
    %1186 = vmatprep.subr.mxu0 0.0
    %1187 = vmatpush2.xpose.msra.mxu0 0.0
    %1188 = vmatprep.subr.mxu0 0.0
    %1189 = vmatpush2.xpose.msra.mxu0 0.0
    %1190 = vmatprep.subr.mxu0 0.0
    %1191 = vmatpush2.xpose.msra.mxu0 0.0
    %1192 = vmatprep.subr.mxu0 0.0
    %1193 = vmatpush2.xpose.msra.mxu0 0.0
    %1194 = vmatprep.subr.mxu0 0.0
    %1195 = vmatpush2.xpose.msra.mxu0 0.0
    %1196 = vmatprep.subr.mxu0 0.0
    %1197 = vmatpush2.xpose.msra.mxu0 0.0
    %1198 = vmatprep.subr.mxu0 0.0
    %1199 = vmatpush2.xpose.msra.mxu0 0.0
    %1200 = vmatprep.subr.mxu0 0.0
    %1201 = vmatpush2.xpose.msra.mxu0 0.0
    %1202 = vmatprep.subr.mxu0 0.0
    %1203 = vmatpush2.xpose.msra.mxu0 0.0
    %1204 = vmatprep.subr.mxu0 0.0
    %1205 = vmatpush2.xpose.msra.mxu0 0.0
    %1206 = vmatprep.subr.mxu0 0.0
    %1207 = vmatpush2.xpose.msra.mxu0 0.0
    %1208 = vmatprep.subr.mxu0 0.0
    %1209 = vmatpush2.xpose.msra.mxu0 0.0
    %1210 = vmatprep.subr.mxu0 0.0
    %1211 = vmatpush2.xpose.msra.mxu0 0.0
    %1212 = vmatprep.subr.mxu0 0.0
    %1213 = vmatpush2.xpose.msra.mxu0 0.0
    %1214 = vmatprep.subr.mxu0 0.0
    %1215 = vmatpush2.xpose.msra.mxu0 0.0
    %1216 = vmatprep.subr.mxu0 0.0
    %1217 = vmatpush2.xpose.msra.mxu0 0.0
    %1218 = vmatprep.mubr.f32.mxu0 0.0
    %1219 = vmatmul.mubr.f32.gmra.mxu0 %v1146
    %v1220 = vpop.f32.mrf.mxu0
    %v1221 = vadd.f32 0.0, %v1220
    %v1222 = vpop.f32.mrf.mxu0
    %1223 = vdwg.mxu0
    %v1225 = vsel %vm117, %v51, 0
    %v1228 = vsel %vm117, %v81, 0
    %v1231 = vsel %vm117, %v82, 0
    %1233 = vmatprep.subr.mxu0 0.0
    %1234 = vmatpush1.xpose.msra.mxu0 0.0
    %1235 = vmatprep.subr.mxu0 0.0
    %1236 = vmatpush1.xpose.msra.mxu0 0.0
    %1237 = vmatprep.subr.mxu0 0.0
    %1238 = vmatpush1.xpose.msra.mxu0 0.0
    %1239 = vmatprep.subr.mxu0 0.0
    %1240 = vmatpush1.xpose.msra.mxu0 0.0
    %1241 = vmatprep.subr.mxu0 0.0
    %1242 = vmatpush1.xpose.msra.mxu0 0.0
    %1243 = vmatprep.subr.mxu0 0.0
    %1244 = vmatpush1.xpose.msra.mxu0 0.0
    %1245 = vmatprep.subr.mxu0 0.0
    %1246 = vmatpush1.xpose.msra.mxu0 0.0
    %1247 = vmatprep.subr.mxu0 0.0
    %1248 = vmatpush1.xpose.msra.mxu0 0.0
    %1249 = vmatprep.subr.mxu0 0.0
    %1250 = vmatpush1.xpose.msra.mxu0 0.0
    %1251 = vmatprep.subr.mxu0 0.0
    %1252 = vmatpush1.xpose.msra.mxu0 0.0
    %1253 = vmatprep.subr.mxu0 0.0
    %1254 = vmatpush1.xpose.msra.mxu0 0.0
    %1255 = vmatprep.subr.mxu0 0.0
    %1256 = vmatpush1.xpose.msra.mxu0 0.0
    %1257 = vmatprep.subr.mxu0 0.0
    %1258 = vmatpush1.xpose.msra.mxu0 0.0
    %1259 = vmatprep.subr.mxu0 0.0
    %1260 = vmatpush1.xpose.msra.mxu0 0.0
    %1261 = vmatprep.subr.mxu0 0.0
    %1262 = vmatpush1.xpose.msra.mxu0 %v1231
    %1263 = vmatprep.subr.mxu0 0.0
    %1264 = vmatpush1.xpose.msra.mxu0 %v1228
    %1265 = vmatprep.subr.mxu0 0.0
    %1266 = vmatpush2.xpose.msra.mxu0 0.0
    %1267 = vmatprep.subr.mxu0 0.0
    %1268 = vmatpush2.xpose.msra.mxu0 0.0
    %1269 = vmatprep.subr.mxu0 0.0
    %1270 = vmatpush2.xpose.msra.mxu0 0.0
    %1271 = vmatprep.subr.mxu0 0.0
    %1272 = vmatpush2.xpose.msra.mxu0 0.0
    %1273 = vmatprep.subr.mxu0 0.0
    %1274 = vmatpush2.xpose.msra.mxu0 0.0
    %1275 = vmatprep.subr.mxu0 0.0
    %1276 = vmatpush2.xpose.msra.mxu0 0.0
    %1277 = vmatprep.subr.mxu0 0.0
    %1278 = vmatpush2.xpose.msra.mxu0 0.0
    %1279 = vmatprep.subr.mxu0 0.0
    %1280 = vmatpush2.xpose.msra.mxu0 0.0
    %1281 = vmatprep.subr.mxu0 0.0
    %1282 = vmatpush2.xpose.msra.mxu0 0.0
    %1283 = vmatprep.subr.mxu0 0.0
    %1284 = vmatpush2.xpose.msra.mxu0 0.0
    %1285 = vmatprep.subr.mxu0 0.0
    %1286 = vmatpush2.xpose.msra.mxu0 0.0
    %1287 = vmatprep.subr.mxu0 0.0
    %1288 = vmatpush2.xpose.msra.mxu0 0.0
    %1289 = vmatprep.subr.mxu0 0.0
    %1290 = vmatpush2.xpose.msra.mxu0 0.0
    %1291 = vmatprep.subr.mxu0 0.0
    %1292 = vmatpush2.xpose.msra.mxu0 0.0
    %1293 = vmatprep.subr.mxu0 0.0
    %1294 = vmatpush2.xpose.msra.mxu0 0.0
    %1295 = vmatprep.subr.mxu0 0.0
    %1296 = vmatpush2.xpose.msra.mxu0 0.0
    %1297 = vmatprep.mubr.f32.mxu0 0.0
    %1298 = vmatmul.mubr.f32.gmra.mxu0 %v1225
    %v1299 = vpop.f32.mrf.mxu0
    %v1300 = vadd.f32 0.0, %v1299
    %v1301 = vpop.f32.mrf.mxu0
    %1302 = vdwg.mxu0
    %v1304 = vsel %vm117, %v52, 0
    %v1307 = vsel %vm117, %v83, 0
    %v1310 = vsel %vm117, %v84, 0
    %1312 = vmatprep.subr.mxu0 0.0
    %1313 = vmatpush1.xpose.msra.mxu0 0.0
    %1314 = vmatprep.subr.mxu0 0.0
    %1315 = vmatpush1.xpose.msra.mxu0 0.0
    %1316 = vmatprep.subr.mxu0 0.0
    %1317 = vmatpush1.xpose.msra.mxu0 0.0
    %1318 = vmatprep.subr.mxu0 0.0
    %1319 = vmatpush1.xpose.msra.mxu0 0.0
    %1320 = vmatprep.subr.mxu0 0.0
    %1321 = vmatpush1.xpose.msra.mxu0 0.0
    %1322 = vmatprep.subr.mxu0 0.0
    %1323 = vmatpush1.xpose.msra.mxu0 0.0
    %1324 = vmatprep.subr.mxu0 0.0
    %1325 = vmatpush1.xpose.msra.mxu0 0.0
    %1326 = vmatprep.subr.mxu0 0.0
    %1327 = vmatpush1.xpose.msra.mxu0 0.0
    %1328 = vmatprep.subr.mxu0 0.0
    %1329 = vmatpush1.xpose.msra.mxu0 0.0
    %1330 = vmatprep.subr.mxu0 0.0
    %1331 = vmatpush1.xpose.msra.mxu0 0.0
    %1332 = vmatprep.subr.mxu0 0.0
    %1333 = vmatpush1.xpose.msra.mxu0 0.0
    %1334 = vmatprep.subr.mxu0 0.0
    %1335 = vmatpush1.xpose.msra.mxu0 0.0
    %1336 = vmatprep.subr.mxu0 0.0
    %1337 = vmatpush1.xpose.msra.mxu0 0.0
    %1338 = vmatprep.subr.mxu0 0.0
    %1339 = vmatpush1.xpose.msra.mxu0 0.0
    %1340 = vmatprep.subr.mxu0 0.0
    %1341 = vmatpush1.xpose.msra.mxu0 %v1310
    %1342 = vmatprep.subr.mxu0 0.0
    %1343 = vmatpush1.xpose.msra.mxu0 %v1307
    %1344 = vmatprep.subr.mxu0 0.0
    %1345 = vmatpush2.xpose.msra.mxu0 0.0
    %1346 = vmatprep.subr.mxu0 0.0
    %1347 = vmatpush2.xpose.msra.mxu0 0.0
    %1348 = vmatprep.subr.mxu0 0.0
    %1349 = vmatpush2.xpose.msra.mxu0 0.0
    %1350 = vmatprep.subr.mxu0 0.0
    %1351 = vmatpush2.xpose.msra.mxu0 0.0
    %1352 = vmatprep.subr.mxu0 0.0
    %1353 = vmatpush2.xpose.msra.mxu0 0.0
    %1354 = vmatprep.subr.mxu0 0.0
    %1355 = vmatpush2.xpose.msra.mxu0 0.0
    %1356 = vmatprep.subr.mxu0 0.0
    %1357 = vmatpush2.xpose.msra.mxu0 0.0
    %1358 = vmatprep.subr.mxu0 0.0
    %1359 = vmatpush2.xpose.msra.mxu0 0.0
    %1360 = vmatprep.subr.mxu0 0.0
    %1361 = vmatpush2.xpose.msra.mxu0 0.0
    %1362 = vmatprep.subr.mxu0 0.0
    %1363 = vmatpush2.xpose.msra.mxu0 0.0
    %1364 = vmatprep.subr.mxu0 0.0
    %1365 = vmatpush2.xpose.msra.mxu0 0.0
    %1366 = vmatprep.subr.mxu0 0.0
    %1367 = vmatpush2.xpose.msra.mxu0 0.0
    %1368 = vmatprep.subr.mxu0 0.0
    %1369 = vmatpush2.xpose.msra.mxu0 0.0
    %1370 = vmatprep.subr.mxu0 0.0
    %1371 = vmatpush2.xpose.msra.mxu0 0.0
    %1372 = vmatprep.subr.mxu0 0.0
    %1373 = vmatpush2.xpose.msra.mxu0 0.0
    %1374 = vmatprep.subr.mxu0 0.0
    %1375 = vmatpush2.xpose.msra.mxu0 0.0
    %1376 = vmatprep.mubr.f32.mxu0 0.0
    %1377 = vmatmul.mubr.f32.gmra.mxu0 %v1304
    %v1378 = vpop.f32.mrf.mxu0
    %v1379 = vadd.f32 0.0, %v1378
    %v1380 = vpop.f32.mrf.mxu0
    %1381 = vdwg.mxu0
    %v1382 = vsel %vm117, %v194, -inf
    %1383 = vmax.xlane.f32.xlu0 %v1382
    %v1384 = vpop.xlane.xlu0 %1383
    %v1385 = vsel %vm117, %v273, -inf
    %1386 = vmax.xlane.f32.xlu0 %v1385
    %v1387 = vpop.xlane.xlu0 %1386
    %v1388 = vsel %vm117, %v352, -inf
    %1389 = vmax.xlane.f32.xlu0 %v1388
    %v1390 = vpop.xlane.xlu0 %1389
    %v1391 = vsel %vm117, %v431, -inf
    %1392 = vmax.xlane.f32.xlu0 %v1391
    %v1393 = vpop.xlane.xlu0 %1392
    %v1394 = vsel %vm117, %v510, -inf
    %1395 = vmax.xlane.f32.xlu0 %v1394
    %v1396 = vpop.xlane.xlu0 %1395
    %v1397 = vsel %vm117, %v589, -inf
    %1398 = vmax.xlane.f32.xlu0 %v1397
    %v1399 = vpop.xlane.xlu0 %1398
    %v1400 = vsel %vm117, %v668, -inf
    %1401 = vmax.xlane.f32.xlu0 %v1400
    %v1402 = vpop.xlane.xlu0 %1401
    %v1403 = vsel %vm117, %v747, -inf
    %1404 = vmax.xlane.f32.xlu0 %v1403
    %v1405 = vpop.xlane.xlu0 %1404
    %v1406 = vsel %vm117, %v826, -inf
    %1407 = vmax.xlane.f32.xlu0 %v1406
    %v1408 = vpop.xlane.xlu0 %1407
    %v1409 = vsel %vm117, %v905, -inf
    %1410 = vmax.xlane.f32.xlu0 %v1409
    %v1411 = vpop.xlane.xlu0 %1410
    %v1412 = vsel %vm117, %v984, -inf
    %1413 = vmax.xlane.f32.xlu0 %v1412
    %v1414 = vpop.xlane.xlu0 %1413
    %v1415 = vsel %vm117, %v1063, -inf
    %1416 = vmax.xlane.f32.xlu0 %v1415
    %v1417 = vpop.xlane.xlu0 %1416
    %v1418 = vsel %vm117, %v1142, -inf
    %1419 = vmax.xlane.f32.xlu0 %v1418
    %v1420 = vpop.xlane.xlu0 %1419
    %v1421 = vsel %vm117, %v1221, -inf
    %1422 = vmax.xlane.f32.xlu0 %v1421
    %v1423 = vpop.xlane.xlu0 %1422
    %v1424 = vsel %vm117, %v1300, -inf
    %1425 = vmax.xlane.f32.xlu0 %v1424
    %v1426 = vpop.xlane.xlu0 %1425
    %v1427 = vsel %vm117, %v1379, -inf
    %1428 = vmax.xlane.f32.xlu0 %v1427
    %v1429 = vpop.xlane.xlu0 %1428
    %v1430 = vsub.f32 %v194, %v1384
    %v1431 = vsub.f32 %v273, %v1387
    %v1432 = vsub.f32 %v352, %v1390
    %v1433 = vsub.f32 %v431, %v1393
    %v1434 = vsub.f32 %v510, %v1396
    %v1435 = vsub.f32 %v589, %v1399
    %v1436 = vsub.f32 %v668, %v1402
    %v1437 = vsub.f32 %v747, %v1405
    %v1438 = vsub.f32 %v826, %v1408
    %v1439 = vsub.f32 %v905, %v1411
    %v1440 = vsub.f32 %v984, %v1414
    %v1441 = vsub.f32 %v1063, %v1417
    %v1442 = vsub.f32 %v1142, %v1420
    %v1443 = vsub.f32 %v1221, %v1423
    %v1444 = vsub.f32 %v1300, %v1426
    %v1445 = vsub.f32 %v1379, %v1429
    %v1446 = vmul.f32 %v1430, 1.442695
    %v1447 = vpow.pop %v1446
    %v1448 = vmul.f32 %v1431, 1.442695
    %v1449 = vpow.pop %v1448
    %v1450 = vmul.f32 %v1432, 1.442695
    %v1451 = vpow.pop %v1450
    %v1452 = vmul.f32 %v1433, 1.442695
    %v1453 = vpow.pop %v1452
    %v1454 = vmul.f32 %v1434, 1.442695
    %v1455 = vpow.pop %v1454
    %v1456 = vmul.f32 %v1435, 1.442695
    %v1457 = vpow.pop %v1456
    %v1458 = vmul.f32 %v1436, 1.442695
    %v1459 = vpow.pop %v1458
    %v1460 = vmul.f32 %v1437, 1.442695
    %v1461 = vpow.pop %v1460
    %v1462 = vmul.f32 %v1438, 1.442695
    %v1463 = vpow.pop %v1462
    %v1464 = vmul.f32 %v1439, 1.442695
    %v1465 = vpow.pop %v1464
    %v1466 = vmul.f32 %v1440, 1.442695
    %v1467 = vpow.pop %v1466
    %v1468 = vmul.f32 %v1441, 1.442695
    %v1469 = vpow.pop %v1468
    %v1470 = vmul.f32 %v1442, 1.442695
    %v1471 = vpow.pop %v1470
    %v1472 = vmul.f32 %v1443, 1.442695
    %v1473 = vpow.pop %v1472
    %v1474 = vmul.f32 %v1444, 1.442695
    %v1475 = vpow.pop %v1474
    %v1476 = vmul.f32 %v1445, 1.442695
    %v1477 = vpow.pop %v1476
    %v1478 = vsel %vm117, %v1447, 0.0
    %1479 = vadd.xlane.f32.xlu0 %v1478
    %v1480 = vpop.xlane.xlu0 %1479
    %v1481 = vsel %vm117, %v1449, 0.0
    %1482 = vadd.xlane.f32.xlu0 %v1481
    %v1483 = vpop.xlane.xlu0 %1482
    %v1484 = vsel %vm117, %v1451, 0.0
    %1485 = vadd.xlane.f32.xlu0 %v1484
    %v1486 = vpop.xlane.xlu0 %1485
    %v1487 = vsel %vm117, %v1453, 0.0
    %1488 = vadd.xlane.f32.xlu0 %v1487
    %v1489 = vpop.xlane.xlu0 %1488
    %v1490 = vsel %vm117, %v1455, 0.0
    %1491 = vadd.xlane.f32.xlu0 %v1490
    %v1492 = vpop.xlane.xlu0 %1491
    %v1493 = vsel %vm117, %v1457, 0.0
    %1494 = vadd.xlane.f32.xlu0 %v1493
    %v1495 = vpop.xlane.xlu0 %1494
    %v1496 = vsel %vm117, %v1459, 0.0
    %1497 = vadd.xlane.f32.xlu0 %v1496
    %v1498 = vpop.xlane.xlu0 %1497
    %v1499 = vsel %vm117, %v1461, 0.0
    %1500 = vadd.xlane.f32.xlu0 %v1499
    %v1501 = vpop.xlane.xlu0 %1500
    %v1502 = vsel %vm117, %v1463, 0.0
    %1503 = vadd.xlane.f32.xlu0 %v1502
    %v1504 = vpop.xlane.xlu0 %1503
    %v1505 = vsel %vm117, %v1465, 0.0
    %1506 = vadd.xlane.f32.xlu0 %v1505
    %v1507 = vpop.xlane.xlu0 %1506
    %v1508 = vsel %vm117, %v1467, 0.0
    %1509 = vadd.xlane.f32.xlu0 %v1508
    %v1510 = vpop.xlane.xlu0 %1509
    %v1511 = vsel %vm117, %v1469, 0.0
    %1512 = vadd.xlane.f32.xlu0 %v1511
    %v1513 = vpop.xlane.xlu0 %1512
    %v1514 = vsel %vm117, %v1471, 0.0
    %1515 = vadd.xlane.f32.xlu0 %v1514
    %v1516 = vpop.xlane.xlu0 %1515
    %v1517 = vsel %vm117, %v1473, 0.0
    %1518 = vadd.xlane.f32.xlu0 %v1517
    %v1519 = vpop.xlane.xlu0 %1518
    %v1520 = vsel %vm117, %v1475, 0.0
    %1521 = vadd.xlane.f32.xlu0 %v1520
    %v1522 = vpop.xlane.xlu0 %1521
    %v1523 = vsel %vm117, %v1477, 0.0
    %1524 = vadd.xlane.f32.xlu0 %v1523
    %v1525 = vpop.xlane.xlu0 %1524
    %v1526 = vrcp.pop %v1480
    %v1527 = vrcp.pop %v1483
    %v1528 = vrcp.pop %v1486
    %v1529 = vrcp.pop %v1489
    %v1530 = vrcp.pop %v1492
    %v1531 = vrcp.pop %v1495
    %v1532 = vrcp.pop %v1498
    %v1533 = vrcp.pop %v1501
    %v1534 = vrcp.pop %v1504
    %v1535 = vrcp.pop %v1507
    %v1536 = vrcp.pop %v1510
    %v1537 = vrcp.pop %v1513
    %v1538 = vrcp.pop %v1516
    %v1539 = vrcp.pop %v1519
    %v1540 = vrcp.pop %v1522
    %v1541 = vrcp.pop %v1525
    %v1542 = vmul.f32 %v1447, %v1526
    %v1543 = vmul.f32 %v1449, %v1527
    %v1544 = vmul.f32 %v1451, %v1528
    %v1545 = vmul.f32 %v1453, %v1529
    %v1546 = vmul.f32 %v1455, %v1530
    %v1547 = vmul.f32 %v1457, %v1531
    %v1548 = vmul.f32 %v1459, %v1532
    %v1549 = vmul.f32 %v1461, %v1533
    %v1550 = vmul.f32 %v1463, %v1534
    %v1551 = vmul.f32 %v1465, %v1535
    %v1552 = vmul.f32 %v1467, %v1536
    %v1553 = vmul.f32 %v1469, %v1537
    %v1554 = vmul.f32 %v1471, %v1538
    %v1555 = vmul.f32 %v1473, %v1539
    %v1556 = vmul.f32 %v1475, %v1540
    %v1557 = vmul.f32 %v1477, %v1541
    %v1559 = vsel %vm117, %v1542, 0
    %1561 = vmatprep.subr.mxu0 0.0
    %1562 = vmatpush1.msra.mxu0 0.0
    %1563 = vmatprep.subr.mxu0 0.0
    %1564 = vmatpush1.msra.mxu0 0.0
    %1565 = vmatprep.subr.mxu0 0.0
    %1566 = vmatpush1.msra.mxu0 0.0
    %1567 = vmatprep.subr.mxu0 0.0
    %1568 = vmatpush1.msra.mxu0 0.0
    %1569 = vmatprep.subr.mxu0 0.0
    %1570 = vmatpush1.msra.mxu0 0.0
    %1571 = vmatprep.subr.mxu0 0.0
    %1572 = vmatpush1.msra.mxu0 0.0
    %1573 = vmatprep.subr.mxu0 0.0
    %1574 = vmatpush1.msra.mxu0 0.0
    %1575 = vmatprep.subr.mxu0 0.0
    %1576 = vmatpush1.msra.mxu0 0.0
    %1577 = vmatprep.subr.mxu0 0.0
    %1578 = vmatpush1.msra.mxu0 0.0
    %1579 = vmatprep.subr.mxu0 0.0
    %1580 = vmatpush1.msra.mxu0 0.0
    %1581 = vmatprep.subr.mxu0 0.0
    %1582 = vmatpush1.msra.mxu0 0.0
    %1583 = vmatprep.subr.mxu0 0.0
    %1584 = vmatpush1.msra.mxu0 0.0
    %1585 = vmatprep.subr.mxu0 0.0
    %1586 = vmatpush1.msra.mxu0 0.0
    %1587 = vmatprep.subr.mxu0 0.0
    %1588 = vmatpush1.msra.mxu0 0.0
    %1589 = vmatprep.subr.mxu0 0.0
    %1590 = vmatpush1.msra.mxu0 %v86
    %1591 = vmatprep.subr.mxu0 0.0
    %1592 = vmatpush1.msra.mxu0 %v85
    %1593 = vmatprep.subr.mxu0 0.0
    %1594 = vmatpush2.msra.mxu0 0.0
    %1595 = vmatprep.subr.mxu0 0.0
    %1596 = vmatpush2.msra.mxu0 0.0
    %1597 = vmatprep.subr.mxu0 0.0
    %1598 = vmatpush2.msra.mxu0 0.0
    %1599 = vmatprep.subr.mxu0 0.0
    %1600 = vmatpush2.msra.mxu0 0.0
    %1601 = vmatprep.subr.mxu0 0.0
    %1602 = vmatpush2.msra.mxu0 0.0
    %1603 = vmatprep.subr.mxu0 0.0
    %1604 = vmatpush2.msra.mxu0 0.0
    %1605 = vmatprep.subr.mxu0 0.0
    %1606 = vmatpush2.msra.mxu0 0.0
    %1607 = vmatprep.subr.mxu0 0.0
    %1608 = vmatpush2.msra.mxu0 0.0
    %1609 = vmatprep.subr.mxu0 0.0
    %1610 = vmatpush2.msra.mxu0 0.0
    %1611 = vmatprep.subr.mxu0 0.0
    %1612 = vmatpush2.msra.mxu0 0.0
    %1613 = vmatprep.subr.mxu0 0.0
    %1614 = vmatpush2.msra.mxu0 0.0
    %1615 = vmatprep.subr.mxu0 0.0
    %1616 = vmatpush2.msra.mxu0 0.0
    %1617 = vmatprep.subr.mxu0 0.0
    %1618 = vmatpush2.msra.mxu0 0.0
    %1619 = vmatprep.subr.mxu0 0.0
    %1620 = vmatpush2.msra.mxu0 0.0
    %1621 = vmatprep.subr.mxu0 0.0
    %1622 = vmatpush2.msra.mxu0 0.0
    %1623 = vmatprep.subr.mxu0 0.0
    %1624 = vmatpush2.msra.mxu0 0.0
    %1625 = vmatprep.mubr.f32.mxu0 0.0
    %1626 = vmatmul.mubr.f32.gmra.mxu0 %v1559
    %v1627 = vpop.f32.mrf.mxu0
    %v1628 = vadd.f32 0.0, %v1627
    %v1629 = vpop.f32.mrf.mxu0
    %1630 = vdwg.mxu0
    %v1632 = vsel %vm117, %v1543, 0
    %1634 = vmatprep.subr.mxu0 0.0
    %1635 = vmatpush1.msra.mxu0 0.0
    %1636 = vmatprep.subr.mxu0 0.0
    %1637 = vmatpush1.msra.mxu0 0.0
    %1638 = vmatprep.subr.mxu0 0.0
    %1639 = vmatpush1.msra.mxu0 0.0
    %1640 = vmatprep.subr.mxu0 0.0
    %1641 = vmatpush1.msra.mxu0 0.0
    %1642 = vmatprep.subr.mxu0 0.0
    %1643 = vmatpush1.msra.mxu0 0.0
    %1644 = vmatprep.subr.mxu0 0.0
    %1645 = vmatpush1.msra.mxu0 0.0
    %1646 = vmatprep.subr.mxu0 0.0
    %1647 = vmatpush1.msra.mxu0 0.0
    %1648 = vmatprep.subr.mxu0 0.0
    %1649 = vmatpush1.msra.mxu0 0.0
    %1650 = vmatprep.subr.mxu0 0.0
    %1651 = vmatpush1.msra.mxu0 0.0
    %1652 = vmatprep.subr.mxu0 0.0
    %1653 = vmatpush1.msra.mxu0 0.0
    %1654 = vmatprep.subr.mxu0 0.0
    %1655 = vmatpush1.msra.mxu0 0.0
    %1656 = vmatprep.subr.mxu0 0.0
    %1657 = vmatpush1.msra.mxu0 0.0
    %1658 = vmatprep.subr.mxu0 0.0
    %1659 = vmatpush1.msra.mxu0 0.0
    %1660 = vmatprep.subr.mxu0 0.0
    %1661 = vmatpush1.msra.mxu0 0.0
    %1662 = vmatprep.subr.mxu0 0.0
    %1663 = vmatpush1.msra.mxu0 %v88
    %1664 = vmatprep.subr.mxu0 0.0
    %1665 = vmatpush1.msra.mxu0 %v87
    %1666 = vmatprep.subr.mxu0 0.0
    %1667 = vmatpush2.msra.mxu0 0.0
    %1668 = vmatprep.subr.mxu0 0.0
    %1669 = vmatpush2.msra.mxu0 0.0
    %1670 = vmatprep.subr.mxu0 0.0
    %1671 = vmatpush2.msra.mxu0 0.0
    %1672 = vmatprep.subr.mxu0 0.0
    %1673 = vmatpush2.msra.mxu0 0.0
    %1674 = vmatprep.subr.mxu0 0.0
    %1675 = vmatpush2.msra.mxu0 0.0
    %1676 = vmatprep.subr.mxu0 0.0
    %1677 = vmatpush2.msra.mxu0 0.0
    %1678 = vmatprep.subr.mxu0 0.0
    %1679 = vmatpush2.msra.mxu0 0.0
    %1680 = vmatprep.subr.mxu0 0.0
    %1681 = vmatpush2.msra.mxu0 0.0
    %1682 = vmatprep.subr.mxu0 0.0
    %1683 = vmatpush2.msra.mxu0 0.0
    %1684 = vmatprep.subr.mxu0 0.0
    %1685 = vmatpush2.msra.mxu0 0.0
    %1686 = vmatprep.subr.mxu0 0.0
    %1687 = vmatpush2.msra.mxu0 0.0
    %1688 = vmatprep.subr.mxu0 0.0
    %1689 = vmatpush2.msra.mxu0 0.0
    %1690 = vmatprep.subr.mxu0 0.0
    %1691 = vmatpush2.msra.mxu0 0.0
    %1692 = vmatprep.subr.mxu0 0.0
    %1693 = vmatpush2.msra.mxu0 0.0
    %1694 = vmatprep.subr.mxu0 0.0
    %1695 = vmatpush2.msra.mxu0 0.0
    %1696 = vmatprep.subr.mxu0 0.0
    %1697 = vmatpush2.msra.mxu0 0.0
    %1698 = vmatprep.mubr.f32.mxu0 0.0
    %1699 = vmatmul.mubr.f32.gmra.mxu0 %v1632
    %v1700 = vpop.f32.mrf.mxu0
    %v1701 = vadd.f32 0.0, %v1700
    %v1702 = vpop.f32.mrf.mxu0
    %1703 = vdwg.mxu0
    %v1705 = vsel %vm117, %v1544, 0
    %1707 = vmatprep.subr.mxu0 0.0
    %1708 = vmatpush1.msra.mxu0 0.0
    %1709 = vmatprep.subr.mxu0 0.0
    %1710 = vmatpush1.msra.mxu0 0.0
    %1711 = vmatprep.subr.mxu0 0.0
    %1712 = vmatpush1.msra.mxu0 0.0
    %1713 = vmatprep.subr.mxu0 0.0
    %1714 = vmatpush1.msra.mxu0 0.0
    %1715 = vmatprep.subr.mxu0 0.0
    %1716 = vmatpush1.msra.mxu0 0.0
    %1717 = vmatprep.subr.mxu0 0.0
    %1718 = vmatpush1.msra.mxu0 0.0
    %1719 = vmatprep.subr.mxu0 0.0
    %1720 = vmatpush1.msra.mxu0 0.0
    %1721 = vmatprep.subr.mxu0 0.0
    %1722 = vmatpush1.msra.mxu0 0.0
    %1723 = vmatprep.subr.mxu0 0.0
    %1724 = vmatpush1.msra.mxu0 0.0
    %1725 = vmatprep.subr.mxu0 0.0
    %1726 = vmatpush1.msra.mxu0 0.0
    %1727 = vmatprep.subr.mxu0 0.0
    %1728 = vmatpush1.msra.mxu0 0.0
    %1729 = vmatprep.subr.mxu0 0.0
    %1730 = vmatpush1.msra.mxu0 0.0
    %1731 = vmatprep.subr.mxu0 0.0
    %1732 = vmatpush1.msra.mxu0 0.0
    %1733 = vmatprep.subr.mxu0 0.0
    %1734 = vmatpush1.msra.mxu0 0.0
    %1735 = vmatprep.subr.mxu0 0.0
    %1736 = vmatpush1.msra.mxu0 %v90
    %1737 = vmatprep.subr.mxu0 0.0
    %1738 = vmatpush1.msra.mxu0 %v89
    %1739 = vmatprep.subr.mxu0 0.0
    %1740 = vmatpush2.msra.mxu0 0.0
    %1741 = vmatprep.subr.mxu0 0.0
    %1742 = vmatpush2.msra.mxu0 0.0
    %1743 = vmatprep.subr.mxu0 0.0
    %1744 = vmatpush2.msra.mxu0 0.0
    %1745 = vmatprep.subr.mxu0 0.0
    %1746 = vmatpush2.msra.mxu0 0.0
    %1747 = vmatprep.subr.mxu0 0.0
    %1748 = vmatpush2.msra.mxu0 0.0
    %1749 = vmatprep.subr.mxu0 0.0
    %1750 = vmatpush2.msra.mxu0 0.0
    %1751 = vmatprep.subr.mxu0 0.0
    %1752 = vmatpush2.msra.mxu0 0.0
    %1753 = vmatprep.subr.mxu0 0.0
    %1754 = vmatpush2.msra.mxu0 0.0
    %1755 = vmatprep.subr.mxu0 0.0
    %1756 = vmatpush2.msra.mxu0 0.0
    %1757 = vmatprep.subr.mxu0 0.0
    %1758 = vmatpush2.msra.mxu0 0.0
    %1759 = vmatprep.subr.mxu0 0.0
    %1760 = vmatpush2.msra.mxu0 0.0
    %1761 = vmatprep.subr.mxu0 0.0
    %1762 = vmatpush2.msra.mxu0 0.0
    %1763 = vmatprep.subr.mxu0 0.0
    %1764 = vmatpush2.msra.mxu0 0.0
    %1765 = vmatprep.subr.mxu0 0.0
    %1766 = vmatpush2.msra.mxu0 0.0
    %1767 = vmatprep.subr.mxu0 0.0
    %1768 = vmatpush2.msra.mxu0 0.0
    %1769 = vmatprep.subr.mxu0 0.0
    %1770 = vmatpush2.msra.mxu0 0.0
    %1771 = vmatprep.mubr.f32.mxu0 0.0
    %1772 = vmatmul.mubr.f32.gmra.mxu0 %v1705
    %v1773 = vpop.f32.mrf.mxu0
    %v1774 = vadd.f32 0.0, %v1773
    %v1775 = vpop.f32.mrf.mxu0
    %1776 = vdwg.mxu0
    %v1778 = vsel %vm117, %v1545, 0
    %1780 = vmatprep.subr.mxu0 0.0
    %1781 = vmatpush1.msra.mxu0 0.0
    %1782 = vmatprep.subr.mxu0 0.0
    %1783 = vmatpush1.msra.mxu0 0.0
    %1784 = vmatprep.subr.mxu0 0.0
    %1785 = vmatpush1.msra.mxu0 0.0
    %1786 = vmatprep.subr.mxu0 0.0
    %1787 = vmatpush1.msra.mxu0 0.0
    %1788 = vmatprep.subr.mxu0 0.0
    %1789 = vmatpush1.msra.mxu0 0.0
    %1790 = vmatprep.subr.mxu0 0.0
    %1791 = vmatpush1.msra.mxu0 0.0
    %1792 = vmatprep.subr.mxu0 0.0
    %1793 = vmatpush1.msra.mxu0 0.0
    %1794 = vmatprep.subr.mxu0 0.0
    %1795 = vmatpush1.msra.mxu0 0.0
    %1796 = vmatprep.subr.mxu0 0.0
    %1797 = vmatpush1.msra.mxu0 0.0
    %1798 = vmatprep.subr.mxu0 0.0
    %1799 = vmatpush1.msra.mxu0 0.0
    %1800 = vmatprep.subr.mxu0 0.0
    %1801 = vmatpush1.msra.mxu0 0.0
    %1802 = vmatprep.subr.mxu0 0.0
    %1803 = vmatpush1.msra.mxu0 0.0
    %1804 = vmatprep.subr.mxu0 0.0
    %1805 = vmatpush1.msra.mxu0 0.0
    %1806 = vmatprep.subr.mxu0 0.0
    %1807 = vmatpush1.msra.mxu0 0.0
    %1808 = vmatprep.subr.mxu0 0.0
    %1809 = vmatpush1.msra.mxu0 %v92
    %1810 = vmatprep.subr.mxu0 0.0
    %1811 = vmatpush1.msra.mxu0 %v91
    %1812 = vmatprep.subr.mxu0 0.0
    %1813 = vmatpush2.msra.mxu0 0.0
    %1814 = vmatprep.subr.mxu0 0.0
    %1815 = vmatpush2.msra.mxu0 0.0
    %1816 = vmatprep.subr.mxu0 0.0
    %1817 = vmatpush2.msra.mxu0 0.0
    %1818 = vmatprep.subr.mxu0 0.0
    %1819 = vmatpush2.msra.mxu0 0.0
    %1820 = vmatprep.subr.mxu0 0.0
    %1821 = vmatpush2.msra.mxu0 0.0
    %1822 = vmatprep.subr.mxu0 0.0
    %1823 = vmatpush2.msra.mxu0 0.0
    %1824 = vmatprep.subr.mxu0 0.0
    %1825 = vmatpush2.msra.mxu0 0.0
    %1826 = vmatprep.subr.mxu0 0.0
    %1827 = vmatpush2.msra.mxu0 0.0
    %1828 = vmatprep.subr.mxu0 0.0
    %1829 = vmatpush2.msra.mxu0 0.0
    %1830 = vmatprep.subr.mxu0 0.0
    %1831 = vmatpush2.msra.mxu0 0.0
    %1832 = vmatprep.subr.mxu0 0.0
    %1833 = vmatpush2.msra.mxu0 0.0
    %1834 = vmatprep.subr.mxu0 0.0
    %1835 = vmatpush2.msra.mxu0 0.0
    %1836 = vmatprep.subr.mxu0 0.0
    %1837 = vmatpush2.msra.mxu0 0.0
    %1838 = vmatprep.subr.mxu0 0.0
    %1839 = vmatpush2.msra.mxu0 0.0
    %1840 = vmatprep.subr.mxu0 0.0
    %1841 = vmatpush2.msra.mxu0 0.0
    %1842 = vmatprep.subr.mxu0 0.0
    %1843 = vmatpush2.msra.mxu0 0.0
    %1844 = vmatprep.mubr.f32.mxu0 0.0
    %1845 = vmatmul.mubr.f32.gmra.mxu0 %v1778
    %v1846 = vpop.f32.mrf.mxu0
    %v1847 = vadd.f32 0.0, %v1846
    %v1848 = vpop.f32.mrf.mxu0
    %1849 = vdwg.mxu0
    %v1851 = vsel %vm117, %v1546, 0
    %1853 = vmatprep.subr.mxu0 0.0
    %1854 = vmatpush1.msra.mxu0 0.0
    %1855 = vmatprep.subr.mxu0 0.0
    %1856 = vmatpush1.msra.mxu0 0.0
    %1857 = vmatprep.subr.mxu0 0.0
    %1858 = vmatpush1.msra.mxu0 0.0
    %1859 = vmatprep.subr.mxu0 0.0
    %1860 = vmatpush1.msra.mxu0 0.0
    %1861 = vmatprep.subr.mxu0 0.0
    %1862 = vmatpush1.msra.mxu0 0.0
    %1863 = vmatprep.subr.mxu0 0.0
    %1864 = vmatpush1.msra.mxu0 0.0
    %1865 = vmatprep.subr.mxu0 0.0
    %1866 = vmatpush1.msra.mxu0 0.0
    %1867 = vmatprep.subr.mxu0 0.0
    %1868 = vmatpush1.msra.mxu0 0.0
    %1869 = vmatprep.subr.mxu0 0.0
    %1870 = vmatpush1.msra.mxu0 0.0
    %1871 = vmatprep.subr.mxu0 0.0
    %1872 = vmatpush1.msra.mxu0 0.0
    %1873 = vmatprep.subr.mxu0 0.0
    %1874 = vmatpush1.msra.mxu0 0.0
    %1875 = vmatprep.subr.mxu0 0.0
    %1876 = vmatpush1.msra.mxu0 0.0
    %1877 = vmatprep.subr.mxu0 0.0
    %1878 = vmatpush1.msra.mxu0 0.0
    %1879 = vmatprep.subr.mxu0 0.0
    %1880 = vmatpush1.msra.mxu0 0.0
    %1881 = vmatprep.subr.mxu0 0.0
    %1882 = vmatpush1.msra.mxu0 %v94
    %1883 = vmatprep.subr.mxu0 0.0
    %1884 = vmatpush1.msra.mxu0 %v93
    %1885 = vmatprep.subr.mxu0 0.0
    %1886 = vmatpush2.msra.mxu0 0.0
    %1887 = vmatprep.subr.mxu0 0.0
    %1888 = vmatpush2.msra.mxu0 0.0
    %1889 = vmatprep.subr.mxu0 0.0
    %1890 = vmatpush2.msra.mxu0 0.0
    %1891 = vmatprep.subr.mxu0 0.0
    %1892 = vmatpush2.msra.mxu0 0.0
    %1893 = vmatprep.subr.mxu0 0.0
    %1894 = vmatpush2.msra.mxu0 0.0
    %1895 = vmatprep.subr.mxu0 0.0
    %1896 = vmatpush2.msra.mxu0 0.0
    %1897 = vmatprep.subr.mxu0 0.0
    %1898 = vmatpush2.msra.mxu0 0.0
    %1899 = vmatprep.subr.mxu0 0.0
    %1900 = vmatpush2.msra.mxu0 0.0
    %1901 = vmatprep.subr.mxu0 0.0
    %1902 = vmatpush2.msra.mxu0 0.0
    %1903 = vmatprep.subr.mxu0 0.0
    %1904 = vmatpush2.msra.mxu0 0.0
    %1905 = vmatprep.subr.mxu0 0.0
    %1906 = vmatpush2.msra.mxu0 0.0
    %1907 = vmatprep.subr.mxu0 0.0
    %1908 = vmatpush2.msra.mxu0 0.0
    %1909 = vmatprep.subr.mxu0 0.0
    %1910 = vmatpush2.msra.mxu0 0.0
    %1911 = vmatprep.subr.mxu0 0.0
    %1912 = vmatpush2.msra.mxu0 0.0
    %1913 = vmatprep.subr.mxu0 0.0
    %1914 = vmatpush2.msra.mxu0 0.0
    %1915 = vmatprep.subr.mxu0 0.0
    %1916 = vmatpush2.msra.mxu0 0.0
    %1917 = vmatprep.mubr.f32.mxu0 0.0
    %1918 = vmatmul.mubr.f32.gmra.mxu0 %v1851
    %v1919 = vpop.f32.mrf.mxu0
    %v1920 = vadd.f32 0.0, %v1919
    %v1921 = vpop.f32.mrf.mxu0
    %1922 = vdwg.mxu0
    %v1924 = vsel %vm117, %v1547, 0
    %1926 = vmatprep.subr.mxu0 0.0
    %1927 = vmatpush1.msra.mxu0 0.0
    %1928 = vmatprep.subr.mxu0 0.0
    %1929 = vmatpush1.msra.mxu0 0.0
    %1930 = vmatprep.subr.mxu0 0.0
    %1931 = vmatpush1.msra.mxu0 0.0
    %1932 = vmatprep.subr.mxu0 0.0
    %1933 = vmatpush1.msra.mxu0 0.0
    %1934 = vmatprep.subr.mxu0 0.0
    %1935 = vmatpush1.msra.mxu0 0.0
    %1936 = vmatprep.subr.mxu0 0.0
    %1937 = vmatpush1.msra.mxu0 0.0
    %1938 = vmatprep.subr.mxu0 0.0
    %1939 = vmatpush1.msra.mxu0 0.0
    %1940 = vmatprep.subr.mxu0 0.0
    %1941 = vmatpush1.msra.mxu0 0.0
    %1942 = vmatprep.subr.mxu0 0.0
    %1943 = vmatpush1.msra.mxu0 0.0
    %1944 = vmatprep.subr.mxu0 0.0
    %1945 = vmatpush1.msra.mxu0 0.0
    %1946 = vmatprep.subr.mxu0 0.0
    %1947 = vmatpush1.msra.mxu0 0.0
    %1948 = vmatprep.subr.mxu0 0.0
    %1949 = vmatpush1.msra.mxu0 0.0
    %1950 = vmatprep.subr.mxu0 0.0
    %1951 = vmatpush1.msra.mxu0 0.0
    %1952 = vmatprep.subr.mxu0 0.0
    %1953 = vmatpush1.msra.mxu0 0.0
    %1954 = vmatprep.subr.mxu0 0.0
    %1955 = vmatpush1.msra.mxu0 %v96
    %1956 = vmatprep.subr.mxu0 0.0
    %1957 = vmatpush1.msra.mxu0 %v95
    %1958 = vmatprep.subr.mxu0 0.0
    %1959 = vmatpush2.msra.mxu0 0.0
    %1960 = vmatprep.subr.mxu0 0.0
    %1961 = vmatpush2.msra.mxu0 0.0
    %1962 = vmatprep.subr.mxu0 0.0
    %1963 = vmatpush2.msra.mxu0 0.0
    %1964 = vmatprep.subr.mxu0 0.0
    %1965 = vmatpush2.msra.mxu0 0.0
    %1966 = vmatprep.subr.mxu0 0.0
    %1967 = vmatpush2.msra.mxu0 0.0
    %1968 = vmatprep.subr.mxu0 0.0
    %1969 = vmatpush2.msra.mxu0 0.0
    %1970 = vmatprep.subr.mxu0 0.0
    %1971 = vmatpush2.msra.mxu0 0.0
    %1972 = vmatprep.subr.mxu0 0.0
    %1973 = vmatpush2.msra.mxu0 0.0
    %1974 = vmatprep.subr.mxu0 0.0
    %1975 = vmatpush2.msra.mxu0 0.0
    %1976 = vmatprep.subr.mxu0 0.0
    %1977 = vmatpush2.msra.mxu0 0.0
    %1978 = vmatprep.subr.mxu0 0.0
    %1979 = vmatpush2.msra.mxu0 0.0
    %1980 = vmatprep.subr.mxu0 0.0
    %1981 = vmatpush2.msra.mxu0 0.0
    %1982 = vmatprep.subr.mxu0 0.0
    %1983 = vmatpush2.msra.mxu0 0.0
    %1984 = vmatprep.subr.mxu0 0.0
    %1985 = vmatpush2.msra.mxu0 0.0
    %1986 = vmatprep.subr.mxu0 0.0
    %1987 = vmatpush2.msra.mxu0 0.0
    %1988 = vmatprep.subr.mxu0 0.0
    %1989 = vmatpush2.msra.mxu0 0.0
    %1990 = vmatprep.mubr.f32.mxu0 0.0
    %1991 = vmatmul.mubr.f32.gmra.mxu0 %v1924
    %v1992 = vpop.f32.mrf.mxu0
    %v1993 = vadd.f32 0.0, %v1992
    %v1994 = vpop.f32.mrf.mxu0
    %1995 = vdwg.mxu0
    %v1997 = vsel %vm117, %v1548, 0
    %1999 = vmatprep.subr.mxu0 0.0
    %2000 = vmatpush1.msra.mxu0 0.0
    %2001 = vmatprep.subr.mxu0 0.0
    %2002 = vmatpush1.msra.mxu0 0.0
    %2003 = vmatprep.subr.mxu0 0.0
    %2004 = vmatpush1.msra.mxu0 0.0
    %2005 = vmatprep.subr.mxu0 0.0
    %2006 = vmatpush1.msra.mxu0 0.0
    %2007 = vmatprep.subr.mxu0 0.0
    %2008 = vmatpush1.msra.mxu0 0.0
    %2009 = vmatprep.subr.mxu0 0.0
    %2010 = vmatpush1.msra.mxu0 0.0
    %2011 = vmatprep.subr.mxu0 0.0
    %2012 = vmatpush1.msra.mxu0 0.0
    %2013 = vmatprep.subr.mxu0 0.0
    %2014 = vmatpush1.msra.mxu0 0.0
    %2015 = vmatprep.subr.mxu0 0.0
    %2016 = vmatpush1.msra.mxu0 0.0
    %2017 = vmatprep.subr.mxu0 0.0
    %2018 = vmatpush1.msra.mxu0 0.0
    %2019 = vmatprep.subr.mxu0 0.0
    %2020 = vmatpush1.msra.mxu0 0.0
    %2021 = vmatprep.subr.mxu0 0.0
    %2022 = vmatpush1.msra.mxu0 0.0
    %2023 = vmatprep.subr.mxu0 0.0
    %2024 = vmatpush1.msra.mxu0 0.0
    %2025 = vmatprep.subr.mxu0 0.0
    %2026 = vmatpush1.msra.mxu0 0.0
    %2027 = vmatprep.subr.mxu0 0.0
    %2028 = vmatpush1.msra.mxu0 %v98
    %2029 = vmatprep.subr.mxu0 0.0
    %2030 = vmatpush1.msra.mxu0 %v97
    %2031 = vmatprep.subr.mxu0 0.0
    %2032 = vmatpush2.msra.mxu0 0.0
    %2033 = vmatprep.subr.mxu0 0.0
    %2034 = vmatpush2.msra.mxu0 0.0
    %2035 = vmatprep.subr.mxu0 0.0
    %2036 = vmatpush2.msra.mxu0 0.0
    %2037 = vmatprep.subr.mxu0 0.0
    %2038 = vmatpush2.msra.mxu0 0.0
    %2039 = vmatprep.subr.mxu0 0.0
    %2040 = vmatpush2.msra.mxu0 0.0
    %2041 = vmatprep.subr.mxu0 0.0
    %2042 = vmatpush2.msra.mxu0 0.0
    %2043 = vmatprep.subr.mxu0 0.0
    %2044 = vmatpush2.msra.mxu0 0.0
    %2045 = vmatprep.subr.mxu0 0.0
    %2046 = vmatpush2.msra.mxu0 0.0
    %2047 = vmatprep.subr.mxu0 0.0
    %2048 = vmatpush2.msra.mxu0 0.0
    %2049 = vmatprep.subr.mxu0 0.0
    %2050 = vmatpush2.msra.mxu0 0.0
    %2051 = vmatprep.subr.mxu0 0.0
    %2052 = vmatpush2.msra.mxu0 0.0
    %2053 = vmatprep.subr.mxu0 0.0
    %2054 = vmatpush2.msra.mxu0 0.0
    %2055 = vmatprep.subr.mxu0 0.0
    %2056 = vmatpush2.msra.mxu0 0.0
    %2057 = vmatprep.subr.mxu0 0.0
    %2058 = vmatpush2.msra.mxu0 0.0
    %2059 = vmatprep.subr.mxu0 0.0
    %2060 = vmatpush2.msra.mxu0 0.0
    %2061 = vmatprep.subr.mxu0 0.0
    %2062 = vmatpush2.msra.mxu0 0.0
    %2063 = vmatprep.mubr.f32.mxu0 0.0
    %2064 = vmatmul.mubr.f32.gmra.mxu0 %v1997
    %v2065 = vpop.f32.mrf.mxu0
    %v2066 = vadd.f32 0.0, %v2065
    %v2067 = vpop.f32.mrf.mxu0
    %2068 = vdwg.mxu0
    %v2070 = vsel %vm117, %v1549, 0
    %2072 = vmatprep.subr.mxu0 0.0
    %2073 = vmatpush1.msra.mxu0 0.0
    %2074 = vmatprep.subr.mxu0 0.0
    %2075 = vmatpush1.msra.mxu0 0.0
    %2076 = vmatprep.subr.mxu0 0.0
    %2077 = vmatpush1.msra.mxu0 0.0
    %2078 = vmatprep.subr.mxu0 0.0
    %2079 = vmatpush1.msra.mxu0 0.0
    %2080 = vmatprep.subr.mxu0 0.0
    %2081 = vmatpush1.msra.mxu0 0.0
    %2082 = vmatprep.subr.mxu0 0.0
    %2083 = vmatpush1.msra.mxu0 0.0
    %2084 = vmatprep.subr.mxu0 0.0
    %2085 = vmatpush1.msra.mxu0 0.0
    %2086 = vmatprep.subr.mxu0 0.0
    %2087 = vmatpush1.msra.mxu0 0.0
    %2088 = vmatprep.subr.mxu0 0.0
    %2089 = vmatpush1.msra.mxu0 0.0
    %2090 = vmatprep.subr.mxu0 0.0
    %2091 = vmatpush1.msra.mxu0 0.0
    %2092 = vmatprep.subr.mxu0 0.0
    %2093 = vmatpush1.msra.mxu0 0.0
    %2094 = vmatprep.subr.mxu0 0.0
    %2095 = vmatpush1.msra.mxu0 0.0
    %2096 = vmatprep.subr.mxu0 0.0
    %2097 = vmatpush1.msra.mxu0 0.0
    %2098 = vmatprep.subr.mxu0 0.0
    %2099 = vmatpush1.msra.mxu0 0.0
    %2100 = vmatprep.subr.mxu0 0.0
    %2101 = vmatpush1.msra.mxu0 %v100
    %2102 = vmatprep.subr.mxu0 0.0
    %2103 = vmatpush1.msra.mxu0 %v99
    %2104 = vmatprep.subr.mxu0 0.0
    %2105 = vmatpush2.msra.mxu0 0.0
    %2106 = vmatprep.subr.mxu0 0.0
    %2107 = vmatpush2.msra.mxu0 0.0
    %2108 = vmatprep.subr.mxu0 0.0
    %2109 = vmatpush2.msra.mxu0 0.0
    %2110 = vmatprep.subr.mxu0 0.0
    %2111 = vmatpush2.msra.mxu0 0.0
    %2112 = vmatprep.subr.mxu0 0.0
    %2113 = vmatpush2.msra.mxu0 0.0
    %2114 = vmatprep.subr.mxu0 0.0
    %2115 = vmatpush2.msra.mxu0 0.0
    %2116 = vmatprep.subr.mxu0 0.0
    %2117 = vmatpush2.msra.mxu0 0.0
    %2118 = vmatprep.subr.mxu0 0.0
    %2119 = vmatpush2.msra.mxu0 0.0
    %2120 = vmatprep.subr.mxu0 0.0
    %2121 = vmatpush2.msra.mxu0 0.0
    %2122 = vmatprep.subr.mxu0 0.0
    %2123 = vmatpush2.msra.mxu0 0.0
    %2124 = vmatprep.subr.mxu0 0.0
    %2125 = vmatpush2.msra.mxu0 0.0
    %2126 = vmatprep.subr.mxu0 0.0
    %2127 = vmatpush2.msra.mxu0 0.0
    %2128 = vmatprep.subr.mxu0 0.0
    %2129 = vmatpush2.msra.mxu0 0.0
    %2130 = vmatprep.subr.mxu0 0.0
    %2131 = vmatpush2.msra.mxu0 0.0
    %2132 = vmatprep.subr.mxu0 0.0
    %2133 = vmatpush2.msra.mxu0 0.0
    %2134 = vmatprep.subr.mxu0 0.0
    %2135 = vmatpush2.msra.mxu0 0.0
    %2136 = vmatprep.mubr.f32.mxu0 0.0
    %2137 = vmatmul.mubr.f32.gmra.mxu0 %v2070
    %v2138 = vpop.f32.mrf.mxu0
    %v2139 = vadd.f32 0.0, %v2138
    %v2140 = vpop.f32.mrf.mxu0
    %2141 = vdwg.mxu0
    %v2143 = vsel %vm117, %v1550, 0
    %2145 = vmatprep.subr.mxu0 0.0
    %2146 = vmatpush1.msra.mxu0 0.0
    %2147 = vmatprep.subr.mxu0 0.0
    %2148 = vmatpush1.msra.mxu0 0.0
    %2149 = vmatprep.subr.mxu0 0.0
    %2150 = vmatpush1.msra.mxu0 0.0
    %2151 = vmatprep.subr.mxu0 0.0
    %2152 = vmatpush1.msra.mxu0 0.0
    %2153 = vmatprep.subr.mxu0 0.0
    %2154 = vmatpush1.msra.mxu0 0.0
    %2155 = vmatprep.subr.mxu0 0.0
    %2156 = vmatpush1.msra.mxu0 0.0
    %2157 = vmatprep.subr.mxu0 0.0
    %2158 = vmatpush1.msra.mxu0 0.0
    %2159 = vmatprep.subr.mxu0 0.0
    %2160 = vmatpush1.msra.mxu0 0.0
    %2161 = vmatprep.subr.mxu0 0.0
    %2162 = vmatpush1.msra.mxu0 0.0
    %2163 = vmatprep.subr.mxu0 0.0
    %2164 = vmatpush1.msra.mxu0 0.0
    %2165 = vmatprep.subr.mxu0 0.0
    %2166 = vmatpush1.msra.mxu0 0.0
    %2167 = vmatprep.subr.mxu0 0.0
    %2168 = vmatpush1.msra.mxu0 0.0
    %2169 = vmatprep.subr.mxu0 0.0
    %2170 = vmatpush1.msra.mxu0 0.0
    %2171 = vmatprep.subr.mxu0 0.0
    %2172 = vmatpush1.msra.mxu0 0.0
    %2173 = vmatprep.subr.mxu0 0.0
    %2174 = vmatpush1.msra.mxu0 %v102
    %2175 = vmatprep.subr.mxu0 0.0
    %2176 = vmatpush1.msra.mxu0 %v101
    %2177 = vmatprep.subr.mxu0 0.0
    %2178 = vmatpush2.msra.mxu0 0.0
    %2179 = vmatprep.subr.mxu0 0.0
    %2180 = vmatpush2.msra.mxu0 0.0
    %2181 = vmatprep.subr.mxu0 0.0
    %2182 = vmatpush2.msra.mxu0 0.0
    %2183 = vmatprep.subr.mxu0 0.0
    %2184 = vmatpush2.msra.mxu0 0.0
    %2185 = vmatprep.subr.mxu0 0.0
    %2186 = vmatpush2.msra.mxu0 0.0
    %2187 = vmatprep.subr.mxu0 0.0
    %2188 = vmatpush2.msra.mxu0 0.0
    %2189 = vmatprep.subr.mxu0 0.0
    %2190 = vmatpush2.msra.mxu0 0.0
    %2191 = vmatprep.subr.mxu0 0.0
    %2192 = vmatpush2.msra.mxu0 0.0
    %2193 = vmatprep.subr.mxu0 0.0
    %2194 = vmatpush2.msra.mxu0 0.0
    %2195 = vmatprep.subr.mxu0 0.0
    %2196 = vmatpush2.msra.mxu0 0.0
    %2197 = vmatprep.subr.mxu0 0.0
    %2198 = vmatpush2.msra.mxu0 0.0
    %2199 = vmatprep.subr.mxu0 0.0
    %2200 = vmatpush2.msra.mxu0 0.0
    %2201 = vmatprep.subr.mxu0 0.0
    %2202 = vmatpush2.msra.mxu0 0.0
    %2203 = vmatprep.subr.mxu0 0.0
    %2204 = vmatpush2.msra.mxu0 0.0
    %2205 = vmatprep.subr.mxu0 0.0
    %2206 = vmatpush2.msra.mxu0 0.0
    %2207 = vmatprep.subr.mxu0 0.0
    %2208 = vmatpush2.msra.mxu0 0.0
    %2209 = vmatprep.mubr.f32.mxu0 0.0
    %2210 = vmatmul.mubr.f32.gmra.mxu0 %v2143
    %v2211 = vpop.f32.mrf.mxu0
    %v2212 = vadd.f32 0.0, %v2211
    %v2213 = vpop.f32.mrf.mxu0
    %2214 = vdwg.mxu0
    %v2216 = vsel %vm117, %v1551, 0
    %2218 = vmatprep.subr.mxu0 0.0
    %2219 = vmatpush1.msra.mxu0 0.0
    %2220 = vmatprep.subr.mxu0 0.0
    %2221 = vmatpush1.msra.mxu0 0.0
    %2222 = vmatprep.subr.mxu0 0.0
    %2223 = vmatpush1.msra.mxu0 0.0
    %2224 = vmatprep.subr.mxu0 0.0
    %2225 = vmatpush1.msra.mxu0 0.0
    %2226 = vmatprep.subr.mxu0 0.0
    %2227 = vmatpush1.msra.mxu0 0.0
    %2228 = vmatprep.subr.mxu0 0.0
    %2229 = vmatpush1.msra.mxu0 0.0
    %2230 = vmatprep.subr.mxu0 0.0
    %2231 = vmatpush1.msra.mxu0 0.0
    %2232 = vmatprep.subr.mxu0 0.0
    %2233 = vmatpush1.msra.mxu0 0.0
    %2234 = vmatprep.subr.mxu0 0.0
    %2235 = vmatpush1.msra.mxu0 0.0
    %2236 = vmatprep.subr.mxu0 0.0
    %2237 = vmatpush1.msra.mxu0 0.0
    %2238 = vmatprep.subr.mxu0 0.0
    %2239 = vmatpush1.msra.mxu0 0.0
    %2240 = vmatprep.subr.mxu0 0.0
    %2241 = vmatpush1.msra.mxu0 0.0
    %2242 = vmatprep.subr.mxu0 0.0
    %2243 = vmatpush1.msra.mxu0 0.0
    %2244 = vmatprep.subr.mxu0 0.0
    %2245 = vmatpush1.msra.mxu0 0.0
    %2246 = vmatprep.subr.mxu0 0.0
    %2247 = vmatpush1.msra.mxu0 %v104
    %2248 = vmatprep.subr.mxu0 0.0
    %2249 = vmatpush1.msra.mxu0 %v103
    %2250 = vmatprep.subr.mxu0 0.0
    %2251 = vmatpush2.msra.mxu0 0.0
    %2252 = vmatprep.subr.mxu0 0.0
    %2253 = vmatpush2.msra.mxu0 0.0
    %2254 = vmatprep.subr.mxu0 0.0
    %2255 = vmatpush2.msra.mxu0 0.0
    %2256 = vmatprep.subr.mxu0 0.0
    %2257 = vmatpush2.msra.mxu0 0.0
    %2258 = vmatprep.subr.mxu0 0.0
    %2259 = vmatpush2.msra.mxu0 0.0
    %2260 = vmatprep.subr.mxu0 0.0
    %2261 = vmatpush2.msra.mxu0 0.0
    %2262 = vmatprep.subr.mxu0 0.0
    %2263 = vmatpush2.msra.mxu0 0.0
    %2264 = vmatprep.subr.mxu0 0.0
    %2265 = vmatpush2.msra.mxu0 0.0
    %2266 = vmatprep.subr.mxu0 0.0
    %2267 = vmatpush2.msra.mxu0 0.0
    %2268 = vmatprep.subr.mxu0 0.0
    %2269 = vmatpush2.msra.mxu0 0.0
    %2270 = vmatprep.subr.mxu0 0.0
    %2271 = vmatpush2.msra.mxu0 0.0
    %2272 = vmatprep.subr.mxu0 0.0
    %2273 = vmatpush2.msra.mxu0 0.0
    %2274 = vmatprep.subr.mxu0 0.0
    %2275 = vmatpush2.msra.mxu0 0.0
    %2276 = vmatprep.subr.mxu0 0.0
    %2277 = vmatpush2.msra.mxu0 0.0
    %2278 = vmatprep.subr.mxu0 0.0
    %2279 = vmatpush2.msra.mxu0 0.0
    %2280 = vmatprep.subr.mxu0 0.0
    %2281 = vmatpush2.msra.mxu0 0.0
    %2282 = vmatprep.mubr.f32.mxu0 0.0
    %2283 = vmatmul.mubr.f32.gmra.mxu0 %v2216
    %v2284 = vpop.f32.mrf.mxu0
    %v2285 = vadd.f32 0.0, %v2284
    %v2286 = vpop.f32.mrf.mxu0
    %2287 = vdwg.mxu0
    %v2289 = vsel %vm117, %v1552, 0
    %2291 = vmatprep.subr.mxu0 0.0
    %2292 = vmatpush1.msra.mxu0 0.0
    %2293 = vmatprep.subr.mxu0 0.0
    %2294 = vmatpush1.msra.mxu0 0.0
    %2295 = vmatprep.subr.mxu0 0.0
    %2296 = vmatpush1.msra.mxu0 0.0
    %2297 = vmatprep.subr.mxu0 0.0
    %2298 = vmatpush1.msra.mxu0 0.0
    %2299 = vmatprep.subr.mxu0 0.0
    %2300 = vmatpush1.msra.mxu0 0.0
    %2301 = vmatprep.subr.mxu0 0.0
    %2302 = vmatpush1.msra.mxu0 0.0
    %2303 = vmatprep.subr.mxu0 0.0
    %2304 = vmatpush1.msra.mxu0 0.0
    %2305 = vmatprep.subr.mxu0 0.0
    %2306 = vmatpush1.msra.mxu0 0.0
    %2307 = vmatprep.subr.mxu0 0.0
    %2308 = vmatpush1.msra.mxu0 0.0
    %2309 = vmatprep.subr.mxu0 0.0
    %2310 = vmatpush1.msra.mxu0 0.0
    %2311 = vmatprep.subr.mxu0 0.0
    %2312 = vmatpush1.msra.mxu0 0.0
    %2313 = vmatprep.subr.mxu0 0.0
    %2314 = vmatpush1.msra.mxu0 0.0
    %2315 = vmatprep.subr.mxu0 0.0
    %2316 = vmatpush1.msra.mxu0 0.0
    %2317 = vmatprep.subr.mxu0 0.0
    %2318 = vmatpush1.msra.mxu0 0.0
    %2319 = vmatprep.subr.mxu0 0.0
    %2320 = vmatpush1.msra.mxu0 %v106
    %2321 = vmatprep.subr.mxu0 0.0
    %2322 = vmatpush1.msra.mxu0 %v105
    %2323 = vmatprep.subr.mxu0 0.0
    %2324 = vmatpush2.msra.mxu0 0.0
    %2325 = vmatprep.subr.mxu0 0.0
    %2326 = vmatpush2.msra.mxu0 0.0
    %2327 = vmatprep.subr.mxu0 0.0
    %2328 = vmatpush2.msra.mxu0 0.0
    %2329 = vmatprep.subr.mxu0 0.0
    %2330 = vmatpush2.msra.mxu0 0.0
    %2331 = vmatprep.subr.mxu0 0.0
    %2332 = vmatpush2.msra.mxu0 0.0
    %2333 = vmatprep.subr.mxu0 0.0
    %2334 = vmatpush2.msra.mxu0 0.0
    %2335 = vmatprep.subr.mxu0 0.0
    %2336 = vmatpush2.msra.mxu0 0.0
    %2337 = vmatprep.subr.mxu0 0.0
    %2338 = vmatpush2.msra.mxu0 0.0
    %2339 = vmatprep.subr.mxu0 0.0
    %2340 = vmatpush2.msra.mxu0 0.0
    %2341 = vmatprep.subr.mxu0 0.0
    %2342 = vmatpush2.msra.mxu0 0.0
    %2343 = vmatprep.subr.mxu0 0.0
    %2344 = vmatpush2.msra.mxu0 0.0
    %2345 = vmatprep.subr.mxu0 0.0
    %2346 = vmatpush2.msra.mxu0 0.0
    %2347 = vmatprep.subr.mxu0 0.0
    %2348 = vmatpush2.msra.mxu0 0.0
    %2349 = vmatprep.subr.mxu0 0.0
    %2350 = vmatpush2.msra.mxu0 0.0
    %2351 = vmatprep.subr.mxu0 0.0
    %2352 = vmatpush2.msra.mxu0 0.0
    %2353 = vmatprep.subr.mxu0 0.0
    %2354 = vmatpush2.msra.mxu0 0.0
    %2355 = vmatprep.mubr.f32.mxu0 0.0
    %2356 = vmatmul.mubr.f32.gmra.mxu0 %v2289
    %v2357 = vpop.f32.mrf.mxu0
    %v2358 = vadd.f32 0.0, %v2357
    %v2359 = vpop.f32.mrf.mxu0
    %2360 = vdwg.mxu0
    %v2362 = vsel %vm117, %v1553, 0
    %2364 = vmatprep.subr.mxu0 0.0
    %2365 = vmatpush1.msra.mxu0 0.0
    %2366 = vmatprep.subr.mxu0 0.0
    %2367 = vmatpush1.msra.mxu0 0.0
    %2368 = vmatprep.subr.mxu0 0.0
    %2369 = vmatpush1.msra.mxu0 0.0
    %2370 = vmatprep.subr.mxu0 0.0
    %2371 = vmatpush1.msra.mxu0 0.0
    %2372 = vmatprep.subr.mxu0 0.0
    %2373 = vmatpush1.msra.mxu0 0.0
    %2374 = vmatprep.subr.mxu0 0.0
    %2375 = vmatpush1.msra.mxu0 0.0
    %2376 = vmatprep.subr.mxu0 0.0
    %2377 = vmatpush1.msra.mxu0 0.0
    %2378 = vmatprep.subr.mxu0 0.0
    %2379 = vmatpush1.msra.mxu0 0.0
    %2380 = vmatprep.subr.mxu0 0.0
    %2381 = vmatpush1.msra.mxu0 0.0
    %2382 = vmatprep.subr.mxu0 0.0
    %2383 = vmatpush1.msra.mxu0 0.0
    %2384 = vmatprep.subr.mxu0 0.0
    %2385 = vmatpush1.msra.mxu0 0.0
    %2386 = vmatprep.subr.mxu0 0.0
    %2387 = vmatpush1.msra.mxu0 0.0
    %2388 = vmatprep.subr.mxu0 0.0
    %2389 = vmatpush1.msra.mxu0 0.0
    %2390 = vmatprep.subr.mxu0 0.0
    %2391 = vmatpush1.msra.mxu0 0.0
    %2392 = vmatprep.subr.mxu0 0.0
    %2393 = vmatpush1.msra.mxu0 %v108
    %2394 = vmatprep.subr.mxu0 0.0
    %2395 = vmatpush1.msra.mxu0 %v107
    %2396 = vmatprep.subr.mxu0 0.0
    %2397 = vmatpush2.msra.mxu0 0.0
    %2398 = vmatprep.subr.mxu0 0.0
    %2399 = vmatpush2.msra.mxu0 0.0
    %2400 = vmatprep.subr.mxu0 0.0
    %2401 = vmatpush2.msra.mxu0 0.0
    %2402 = vmatprep.subr.mxu0 0.0
    %2403 = vmatpush2.msra.mxu0 0.0
    %2404 = vmatprep.subr.mxu0 0.0
    %2405 = vmatpush2.msra.mxu0 0.0
    %2406 = vmatprep.subr.mxu0 0.0
    %2407 = vmatpush2.msra.mxu0 0.0
    %2408 = vmatprep.subr.mxu0 0.0
    %2409 = vmatpush2.msra.mxu0 0.0
    %2410 = vmatprep.subr.mxu0 0.0
    %2411 = vmatpush2.msra.mxu0 0.0
    %2412 = vmatprep.subr.mxu0 0.0
    %2413 = vmatpush2.msra.mxu0 0.0
    %2414 = vmatprep.subr.mxu0 0.0
    %2415 = vmatpush2.msra.mxu0 0.0
    %2416 = vmatprep.subr.mxu0 0.0
    %2417 = vmatpush2.msra.mxu0 0.0
    %2418 = vmatprep.subr.mxu0 0.0
    %2419 = vmatpush2.msra.mxu0 0.0
    %2420 = vmatprep.subr.mxu0 0.0
    %2421 = vmatpush2.msra.mxu0 0.0
    %2422 = vmatprep.subr.mxu0 0.0
    %2423 = vmatpush2.msra.mxu0 0.0
    %2424 = vmatprep.subr.mxu0 0.0
    %2425 = vmatpush2.msra.mxu0 0.0
    %2426 = vmatprep.subr.mxu0 0.0
    %2427 = vmatpush2.msra.mxu0 0.0
    %2428 = vmatprep.mubr.f32.mxu0 0.0
    %2429 = vmatmul.mubr.f32.gmra.mxu0 %v2362
    %v2430 = vpop.f32.mrf.mxu0
    %v2431 = vadd.f32 0.0, %v2430
    %v2432 = vpop.f32.mrf.mxu0
    %2433 = vdwg.mxu0
    %v2435 = vsel %vm117, %v1554, 0
    %2437 = vmatprep.subr.mxu0 0.0
    %2438 = vmatpush1.msra.mxu0 0.0
    %2439 = vmatprep.subr.mxu0 0.0
    %2440 = vmatpush1.msra.mxu0 0.0
    %2441 = vmatprep.subr.mxu0 0.0
    %2442 = vmatpush1.msra.mxu0 0.0
    %2443 = vmatprep.subr.mxu0 0.0
    %2444 = vmatpush1.msra.mxu0 0.0
    %2445 = vmatprep.subr.mxu0 0.0
    %2446 = vmatpush1.msra.mxu0 0.0
    %2447 = vmatprep.subr.mxu0 0.0
    %2448 = vmatpush1.msra.mxu0 0.0
    %2449 = vmatprep.subr.mxu0 0.0
    %2450 = vmatpush1.msra.mxu0 0.0
    %2451 = vmatprep.subr.mxu0 0.0
    %2452 = vmatpush1.msra.mxu0 0.0
    %2453 = vmatprep.subr.mxu0 0.0
    %2454 = vmatpush1.msra.mxu0 0.0
    %2455 = vmatprep.subr.mxu0 0.0
    %2456 = vmatpush1.msra.mxu0 0.0
    %2457 = vmatprep.subr.mxu0 0.0
    %2458 = vmatpush1.msra.mxu0 0.0
    %2459 = vmatprep.subr.mxu0 0.0
    %2460 = vmatpush1.msra.mxu0 0.0
    %2461 = vmatprep.subr.mxu0 0.0
    %2462 = vmatpush1.msra.mxu0 0.0
    %2463 = vmatprep.subr.mxu0 0.0
    %2464 = vmatpush1.msra.mxu0 0.0
    %2465 = vmatprep.subr.mxu0 0.0
    %2466 = vmatpush1.msra.mxu0 %v110
    %2467 = vmatprep.subr.mxu0 0.0
    %2468 = vmatpush1.msra.mxu0 %v109
    %2469 = vmatprep.subr.mxu0 0.0
    %2470 = vmatpush2.msra.mxu0 0.0
    %2471 = vmatprep.subr.mxu0 0.0
    %2472 = vmatpush2.msra.mxu0 0.0
    %2473 = vmatprep.subr.mxu0 0.0
    %2474 = vmatpush2.msra.mxu0 0.0
    %2475 = vmatprep.subr.mxu0 0.0
    %2476 = vmatpush2.msra.mxu0 0.0
    %2477 = vmatprep.subr.mxu0 0.0
    %2478 = vmatpush2.msra.mxu0 0.0
    %2479 = vmatprep.subr.mxu0 0.0
    %2480 = vmatpush2.msra.mxu0 0.0
    %2481 = vmatprep.subr.mxu0 0.0
    %2482 = vmatpush2.msra.mxu0 0.0
    %2483 = vmatprep.subr.mxu0 0.0
    %2484 = vmatpush2.msra.mxu0 0.0
    %2485 = vmatprep.subr.mxu0 0.0
    %2486 = vmatpush2.msra.mxu0 0.0
    %2487 = vmatprep.subr.mxu0 0.0
    %2488 = vmatpush2.msra.mxu0 0.0
    %2489 = vmatprep.subr.mxu0 0.0
    %2490 = vmatpush2.msra.mxu0 0.0
    %2491 = vmatprep.subr.mxu0 0.0
    %2492 = vmatpush2.msra.mxu0 0.0
    %2493 = vmatprep.subr.mxu0 0.0
    %2494 = vmatpush2.msra.mxu0 0.0
    %2495 = vmatprep.subr.mxu0 0.0
    %2496 = vmatpush2.msra.mxu0 0.0
    %2497 = vmatprep.subr.mxu0 0.0
    %2498 = vmatpush2.msra.mxu0 0.0
    %2499 = vmatprep.subr.mxu0 0.0
    %2500 = vmatpush2.msra.mxu0 0.0
    %2501 = vmatprep.mubr.f32.mxu0 0.0
    %2502 = vmatmul.mubr.f32.gmra.mxu0 %v2435
    %v2503 = vpop.f32.mrf.mxu0
    %v2504 = vadd.f32 0.0, %v2503
    %v2505 = vpop.f32.mrf.mxu0
    %2506 = vdwg.mxu0
    %v2508 = vsel %vm117, %v1555, 0
    %2510 = vmatprep.subr.mxu0 0.0
    %2511 = vmatpush1.msra.mxu0 0.0
    %2512 = vmatprep.subr.mxu0 0.0
    %2513 = vmatpush1.msra.mxu0 0.0
    %2514 = vmatprep.subr.mxu0 0.0
    %2515 = vmatpush1.msra.mxu0 0.0
    %2516 = vmatprep.subr.mxu0 0.0
    %2517 = vmatpush1.msra.mxu0 0.0
    %2518 = vmatprep.subr.mxu0 0.0
    %2519 = vmatpush1.msra.mxu0 0.0
    %2520 = vmatprep.subr.mxu0 0.0
    %2521 = vmatpush1.msra.mxu0 0.0
    %2522 = vmatprep.subr.mxu0 0.0
    %2523 = vmatpush1.msra.mxu0 0.0
    %2524 = vmatprep.subr.mxu0 0.0
    %2525 = vmatpush1.msra.mxu0 0.0
    %2526 = vmatprep.subr.mxu0 0.0
    %2527 = vmatpush1.msra.mxu0 0.0
    %2528 = vmatprep.subr.mxu0 0.0
    %2529 = vmatpush1.msra.mxu0 0.0
    %2530 = vmatprep.subr.mxu0 0.0
    %2531 = vmatpush1.msra.mxu0 0.0
    %2532 = vmatprep.subr.mxu0 0.0
    %2533 = vmatpush1.msra.mxu0 0.0
    %2534 = vmatprep.subr.mxu0 0.0
    %2535 = vmatpush1.msra.mxu0 0.0
    %2536 = vmatprep.subr.mxu0 0.0
    %2537 = vmatpush1.msra.mxu0 0.0
    %2538 = vmatprep.subr.mxu0 0.0
    %2539 = vmatpush1.msra.mxu0 %v112
    %2540 = vmatprep.subr.mxu0 0.0
    %2541 = vmatpush1.msra.mxu0 %v111
    %2542 = vmatprep.subr.mxu0 0.0
    %2543 = vmatpush2.msra.mxu0 0.0
    %2544 = vmatprep.subr.mxu0 0.0
    %2545 = vmatpush2.msra.mxu0 0.0
    %2546 = vmatprep.subr.mxu0 0.0
    %2547 = vmatpush2.msra.mxu0 0.0
    %2548 = vmatprep.subr.mxu0 0.0
    %2549 = vmatpush2.msra.mxu0 0.0
    %2550 = vmatprep.subr.mxu0 0.0
    %2551 = vmatpush2.msra.mxu0 0.0
    %2552 = vmatprep.subr.mxu0 0.0
    %2553 = vmatpush2.msra.mxu0 0.0
    %2554 = vmatprep.subr.mxu0 0.0
    %2555 = vmatpush2.msra.mxu0 0.0
    %2556 = vmatprep.subr.mxu0 0.0
    %2557 = vmatpush2.msra.mxu0 0.0
    %2558 = vmatprep.subr.mxu0 0.0
    %2559 = vmatpush2.msra.mxu0 0.0
    %2560 = vmatprep.subr.mxu0 0.0
    %2561 = vmatpush2.msra.mxu0 0.0
    %2562 = vmatprep.subr.mxu0 0.0
    %2563 = vmatpush2.msra.mxu0 0.0
    %2564 = vmatprep.subr.mxu0 0.0
    %2565 = vmatpush2.msra.mxu0 0.0
    %2566 = vmatprep.subr.mxu0 0.0
    %2567 = vmatpush2.msra.mxu0 0.0
    %2568 = vmatprep.subr.mxu0 0.0
    %2569 = vmatpush2.msra.mxu0 0.0
    %2570 = vmatprep.subr.mxu0 0.0
    %2571 = vmatpush2.msra.mxu0 0.0
    %2572 = vmatprep.subr.mxu0 0.0
    %2573 = vmatpush2.msra.mxu0 0.0
    %2574 = vmatprep.mubr.f32.mxu0 0.0
    %2575 = vmatmul.mubr.f32.gmra.mxu0 %v2508
    %v2576 = vpop.f32.mrf.mxu0
    %v2577 = vadd.f32 0.0, %v2576
    %v2578 = vpop.f32.mrf.mxu0
    %2579 = vdwg.mxu0
    %v2581 = vsel %vm117, %v1556, 0
    %2583 = vmatprep.subr.mxu0 0.0
    %2584 = vmatpush1.msra.mxu0 0.0
    %2585 = vmatprep.subr.mxu0 0.0
    %2586 = vmatpush1.msra.mxu0 0.0
    %2587 = vmatprep.subr.mxu0 0.0
    %2588 = vmatpush1.msra.mxu0 0.0
    %2589 = vmatprep.subr.mxu0 0.0
    %2590 = vmatpush1.msra.mxu0 0.0
    %2591 = vmatprep.subr.mxu0 0.0
    %2592 = vmatpush1.msra.mxu0 0.0
    %2593 = vmatprep.subr.mxu0 0.0
    %2594 = vmatpush1.msra.mxu0 0.0
    %2595 = vmatprep.subr.mxu0 0.0
    %2596 = vmatpush1.msra.mxu0 0.0
    %2597 = vmatprep.subr.mxu0 0.0
    %2598 = vmatpush1.msra.mxu0 0.0
    %2599 = vmatprep.subr.mxu0 0.0
    %2600 = vmatpush1.msra.mxu0 0.0
    %2601 = vmatprep.subr.mxu0 0.0
    %2602 = vmatpush1.msra.mxu0 0.0
    %2603 = vmatprep.subr.mxu0 0.0
    %2604 = vmatpush1.msra.mxu0 0.0
    %2605 = vmatprep.subr.mxu0 0.0
    %2606 = vmatpush1.msra.mxu0 0.0
    %2607 = vmatprep.subr.mxu0 0.0
    %2608 = vmatpush1.msra.mxu0 0.0
    %2609 = vmatprep.subr.mxu0 0.0
    %2610 = vmatpush1.msra.mxu0 0.0
    %2611 = vmatprep.subr.mxu0 0.0
    %2612 = vmatpush1.msra.mxu0 %v114
    %2613 = vmatprep.subr.mxu0 0.0
    %2614 = vmatpush1.msra.mxu0 %v113
    %2615 = vmatprep.subr.mxu0 0.0
    %2616 = vmatpush2.msra.mxu0 0.0
    %2617 = vmatprep.subr.mxu0 0.0
    %2618 = vmatpush2.msra.mxu0 0.0
    %2619 = vmatprep.subr.mxu0 0.0
    %2620 = vmatpush2.msra.mxu0 0.0
    %2621 = vmatprep.subr.mxu0 0.0
    %2622 = vmatpush2.msra.mxu0 0.0
    %2623 = vmatprep.subr.mxu0 0.0
    %2624 = vmatpush2.msra.mxu0 0.0
    %2625 = vmatprep.subr.mxu0 0.0
    %2626 = vmatpush2.msra.mxu0 0.0
    %2627 = vmatprep.subr.mxu0 0.0
    %2628 = vmatpush2.msra.mxu0 0.0
    %2629 = vmatprep.subr.mxu0 0.0
    %2630 = vmatpush2.msra.mxu0 0.0
    %2631 = vmatprep.subr.mxu0 0.0
    %2632 = vmatpush2.msra.mxu0 0.0
    %2633 = vmatprep.subr.mxu0 0.0
    %2634 = vmatpush2.msra.mxu0 0.0
    %2635 = vmatprep.subr.mxu0 0.0
    %2636 = vmatpush2.msra.mxu0 0.0
    %2637 = vmatprep.subr.mxu0 0.0
    %2638 = vmatpush2.msra.mxu0 0.0
    %2639 = vmatprep.subr.mxu0 0.0
    %2640 = vmatpush2.msra.mxu0 0.0
    %2641 = vmatprep.subr.mxu0 0.0
    %2642 = vmatpush2.msra.mxu0 0.0
    %2643 = vmatprep.subr.mxu0 0.0
    %2644 = vmatpush2.msra.mxu0 0.0
    %2645 = vmatprep.subr.mxu0 0.0
    %2646 = vmatpush2.msra.mxu0 0.0
    %2647 = vmatprep.mubr.f32.mxu0 0.0
    %2648 = vmatmul.mubr.f32.gmra.mxu0 %v2581
    %v2649 = vpop.f32.mrf.mxu0
    %v2650 = vadd.f32 0.0, %v2649
    %v2651 = vpop.f32.mrf.mxu0
    %2652 = vdwg.mxu0
    %v2654 = vsel %vm117, %v1557, 0
    %2656 = vmatprep.subr.mxu0 0.0
    %2657 = vmatpush1.msra.mxu0 0.0
    %2658 = vmatprep.subr.mxu0 0.0
    %2659 = vmatpush1.msra.mxu0 0.0
    %2660 = vmatprep.subr.mxu0 0.0
    %2661 = vmatpush1.msra.mxu0 0.0
    %2662 = vmatprep.subr.mxu0 0.0
    %2663 = vmatpush1.msra.mxu0 0.0
    %2664 = vmatprep.subr.mxu0 0.0
    %2665 = vmatpush1.msra.mxu0 0.0
    %2666 = vmatprep.subr.mxu0 0.0
    %2667 = vmatpush1.msra.mxu0 0.0
    %2668 = vmatprep.subr.mxu0 0.0
    %2669 = vmatpush1.msra.mxu0 0.0
    %2670 = vmatprep.subr.mxu0 0.0
    %2671 = vmatpush1.msra.mxu0 0.0
    %2672 = vmatprep.subr.mxu0 0.0
    %2673 = vmatpush1.msra.mxu0 0.0
    %2674 = vmatprep.subr.mxu0 0.0
    %2675 = vmatpush1.msra.mxu0 0.0
    %2676 = vmatprep.subr.mxu0 0.0
    %2677 = vmatpush1.msra.mxu0 0.0
    %2678 = vmatprep.subr.mxu0 0.0
    %2679 = vmatpush1.msra.mxu0 0.0
    %2680 = vmatprep.subr.mxu0 0.0
    %2681 = vmatpush1.msra.mxu0 0.0
    %2682 = vmatprep.subr.mxu0 0.0
    %2683 = vmatpush1.msra.mxu0 0.0
    %2684 = vmatprep.subr.mxu0 0.0
    %2685 = vmatpush1.msra.mxu0 %v116
    %2686 = vmatprep.subr.mxu0 0.0
    %2687 = vmatpush1.msra.mxu0 %v115
    %2688 = vmatprep.subr.mxu0 0.0
    %2689 = vmatpush2.msra.mxu0 0.0
    %2690 = vmatprep.subr.mxu0 0.0
    %2691 = vmatpush2.msra.mxu0 0.0
    %2692 = vmatprep.subr.mxu0 0.0
    %2693 = vmatpush2.msra.mxu0 0.0
    %2694 = vmatprep.subr.mxu0 0.0
    %2695 = vmatpush2.msra.mxu0 0.0
    %2696 = vmatprep.subr.mxu0 0.0
    %2697 = vmatpush2.msra.mxu0 0.0
    %2698 = vmatprep.subr.mxu0 0.0
    %2699 = vmatpush2.msra.mxu0 0.0
    %2700 = vmatprep.subr.mxu0 0.0
    %2701 = vmatpush2.msra.mxu0 0.0
    %2702 = vmatprep.subr.mxu0 0.0
    %2703 = vmatpush2.msra.mxu0 0.0
    %2704 = vmatprep.subr.mxu0 0.0
    %2705 = vmatpush2.msra.mxu0 0.0
    %2706 = vmatprep.subr.mxu0 0.0
    %2707 = vmatpush2.msra.mxu0 0.0
    %2708 = vmatprep.subr.mxu0 0.0
    %2709 = vmatpush2.msra.mxu0 0.0
    %2710 = vmatprep.subr.mxu0 0.0
    %2711 = vmatpush2.msra.mxu0 0.0
    %2712 = vmatprep.subr.mxu0 0.0
    %2713 = vmatpush2.msra.mxu0 0.0
    %2714 = vmatprep.subr.mxu0 0.0
    %2715 = vmatpush2.msra.mxu0 0.0
    %2716 = vmatprep.subr.mxu0 0.0
    %2717 = vmatpush2.msra.mxu0 0.0
    %2718 = vmatprep.subr.mxu0 0.0
    %2719 = vmatpush2.msra.mxu0 0.0
    %2720 = vmatprep.mubr.f32.mxu0 0.0
    %2721 = vmatmul.mubr.f32.gmra.mxu0 %v2654
    %v2722 = vpop.f32.mrf.mxu0
    %v2723 = vadd.f32 0.0, %v2722
    %v2724 = vpop.f32.mrf.mxu0
    %2725 = vdwg.mxu0
    %2728 = vrot.lane.b32.xlu0 %v1774, 16
    %v2729 = vpop.permute.xlu0 %2728
    %2730 = vrot.lane.b32.xlu0 %v1847, 16
    %v2731 = vpop.permute.xlu0 %2730
    %2736 = vrot.lane.b32.xlu0 %v1920, 32
    %v2737 = vpop.permute.xlu0 %2736
    %2738 = vrot.lane.b32.xlu0 %v1993, 32
    %v2739 = vpop.permute.xlu0 %2738
    %2744 = vrot.lane.b32.xlu0 %v2066, 48
    %v2745 = vpop.permute.xlu0 %2744
    %2746 = vrot.lane.b32.xlu0 %v2139, 48
    %v2747 = vpop.permute.xlu0 %2746
    %2752 = vrot.lane.b32.xlu0 %v2212, 64
    %v2753 = vpop.permute.xlu0 %2752
    %2754 = vrot.lane.b32.xlu0 %v2285, 64
    %v2755 = vpop.permute.xlu0 %2754
    %2760 = vrot.lane.b32.xlu0 %v2358, 80
    %v2761 = vpop.permute.xlu0 %2760
    %2762 = vrot.lane.b32.xlu0 %v2431, 80
    %v2763 = vpop.permute.xlu0 %2762
    %2768 = vrot.lane.b32.xlu0 %v2504, 96
    %v2769 = vpop.permute.xlu0 %2768
    %2770 = vrot.lane.b32.xlu0 %v2577, 96
    %v2771 = vpop.permute.xlu0 %2770
    %2776 = vrot.lane.b32.xlu0 %v2650, 112
    %v2777 = vpop.permute.xlu0 %2776
    %2778 = vrot.lane.b32.xlu0 %v2723, 112
    %v2779 = vpop.permute.xlu0 %2778
    %v2782 = vsel %vm117, %v1628, %v2729
    %v2783 = vsel %vm117, %v1701, %v2731
    %vm2784 = vcmask 261120
    %v2785 = vsel %vm2784, %v2782, %v2737
    %v2786 = vsel %vm2784, %v2783, %v2739
    %vm2787 = vcmask 392192
    %v2788 = vsel %vm2787, %v2785, %v2745
    %v2789 = vsel %vm2787, %v2786, %v2747
    %vm2790 = vcmask 523264
    %v2791 = vsel %vm2790, %v2788, %v2753
    %v2792 = vsel %vm2790, %v2789, %v2755
    %vm2793 = vcmask 654336
    %v2794 = vsel %vm2793, %v2791, %v2761
    %v2795 = vsel %vm2793, %v2792, %v2763
    %vm2796 = vcmask 785408
    %v2797 = vsel %vm2796, %v2794, %v2769
    %v2798 = vsel %vm2796, %v2795, %v2771
    %vm2799 = vcmask 916480
    %v2800 = vsel %vm2799, %v2797, %v2777
    %v2801 = vsel %vm2799, %v2798, %v2779
    %v2802 = vld [vmem:[%s3] sm:$0xff]
    %v2803 = vld [vmem:[%s3 + $0x8] sm:$0xff]
    %v2804 = vld [vmem:[%s3 + $0x10] sm:$0xff]
    %v2805 = vld [vmem:[%s3 + $0x18] sm:$0xff]
    %v2806 = vld [vmem:[%s3 + $0x20] sm:$0xff]
    %v2807 = vld [vmem:[%s3 + $0x28] sm:$0xff]
    %v2808 = vld [vmem:[%s3 + $0x30] sm:$0xff]
    %v2809 = vld [vmem:[%s3 + $0x38] sm:$0xff]
    %v2810 = vld [vmem:[%s3 + $0x40] sm:$0xff]
    %v2811 = vld [vmem:[%s3 + $0x48] sm:$0xff]
    %v2812 = vld [vmem:[%s3 + $0x50] sm:$0xff]
    %v2813 = vld [vmem:[%s3 + $0x58] sm:$0xff]
    %v2814 = vld [vmem:[%s3 + $0x60] sm:$0xff]
    %v2815 = vld [vmem:[%s3 + $0x68] sm:$0xff]
    %v2816 = vld [vmem:[%s3 + $0x70] sm:$0xff]
    %v2817 = vld [vmem:[%s3 + $0x78] sm:$0xff]
    %v2818 = vld [vmem:[%s4] sm:$0x1]
    %v2820 = vlaneseq
    %v2821 = vshrl.u32 %v2820, 7
    %v2822 = vsub.s32 0, %v2821
    %v2823 = vrot.slane %v2818, %v2822
    %2825 = vmatprep.subr.mxu0 0.0
    %2826 = vmatpush1.msra.mxu0 %v2817
    %2827 = vmatprep.subr.mxu0 0.0
    %2828 = vmatpush1.msra.mxu0 %v2816
    %2829 = vmatprep.subr.mxu0 0.0
    %2830 = vmatpush1.msra.mxu0 %v2815
    %2831 = vmatprep.subr.mxu0 0.0
    %2832 = vmatpush1.msra.mxu0 %v2814
    %2833 = vmatprep.subr.mxu0 0.0
    %2834 = vmatpush1.msra.mxu0 %v2813
    %2835 = vmatprep.subr.mxu0 0.0
    %2836 = vmatpush1.msra.mxu0 %v2812
    %2837 = vmatprep.subr.mxu0 0.0
    %2838 = vmatpush1.msra.mxu0 %v2811
    %2839 = vmatprep.subr.mxu0 0.0
    %2840 = vmatpush1.msra.mxu0 %v2810
    %2841 = vmatprep.subr.mxu0 0.0
    %2842 = vmatpush1.msra.mxu0 %v2809
    %2843 = vmatprep.subr.mxu0 0.0
    %2844 = vmatpush1.msra.mxu0 %v2808
    %2845 = vmatprep.subr.mxu0 0.0
    %2846 = vmatpush1.msra.mxu0 %v2807
    %2847 = vmatprep.subr.mxu0 0.0
    %2848 = vmatpush1.msra.mxu0 %v2806
    %2849 = vmatprep.subr.mxu0 0.0
    %2850 = vmatpush1.msra.mxu0 %v2805
    %2851 = vmatprep.subr.mxu0 0.0
    %2852 = vmatpush1.msra.mxu0 %v2804
    %2853 = vmatprep.subr.mxu0 0.0
    %2854 = vmatpush1.msra.mxu0 %v2803
    %2855 = vmatprep.subr.mxu0 0.0
    %2856 = vmatpush1.msra.mxu0 %v2802
    %2857 = vmatprep.subr.mxu0 0.0
    %2858 = vmatpush2.msra.mxu0 0.0
    %2859 = vmatprep.subr.mxu0 0.0
    %2860 = vmatpush2.msra.mxu0 0.0
    %2861 = vmatprep.subr.mxu0 0.0
    %2862 = vmatpush2.msra.mxu0 0.0
    %2863 = vmatprep.subr.mxu0 0.0
    %2864 = vmatpush2.msra.mxu0 0.0
    %2865 = vmatprep.subr.mxu0 0.0
    %2866 = vmatpush2.msra.mxu0 0.0
    %2867 = vmatprep.subr.mxu0 0.0
    %2868 = vmatpush2.msra.mxu0 0.0
    %2869 = vmatprep.subr.mxu0 0.0
    %2870 = vmatpush2.msra.mxu0 0.0
    %2871 = vmatprep.subr.mxu0 0.0
    %2872 = vmatpush2.msra.mxu0 0.0
    %2873 = vmatprep.subr.mxu0 0.0
    %2874 = vmatpush2.msra.mxu0 0.0
    %2875 = vmatprep.subr.mxu0 0.0
    %2876 = vmatpush2.msra.mxu0 0.0
    %2877 = vmatprep.subr.mxu0 0.0
    %2878 = vmatpush2.msra.mxu0 0.0
    %2879 = vmatprep.subr.mxu0 0.0
    %2880 = vmatpush2.msra.mxu0 0.0
    %2881 = vmatprep.subr.mxu0 0.0
    %2882 = vmatpush2.msra.mxu0 0.0
    %2883 = vmatprep.subr.mxu0 0.0
    %2884 = vmatpush2.msra.mxu0 0.0
    %2885 = vmatprep.subr.mxu0 0.0
    %2886 = vmatpush2.msra.mxu0 0.0
    %2887 = vmatprep.subr.mxu0 0.0
    %2888 = vmatpush2.msra.mxu0 0.0
    %2889 = vmatprep.mubr.f32.mxu0 0.0
    %2890 = vmatmul.mubr.f32.gmra.mxu0 %v2800
    %v2891 = vpop.f32.mrf.mxu0
    %v2892 = vadd.f32 %v2823, %v2891
    %v2893 = vpop.f32.mrf.mxu0
    %2894 = vmatprep.mubr.f32.mxu0 0.0
    %2895 = vmatmul.mubr.f32.gmra.mxu0 %v2801
    %v2896 = vpop.f32.mrf.mxu0
    %v2897 = vadd.f32 %v2823, %v2896
    %v2898 = vpop.f32.mrf.mxu0
    %2899 = vdwg.mxu0
    %2900 = vst [vmem:[#allocation2] sm:$0xff] %v2892
    %2901 = vst [vmem:[#allocation2 + $0x8] sm:$0xff] %v2897
    // Predicated region
    $region22: #{multi_head_attention.3} parent=1 // pred_check
      _
    $region23: #{multi_head_attention.3} parent=1 // pred_check_branch
      %2903 = sbr.rel (0) target = $region25
    $region24: #{multi_head_attention.3} parent=1 // pred_region
      %s2905 = ssub.s32 256, 256
      %2906 = vsyncadd [#allocation3], %s2905
      %s2907 = sshll.u32 [#allocation2], 4
      %s2908 = int_to_ptr.vmem [resolvable:$true] %s2907
      %2913 = dma.vmem_to_hbm [thread:$0]  %s2908, 256, %s5, [#allocation3], 128, 128, 8
    $region25: #{multi_head_attention.3} parent=1 // pred_fallthru
      _
    // Predicated region
    $region26: #{multi_head_attention.3} parent=1 // pred_check
      _
    $region27: #{multi_head_attention.3} parent=1 // pred_check_branch
      %2915 = sbr.rel (0) target = $region29
    $region28: #{multi_head_attention.3} parent=1 // pred_region
      %2916 = dma.done [#allocation3], 256
    $region29: #{multi_head_attention.3} parent=1 // pred_fallthru
      _
    %2917 = vsyncpa [#allocation3], 1

</llo_original>
